<compile_context>
chip_gen: v5e
topology: v5e:2x2
jax: 0.10.0
libtpu: 0.0.40
codegen_flags: <defaults>
</compile_context>

<pallas_src>
import jax
import jax.numpy as jnp
from jax import lax
from jax.experimental import pallas as pl
from jax.experimental.pallas import tpu as pltpu


# ----------------------------------------------------------------------------
# Fused two-layer (direction-batched) LSTM kernel + flip/concat glue
# ----------------------------------------------------------------------------
def _bilstm_kernel(x_ref, lens_ref, wih1_ref, whh1_ref, b1_ref,
                   wih2_ref, whh2_ref, b2_ref,
                   hs0_ref, hs1_ref, pre_ref, out_scr):
    """Two stacked masked LSTMs over a direction-batched sequence, plus glue.

    x_ref   : (T, B2, H)  f32  embeddings, fwd||rev batched along B2=2B
    lens_ref: (B2, 1)     i32  sequence length per batch row
    w*_ref  : (H, 4H)     bf16 fused gate weights (i,f,g,o); b*: (1,4H) f32
    hs0_ref : (T, B, 2H)  f32  concat(fwd_out1, rev_out1)        (zero past len)
    hs1_ref : (T, B, 2H)  f32  concat(fwd_out2, flip(rev_out2))  (zero past len)
    pre_ref : (T, B, 2H)  f32  linear input (zero past len-2)
    out_scr : (2, T, B2, H) f32 VMEM scratch holding both layers' outputs
    """
    T, B2, H = x_ref.shape
    B = B2 // 2
    H4 = 4 * H

    lens2 = lens_ref[...]                                   # (B2, 1) int32

    # Per-lane gate-activation constants (hoisted once): one full-vreg tanh
    # per step; sigmoid(x) = 0.5*tanh(0.5*x) + 0.5 on i/f/o lanes, tanh on g.
    lane = lax.broadcasted_iota(jnp.int32, (1, H4), 1)
    is_g = jnp.logical_and(lane >= 2 * H, lane < 3 * H)
    g_scale = jnp.where(is_g, 1.0, 0.5).astype(jnp.float32)     # pre & post scale
    g_shift = jnp.where(is_g, 0.0, 0.5).astype(jnp.float32)

    def run_layer(xg_flat, whh, layer_idx):
        # xg_flat: (T*B2, 4H) f32 precomputed x-projection (+bias), kept as a
        # traced value and statically sliced -> no per-step VMEM round-trip.
        # Only the recurrent h @ Whh matmul stays on the serial critical path.
        # TODO(synk): keep Whh resident in MXU staging registers across the
        # time loop via pltpu.matmul_push_rhs/acc_lhs/pop; kept as jnp.dot for
        # portability across MRF (v5e/v6e) vs MRB (v7x) result paths.
        h = jnp.zeros((B2, H), jnp.float32)
        c = jnp.zeros((B2, H), jnp.float32)
        for t in range(T):                                  # static full unroll
            gates = xg_flat[t * B2:(t + 1) * B2, :] + jnp.dot(
                h.astype(jnp.bfloat16), whh, preferred_element_type=jnp.float32)
            act = g_scale * jnp.tanh(g_scale * gates) + g_shift   # one EUP pass
            i_g = act[:, 0 * H:1 * H]
            f_g = act[:, 1 * H:2 * H]
            g_g = act[:, 2 * H:3 * H]
            o_g = act[:, 3 * H:4 * H]
            c_new = f_g * c + i_g * g_g
            h_new = o_g * jnp.tanh(c_new)
            # Packed-sequence semantics: freeze state / zero output past len.
            valid = lens2 > t                               # (B2, 1) bool
            h = jnp.where(valid, h_new, h)
            c = jnp.where(valid, c_new, c)
            out_scr[layer_idx, t] = jnp.where(valid, h_new, 0.0)

    wih1 = wih1_ref[...]
    whh1 = whh1_ref[...]
    wih2 = wih2_ref[...]
    whh2 = whh2_ref[...]

    # Layer 1: one hoisted MXU GEMM for the input projection over all steps.
    x_flat = x_ref[...].reshape(T * B2, H).astype(jnp.bfloat16)
    xg1 = jnp.dot(x_flat, wih1, preferred_element_type=jnp.float32) + b1_ref[...]
    run_layer(xg1, whh1, 0)

    # Layer 2: input projection of the layer-1 output (never leaves VMEM).
    out1 = out_scr[0]                                       # (T, B2, H)
    xg2 = jnp.dot(out1.reshape(T * B2, H).astype(jnp.bfloat16), wih2,
                  preferred_element_type=jnp.float32) + b2_ref[...]
    run_layer(xg2, whh2, 1)
    out2 = out_scr[1]                                       # (T, B2, H)

    # ------- glue (flips / concats / masks) computed in-kernel ---------------
    fwd1, rev1 = out1[:, :B, :], out1[:, B:, :]
    fwd2, rev2 = out2[:, :B, :], out2[:, B:, :]

    # hidden_states[0] = concat(fwd_out1, rev_out1)  (no flip; already zero
    # past each sequence length).
    hs0_ref[:, :, 0:H] = fwd1
    hs0_ref[:, :, H:2 * H] = rev1

    # Per-(t, b) flip source indices for rev_out2; a negative source simply
    # never matches, so padded positions stay zero automatically.
    t_col = lax.broadcasted_iota(jnp.int32, (T, B, 1), 0)   # (T, B, 1)
    lens_b = lens2[:B, :].reshape(1, B, 1)                  # (1, B, 1)
    src_h = lens_b - 1 - t_col                              # hidden_states[1]
    src_o = lens_b - 3 - t_col                              # outputs (len-2 flip)
    valid_o = t_col < (lens_b - 2)

    rev2_flip_h = jnp.zeros((T, B, H), jnp.float32)
    rev2_flip_o = jnp.zeros((T, B, H), jnp.float32)
    for s in range(T):                                      # static select-flip
        row = rev2[s][None, :, :]                           # (1, B, H)
        rev2_flip_h = jnp.where(src_h == s, row, rev2_flip_h)
        rev2_flip_o = jnp.where(src_o == s, row, rev2_flip_o)

    hs1_ref[:, :, 0:H] = fwd2
    hs1_ref[:, :, H:2 * H] = rev2_flip_h

    pre_ref[:, :, 0:H] = jnp.where(valid_o, fwd2, 0.0)
    pre_ref[:, :, H:2 * H] = rev2_flip_o


def fused_bilstm(x_cat, lens2, wih1, whh1, b1, wih2, whh2, b2):
    """x_cat: (T, B2, H) f32, lens2: (B2,1) i32, weights fused (H,4H) bf16."""
    T, B2, H = x_cat.shape
    B = B2 // 2
    vmem = pl.BlockSpec(memory_space=pltpu.MemorySpace.VMEM)
    out_shapes = (jax.ShapeDtypeStruct((T, B, 2 * H), jnp.float32),   # hs0
                  jax.ShapeDtypeStruct((T, B, 2 * H), jnp.float32),   # hs1
                  jax.ShapeDtypeStruct((T, B, 2 * H), jnp.float32))   # pre (linear in)
    return pl.pallas_call(
        _bilstm_kernel,
        out_shape=out_shapes,
        in_specs=[vmem] * 8,
        out_specs=(vmem, vmem, vmem),
        scratch_shapes=[pltpu.VMEM((2, T, B2, H), jnp.float32)],
    )(x_cat, lens2, wih1, whh1, b1, wih2, whh2, b2)


# ----------------------------------------------------------------------------
# Vocab projection: gridded matmul + bias, bf16 cast done in-kernel
# ----------------------------------------------------------------------------
def _linear_kernel(x_ref, w_ref, b_ref, o_ref, acc_ref):
    @pl.when(pl.program_id(2) == 0)
    def _():
        acc_ref[...] = jnp.zeros_like(acc_ref)

    acc_ref[...] += jnp.dot(x_ref[...].astype(jnp.bfloat16), w_ref[...],
                            preferred_element_type=jnp.float32)

    @pl.when(pl.program_id(2) == pl.num_programs(2) - 1)
    def _():
        o_ref[...] = (acc_ref[...] + b_ref[...]).astype(o_ref.dtype)


def _pick_tile(dim, prefs):
    for t in prefs:
        if dim % t == 0:
            return t
    return dim   # full extent is always a legal block


def _vmem_capacity_bytes():
    try:
        info = pltpu.get_tpu_info()
        return int(getattr(info, "vmem_capacity_bytes", 64 * 1024 * 1024))
    except Exception:
        return 64 * 1024 * 1024


def linear_layer(x, w, b):
    """x: (M, K) f32 (cast to bf16 in-kernel), w: (K, N) bf16, b: (1, N) f32."""
    M, K = x.shape
    N = w.shape[1]
    vmem_cap = _vmem_capacity_bytes()
    if vmem_cap >= 100 * 1024 * 1024:      # 128 MiB VMEM parts (v5e / v6e)
        tm_prefs = (512, 256, 128)
        tn_prefs = (1024, 512, 256, 128)
        tk_prefs = (512, 256, 128)
        vmem_limit = 100 * 1024 * 1024
    else:                                   # v7x: 64 MiB per-TC VMEM
        tm_prefs = (256, 128)
        tn_prefs = (512, 256, 128)
        tk_prefs = (512, 256, 128)
        vmem_limit = 48 * 1024 * 1024
    tm = _pick_tile(M, tm_prefs)
    tn = _pick_tile(N, tn_prefs)
    tk = _pick_tile(K, tk_prefs)
    grid = (M // tm, N // tn, K // tk)
    return pl.pallas_call(
        _linear_kernel,
        out_shape=jax.ShapeDtypeStruct((M, N), jnp.float32),
        grid_spec=pltpu.PrefetchScalarGridSpec(
            num_scalar_prefetch=0,
            grid=grid,
            in_specs=[pl.BlockSpec((tm, tk), lambda i, j, k: (i, k)),
                      pl.BlockSpec((tk, tn), lambda i, j, k: (k, j)),
                      pl.BlockSpec((1, tn), lambda i, j, k: (0, j))],
            out_specs=pl.BlockSpec((tm, tn), lambda i, j, k: (i, j)),
            scratch_shapes=[pltpu.VMEM((tm, tn), jnp.float32)]),
        compiler_params=pltpu.CompilerParams(
            dimension_semantics=("parallel", "parallel", "arbitrary"),
            vmem_limit_bytes=vmem_limit),
    )(x, w, b)


# ----------------------------------------------------------------------------
# Forward pass (mirrors BiLSTM.forward)
# ----------------------------------------------------------------------------
def bilstm_forward(params, input_fwd, input_rev, seq_lens):
    """Mirrors BiLSTM.forward(input_fwd, input_rev, seq_lens).

    Assumes seq_lens sorted descending (enforce_sorted=True) and >= 3, like
    the original module's usage.
    """
    T, B = input_fwd.shape
    H = params["embed"].shape[1]

    # Embedding lookup (frozen embed_layer) — gather glue stays in plain JAX.
    embed_fwd = params["embed"][input_fwd]                # (T, B, H)
    embed_rev = params["embed"][input_rev]                # (T, B, H)

    # Both directions use the SAME weights (forward_lstm1 / forward_lstm2), so
    # batch them along the batch axis: B -> 2B (= 8 sublanes at B=4).
    x_cat = jnp.concatenate([embed_fwd, embed_rev], axis=1)                     # (T, 2B, H)
    lens2 = jnp.concatenate([seq_lens, seq_lens]).astype(jnp.int32)[:, None]    # (2B, 1)

    wih1, whh1, b1 = params["lstm1"]
    wih2, whh2, b2 = params["lstm2"]

    hs0, hs1, pre = fused_bilstm(x_cat, lens2, wih1, whh1, b1, wih2, whh2, b2)
    hidden_states = jnp.stack([hs0, hs1], axis=0)         # (2, T, B, 2H)

    w_lin, b_lin = params["linear"]
    outputs = linear_layer(pre.reshape(T * B, 2 * H), w_lin, b_lin)
    outputs = outputs.reshape(T, B, -1)                   # (T, B, V)

    return outputs, hidden_states, embed_fwd


# ----------------------------------------------------------------------------
# Pure-JAX reference (same bf16 weights / f32 recurrence) for validation
# ----------------------------------------------------------------------------
def _reference_forward(params, input_fwd, input_rev, seq_lens):
    T, B = input_fwd.shape
    H = params["embed"].shape[1]
    embed_fwd = params["embed"][input_fwd]
    embed_rev = params["embed"][input_rev]
    x_cat = jnp.concatenate([embed_fwd, embed_rev], axis=1)
    lens2 = jnp.concatenate([seq_lens, seq_lens]).astype(jnp.int32)[:, None]

    def lstm(x, p, lens):
        wih, whh, b = p
        Tn, Bx, _ = x.shape
        xg = (jnp.dot(x.reshape(Tn * Bx, H).astype(jnp.bfloat16), wih,
                      preferred_element_type=jnp.float32) + b).reshape(Tn, Bx, 4 * H)
        h = jnp.zeros((Bx, H), jnp.float32)
        c = jnp.zeros((Bx, H), jnp.float32)
        outs = []
        for t in range(Tn):
            g = xg[t] + jnp.dot(h.astype(jnp.bfloat16), whh,
                                preferred_element_type=jnp.float32)
            i_g = jax.nn.sigmoid(g[:, 0:H])
            f_g = jax.nn.sigmoid(g[:, H:2 * H])
            g_g = jnp.tanh(g[:, 2 * H:3 * H])
            o_g = jax.nn.sigmoid(g[:, 3 * H:4 * H])
            c_new = f_g * c + i_g * g_g
            h_new = o_g * jnp.tanh(c_new)
            valid = lens > t
            h = jnp.where(valid, h_new, h)
            c = jnp.where(valid, c_new, c)
            outs.append(jnp.where(valid, h_new, 0.0))
        return jnp.stack(outs, axis=0)

    out1 = lstm(x_cat, params["lstm1"], lens2)
    out2 = lstm(out1, params["lstm2"], lens2)
    fwd1, rev1 = out1[:, :B], out1[:, B:]
    fwd2, rev2 = out2[:, :B], out2[:, B:]

    t_idx = jnp.arange(T)[:, None]
    lens_row = seq_lens[None, :].astype(jnp.int32)
    b_idx = jnp.arange(B)[None, :]

    hs0 = jnp.concatenate([fwd1, rev1], axis=2)
    valid_h = t_idx < lens_row
    rev2_flip_h = jnp.where(valid_h[:, :, None],
                            rev2[jnp.where(valid_h, lens_row - 1 - t_idx, 0), b_idx, :], 0.0)
    hs1 = jnp.concatenate([fwd2, rev2_flip_h], axis=2)
    hidden_states = jnp.stack([hs0, hs1], axis=0)

    valid_o = t_idx < (lens_row - 2)
    rev2_flip_o = jnp.where(valid_o[:, :, None],
                            rev2[jnp.where(valid_o, lens_row - 3 - t_idx, 0), b_idx, :], 0.0)
    pre = jnp.concatenate([jnp.where(valid_o[:, :, None], fwd2, 0.0), rev2_flip_o], axis=2)

    w_lin, b_lin = params["linear"]
    out = jnp.dot(pre.reshape(T * B, 2 * H).astype(jnp.bfloat16), w_lin,
                  preferred_element_type=jnp.float32) + b_lin
    return out.reshape(T, B, -1), hidden_states, embed_fwd


# ----------------------------------------------------------------------------
# Deterministic synthetic parameter initialisation (fused-gate, bf16 weights)
# ----------------------------------------------------------------------------
def init_params(key, vocab_size, hidden_size):
    ks = jax.random.split(key, 5)
    scale = 0.1
    H = hidden_size

    embed = jax.random.normal(ks[0], (vocab_size, H), jnp.float32) * scale

    def lstm_p(k):
        k1, k2, k3 = jax.random.split(k, 3)
        # Fused gate layout (H, 4H), gate order (i, f, g, o); bf16 MXU operands.
        wih = (jax.random.normal(k1, (H, 4 * H), jnp.float32) * scale).astype(jnp.bfloat16)
        whh = (jax.random.normal(k2, (H, 4 * H), jnp.float32) * scale).astype(jnp.bfloat16)
        b = jax.random.normal(k3, (1, 4 * H), jnp.float32) * scale     # b_ih + b_hh
        return wih, whh, b

    lstm1 = lstm_p(ks[1])   # forward_lstm1 (used for both directions)
    lstm2 = lstm_p(ks[2])   # forward_lstm2 (used for both directions)
    # TODO(synk): backward_lstm1/backward_lstm2 exist in __init__ but are never
    # used in forward(); parameters intentionally not materialised.

    w_lin = (jax.random.normal(ks[3], (2 * H, vocab_size), jnp.float32) * scale).astype(jnp.bfloat16)
    b_lin = jax.random.normal(ks[4], (1, vocab_size), jnp.float32) * scale

    return dict(embed=embed, lstm1=lstm1, lstm2=lstm2, linear=(w_lin, b_lin))


# ----------------------------------------------------------------------------
if __name__ == "__main__":
    vocab_size, hidden_size = 64, 32
    T, B = 8, 4

    key = jax.random.PRNGKey(0)
    pkey, k_fwd, k_rev = jax.random.split(key, 3)
    params = init_params(pkey, vocab_size, hidden_size)

    input_fwd = jax.random.randint(k_fwd, (T, B), 0, vocab_size, jnp.int32)
    input_rev = jax.random.randint(k_rev, (T, B), 0, vocab_size, jnp.int32)
    # enforce_sorted=True -> descending lengths; all >= 3 so len-2 slices exist.
    seq_lens = jnp.array([8, 7, 5, 3], jnp.int32)

    fwd_fn = jax.jit(bilstm_forward)
    outputs, hidden_states, embed_seq_fwd = fwd_fn(params, input_fwd, input_rev, seq_lens)
    jax.block_until_ready((outputs, hidden_states, embed_seq_fwd))

    assert outputs.shape == (T, B, vocab_size)
    assert hidden_states.shape == (2, T, B, 2 * hidden_size)
    assert embed_seq_fwd.shape == (T, B, hidden_size)
    assert bool(jnp.all(jnp.isfinite(outputs)))

    # Validate against a pure-JAX reference (same bf16 weights; the in-kernel
    # sigmoid-via-tanh rewrite only changes rounding slightly).
    ref_out, ref_hs, ref_emb = jax.jit(_reference_forward)(
        params, input_fwd, input_rev, seq_lens)
    jax.block_until_ready((ref_out, ref_hs, ref_emb))
    assert bool(jnp.allclose(outputs, ref_out, atol=5e-3, rtol=1e-2)), \
        float(jnp.max(jnp.abs(outputs - ref_out)))
    assert bool(jnp.allclose(hidden_states, ref_hs, atol=5e-3, rtol=1e-2)), \
        float(jnp.max(jnp.abs(hidden_states - ref_hs)))
    assert bool(jnp.allclose(embed_seq_fwd, ref_emb))

    print("KERNEL_OK")
</pallas_src>

<mosaic_0001>
module attributes {stable_mosaic.version = 11 : i64} {
  func.func @_linear_kernel(%arg0: i32, %arg1: i32, %arg2: i32, %arg3: memref<32x64xf32, #tpu.memory_space<vmem>>, %arg4: memref<64x64xbf16, #tpu.memory_space<vmem>>, %arg5: memref<1x64xf32, #tpu.memory_space<vmem>>, %arg6: memref<32x64xf32, #tpu.memory_space<vmem>>, %arg7: memref<32x64xf32, #tpu.memory_space<vmem>>) attributes {dimension_semantics = [#tpu.dimension_semantics<parallel>, #tpu.dimension_semantics<parallel>, #tpu.dimension_semantics<arbitrary>], iteration_bounds = array<i64: 1, 1, 1>, scalar_prefetch = 0 : i64, scratch_operands = 1 : i64, tpu.core_type = #tpu.core_type<tc>, window_params = [{transform_indices = @transform_0, window_bounds = array<i64: 32, 64>}, {transform_indices = @transform_1, window_bounds = array<i64: 64, 64>}, {transform_indices = @transform_2, window_bounds = array<i64: 1, 64>}, {transform_indices = @transform_3, window_bounds = array<i64: 32, 64>}]} {
    %c0_i32 = arith.constant 0 : i32
    %0 = arith.cmpi eq, %arg2, %c0_i32 : i32
    %1 = arith.extui %0 : i1 to i32
    %c0_i32_0 = arith.constant 0 : i32
    %2 = arith.cmpi ne, %1, %c0_i32_0 : i32
    scf.if %2 {
      %cst_10 = arith.constant 0.000000e+00 : f32
      %13 = vector.broadcast %cst_10 : f32 to vector<32x64xf32>
      %c0_11 = arith.constant 0 : index
      %c0_12 = arith.constant 0 : index
      %14 = vector.load %arg7[%c0_11, %c0_12] : memref<32x64xf32, #tpu.memory_space<vmem>>, vector<32x64xf32>
      tpu.vector_store %arg7[%c0_11, %c0_12], %13 {strides = array<i32>} : memref<32x64xf32, #tpu.memory_space<vmem>>, vector<32x64xf32>,
    } else {
    }
    %c0 = arith.constant 0 : index
    %c0_1 = arith.constant 0 : index
    %3 = vector.load %arg7[%c0, %c0_1] : memref<32x64xf32, #tpu.memory_space<vmem>>, vector<32x64xf32>
    %c0_2 = arith.constant 0 : index
    %c0_3 = arith.constant 0 : index
    %4 = vector.load %arg3[%c0_2, %c0_3] : memref<32x64xf32, #tpu.memory_space<vmem>>, vector<32x64xf32>
    %5 = arith.truncf %4 : vector<32x64xf32> to vector<32x64xbf16>
    %c0_4 = arith.constant 0 : index
    %c0_5 = arith.constant 0 : index
    %6 = vector.load %arg4[%c0_4, %c0_5] : memref<64x64xbf16, #tpu.memory_space<vmem>>, vector<64x64xbf16>
    %cst = arith.constant dense<0.000000e+00> : vector<32x64xf32>
    %7 = tpu.matmul %5, %6, %cst {dimension_numbers = #tpu.dot_dimension_numbers<[1], [0], [0], [1], [0, 0, 1, 1], [], []>} : vector<32x64xbf16>, vector<64x64xbf16>, vector<32x64xf32> -> vector<32x64xf32>
    %8 = arith.addf %3, %7 : vector<32x64xf32>
    %c0_6 = arith.constant 0 : index
    %c0_7 = arith.constant 0 : index
    %9 = vector.load %arg7[%c0_6, %c0_7] : memref<32x64xf32, #tpu.memory_space<vmem>>, vector<32x64xf32>
    tpu.vector_store %arg7[%c0_6, %c0_7], %8 {strides = array<i32>} : memref<32x64xf32, #tpu.memory_space<vmem>>, vector<32x64xf32>,
    %c0_i32_8 = arith.constant 0 : i32
    %10 = arith.cmpi eq, %arg2, %c0_i32_8 : i32
    %11 = arith.extui %10 : i1 to i32
    %c0_i32_9 = arith.constant 0 : i32
    %12 = arith.cmpi ne, %11, %c0_i32_9 : i32
    scf.if %12 {
      %c0_10 = arith.constant 0 : index
      %c0_11 = arith.constant 0 : index
      %13 = vector.load %arg7[%c0_10, %c0_11] : memref<32x64xf32, #tpu.memory_space<vmem>>, vector<32x64xf32>
      %c0_12 = arith.constant 0 : index
      %c0_13 = arith.constant 0 : index
      %14 = vector.load %arg5[%c0_12, %c0_13] : memref<1x64xf32, #tpu.memory_space<vmem>>, vector<1x64xf32>
      %15 = vector.broadcast %14 : vector<1x64xf32> to vector<32x64xf32>
      %16 = arith.addf %13, %15 : vector<32x64xf32>
      %c0_14 = arith.constant 0 : index
      %c0_15 = arith.constant 0 : index
      %17 = vector.load %arg6[%c0_14, %c0_15] : memref<32x64xf32, #tpu.memory_space<vmem>>, vector<32x64xf32>
      tpu.vector_store %arg6[%c0_14, %c0_15], %16 {strides = array<i32>} : memref<32x64xf32, #tpu.memory_space<vmem>>, vector<32x64xf32>,
    } else {
    }
    return
  }
  func.func @transform_0(%arg0: i32, %arg1: i32, %arg2: i32) -> (i32, i32) {
    %c0_i32 = arith.constant 0 : i32
    return %arg0, %arg2 : i32, i32
  }
  func.func @transform_1(%arg0: i32, %arg1: i32, %arg2: i32) -> (i32, i32) {
    %c0_i32 = arith.constant 0 : i32
    return %arg2, %arg1 : i32, i32
  }
  func.func @transform_2(%arg0: i32, %arg1: i32, %arg2: i32) -> (i32, i32) {
    %c0_i32 = arith.constant 0 : i32
    %c0_i32_0 = arith.constant 0 : i32
    return %c0_i32, %arg1 : i32, i32
  }
  func.func @transform_3(%arg0: i32, %arg1: i32, %arg2: i32) -> (i32, i32) {
    %c0_i32 = arith.constant 0 : i32
    return %arg0, %arg1 : i32, i32
  }
}

module attributes {stable_mosaic.version = 11 : i64} {
  func.func @_bilstm_kernel(%arg0: memref<8x8x32xf32, #tpu.memory_space<vmem>>, %arg1: memref<8x1xi32, #tpu.memory_space<vmem>>, %arg2: memref<32x128xbf16, #tpu.memory_space<vmem>>, %arg3: memref<32x128xbf16, #tpu.memory_space<vmem>>, %arg4: memref<1x128xf32, #tpu.memory_space<vmem>>, %arg5: memref<32x128xbf16, #tpu.memory_space<vmem>>, %arg6: memref<32x128xbf16, #tpu.memory_space<vmem>>, %arg7: memref<1x128xf32, #tpu.memory_space<vmem>>, %arg8: memref<8x4x64xf32, #tpu.memory_space<vmem>>, %arg9: memref<8x4x64xf32, #tpu.memory_space<vmem>>, %arg10: memref<8x4x64xf32, #tpu.memory_space<vmem>>, %arg11: memref<2x8x8x32xf32, #tpu.memory_space<vmem>>) attributes {dimension_semantics = [], scalar_prefetch = 0 : i64, scratch_operands = 1 : i64, tpu.core_type = #tpu.core_type<tc>} {
    %c0 = arith.constant 0 : index
    %c0_0 = arith.constant 0 : index
    %0 = vector.load %arg1[%c0, %c0_0] : memref<8x1xi32, #tpu.memory_space<vmem>>, vector<8x1xi32>
    %1 = tpu.iota {dimensions = array<i32: 1>} : vector<1x128xi32>
    %c64_i32 = arith.constant 64 : i32
    %2 = vector.broadcast %c64_i32 : i32 to vector<1x128xi32>
    %3 = arith.cmpi sge, %1, %2 : vector<1x128xi32>
    %c96_i32 = arith.constant 96 : i32
    %4 = vector.broadcast %c96_i32 : i32 to vector<1x128xi32>
    %5 = arith.cmpi slt, %1, %4 : vector<1x128xi32>
    %6 = arith.andi %3, %5 : vector<1x128xi1>
    %cst = arith.constant 1.000000e+00 : f32
    %cst_1 = arith.constant 5.000000e-01 : f32
    %7 = vector.broadcast %cst : f32 to vector<1x128xf32>
    %8 = vector.broadcast %cst_1 : f32 to vector<1x128xf32>
    %9 = arith.select %6, %7, %8 : vector<1x128xi1>, vector<1x128xf32>
    %cst_2 = arith.constant 0.000000e+00 : f32
    %cst_3 = arith.constant 5.000000e-01 : f32
    %10 = vector.broadcast %cst_2 : f32 to vector<1x128xf32>
    %11 = vector.broadcast %cst_3 : f32 to vector<1x128xf32>
    %12 = arith.select %6, %10, %11 : vector<1x128xi1>, vector<1x128xf32>
    %c0_4 = arith.constant 0 : index
    %c0_5 = arith.constant 0 : index
    %13 = vector.load %arg2[%c0_4, %c0_5] : memref<32x128xbf16, #tpu.memory_space<vmem>>, vector<32x128xbf16>
    %c0_6 = arith.constant 0 : index
    %c0_7 = arith.constant 0 : index
    %14 = vector.load %arg3[%c0_6, %c0_7] : memref<32x128xbf16, #tpu.memory_space<vmem>>, vector<32x128xbf16>
    %c0_8 = arith.constant 0 : index
    %c0_9 = arith.constant 0 : index
    %15 = vector.load %arg5[%c0_8, %c0_9] : memref<32x128xbf16, #tpu.memory_space<vmem>>, vector<32x128xbf16>
    %c0_10 = arith.constant 0 : index
    %c0_11 = arith.constant 0 : index
    %16 = vector.load %arg6[%c0_10, %c0_11] : memref<32x128xbf16, #tpu.memory_space<vmem>>, vector<32x128xbf16>
    %c0_12 = arith.constant 0 : index
    %c0_13 = arith.constant 0 : index
    %c0_14 = arith.constant 0 : index
    %17 = vector.load %arg0[%c0_12, %c0_13, %c0_14] : memref<8x8x32xf32, #tpu.memory_space<vmem>>, vector<8x8x32xf32>
    %18 = vector.shape_cast %17 : vector<8x8x32xf32> to vector<64x32xf32>
    %19 = arith.truncf %18 : vector<64x32xf32> to vector<64x32xbf16>
    %cst_15 = arith.constant dense<0.000000e+00> : vector<64x128xf32>
    %20 = tpu.matmul %19, %13, %cst_15 {dimension_numbers = #tpu.dot_dimension_numbers<[1], [0], [0], [1], [0, 0, 1, 1], [], []>} : vector<64x32xbf16>, vector<32x128xbf16>, vector<64x128xf32> -> vector<64x128xf32>
    %c0_16 = arith.constant 0 : index
    %c0_17 = arith.constant 0 : index
    %21 = vector.load %arg4[%c0_16, %c0_17] : memref<1x128xf32, #tpu.memory_space<vmem>>, vector<1x128xf32>
    %22 = vector.broadcast %21 : vector<1x128xf32> to vector<64x128xf32>
    %23 = arith.addf %20, %22 : vector<64x128xf32>
    %cst_18 = arith.constant 0.000000e+00 : f32
    %24 = vector.broadcast %cst_18 : f32 to vector<8x32xf32>
    %cst_19 = arith.constant 0.000000e+00 : f32
    %25 = vector.broadcast %cst_19 : f32 to vector<8x32xf32>
    %26 = vector.extract_strided_slice %23 {offsets = [0, 0], sizes = [8, 128], strides = [1, 1]} : vector<64x128xf32> to vector<8x128xf32>
    %27 = arith.truncf %24 : vector<8x32xf32> to vector<8x32xbf16>
    %cst_20 = arith.constant dense<0.000000e+00> : vector<8x128xf32>
    %28 = tpu.matmul %27, %14, %cst_20 {dimension_numbers = #tpu.dot_dimension_numbers<[1], [0], [0], [1], [0, 0, 1, 1], [], []>} : vector<8x32xbf16>, vector<32x128xbf16>, vector<8x128xf32> -> vector<8x128xf32>
    %29 = arith.addf %26, %28 : vector<8x128xf32>
    %30 = vector.broadcast %9 : vector<1x128xf32> to vector<8x128xf32>
    %31 = arith.mulf %30, %29 : vector<8x128xf32>
    %32 = math.tanh %31 : vector<8x128xf32>
    %33 = vector.broadcast %9 : vector<1x128xf32> to vector<8x128xf32>
    %34 = arith.mulf %33, %32 : vector<8x128xf32>
    %35 = vector.broadcast %12 : vector<1x128xf32> to vector<8x128xf32>
    %36 = arith.addf %34, %35 : vector<8x128xf32>
    %37 = vector.extract_strided_slice %36 {offsets = [0, 0], sizes = [8, 32], strides = [1, 1]} : vector<8x128xf32> to vector<8x32xf32>
    %38 = vector.extract_strided_slice %36 {offsets = [0, 32], sizes = [8, 32], strides = [1, 1]} : vector<8x128xf32> to vector<8x32xf32>
    %39 = vector.extract_strided_slice %36 {offsets = [0, 64], sizes = [8, 32], strides = [1, 1]} : vector<8x128xf32> to vector<8x32xf32>
    %40 = vector.extract_strided_slice %36 {offsets = [0, 96], sizes = [8, 32], strides = [1, 1]} : vector<8x128xf32> to vector<8x32xf32>
    %41 = arith.mulf %38, %25 : vector<8x32xf32>
    %42 = arith.mulf %37, %39 : vector<8x32xf32>
    %43 = arith.addf %41, %42 : vector<8x32xf32>
    %44 = math.tanh %43 : vector<8x32xf32>
    %45 = arith.mulf %40, %44 : vector<8x32xf32>
    %c0_i32 = arith.constant 0 : i32
    %46 = vector.broadcast %c0_i32 : i32 to vector<8x1xi32>
    %47 = arith.cmpi sgt, %0, %46 : vector<8x1xi32>
    %48 = vector.shape_cast %47 : vector<8x1xi1> to vector<8x1xi1>
    %49 = vector.broadcast %48 : vector<8x1xi1> to vector<8x32xi1>
    %50 = arith.select %49, %45, %24 : vector<8x32xi1>, vector<8x32xf32>
    %51 = vector.shape_cast %47 : vector<8x1xi1> to vector<8x1xi1>
    %52 = vector.broadcast %51 : vector<8x1xi1> to vector<8x32xi1>
    %53 = arith.select %52, %43, %25 : vector<8x32xi1>, vector<8x32xf32>
    %cst_21 = arith.constant 0.000000e+00 : f32
    %54 = vector.shape_cast %47 : vector<8x1xi1> to vector<8x1xi1>
    %55 = vector.broadcast %54 : vector<8x1xi1> to vector<8x32xi1>
    %56 = vector.broadcast %cst_21 : f32 to vector<8x32xf32>
    %57 = arith.select %55, %45, %56 : vector<8x32xi1>, vector<8x32xf32>
    %c0_22 = arith.constant 0 : index
    %c0_23 = arith.constant 0 : index
    %c0_24 = arith.constant 0 : index
    %c0_25 = arith.constant 0 : index
    %58 = vector.load %arg11[%c0_22, %c0_23, %c0_24, %c0_25] : memref<2x8x8x32xf32, #tpu.memory_space<vmem>>, vector<1x1x8x32xf32>
    %59 = vector.shape_cast %58 : vector<1x1x8x32xf32> to vector<8x32xf32>
    %60 = vector.shape_cast %57 : vector<8x32xf32> to vector<1x1x8x32xf32>
    tpu.vector_store %arg11[%c0_22, %c0_23, %c0_24, %c0_25], %60 {strides = array<i32>} : memref<2x8x8x32xf32, #tpu.memory_space<vmem>>, vector<1x1x8x32xf32>,
    %61 = vector.extract_strided_slice %23 {offsets = [8, 0], sizes = [8, 128], strides = [1, 1]} : vector<64x128xf32> to vector<8x128xf32>
    %62 = arith.truncf %50 : vector<8x32xf32> to vector<8x32xbf16>
    %cst_26 = arith.constant dense<0.000000e+00> : vector<8x128xf32>
    %63 = tpu.matmul %62, %14, %cst_26 {dimension_numbers = #tpu.dot_dimension_numbers<[1], [0], [0], [1], [0, 0, 1, 1], [], []>} : vector<8x32xbf16>, vector<32x128xbf16>, vector<8x128xf32> -> vector<8x128xf32>
    %64 = arith.addf %61, %63 : vector<8x128xf32>
    %65 = vector.broadcast %9 : vector<1x128xf32> to vector<8x128xf32>
    %66 = arith.mulf %65, %64 : vector<8x128xf32>
    %67 = math.tanh %66 : vector<8x128xf32>
    %68 = vector.broadcast %9 : vector<1x128xf32> to vector<8x128xf32>
    %69 = arith.mulf %68, %67 : vector<8x128xf32>
    %70 = vector.broadcast %12 : vector<1x128xf32> to vector<8x128xf32>
    %71 = arith.addf %69, %70 : vector<8x128xf32>
    %72 = vector.extract_strided_slice %71 {offsets = [0, 0], sizes = [8, 32], strides = [1, 1]} : vector<8x128xf32> to vector<8x32xf32>
    %73 = vector.extract_strided_slice %71 {offsets = [0, 32], sizes = [8, 32], strides = [1, 1]} : vector<8x128xf32> to vector<8x32xf32>
    %74 = vector.extract_strided_slice %71 {offsets = [0, 64], sizes = [8, 32], strides = [1, 1]} : vector<8x128xf32> to vector<8x32xf32>
    %75 = vector.extract_strided_slice %71 {offsets = [0, 96], sizes = [8, 32], strides = [1, 1]} : vector<8x128xf32> to vector<8x32xf32>
    %76 = arith.mulf %73, %53 : vector<8x32xf32>
    %77 = arith.mulf %72, %74 : vector<8x32xf32>
    %78 = arith.addf %76, %77 : vector<8x32xf32>
    %79 = math.tanh %78 : vector<8x32xf32>
    %80 = arith.mulf %75, %79 : vector<8x32xf32>
    %c1_i32 = arith.constant 1 : i32
    %81 = vector.broadcast %c1_i32 : i32 to vector<8x1xi32>
    %82 = arith.cmpi sgt, %0, %81 : vector<8x1xi32>
    %83 = vector.shape_cast %82 : vector<8x1xi1> to vector<8x1xi1>
    %84 = vector.broadcast %83 : vector<8x1xi1> to vector<8x32xi1>
    %85 = arith.select %84, %80, %50 : vector<8x32xi1>, vector<8x32xf32>
    %86 = vector.shape_cast %82 : vector<8x1xi1> to vector<8x1xi1>
    %87 = vector.broadcast %86 : vector<8x1xi1> to vector<8x32xi1>
    %88 = arith.select %87, %78, %53 : vector<8x32xi1>, vector<8x32xf32>
    %cst_27 = arith.constant 0.000000e+00 : f32
    %89 = vector.shape_cast %82 : vector<8x1xi1> to vector<8x1xi1>
    %90 = vector.broadcast %89 : vector<8x1xi1> to vector<8x32xi1>
    %91 = vector.broadcast %cst_27 : f32 to vector<8x32xf32>
    %92 = arith.select %90, %80, %91 : vector<8x32xi1>, vector<8x32xf32>
    %c0_28 = arith.constant 0 : index
    %c1 = arith.constant 1 : index
    %c0_29 = arith.constant 0 : index
    %c0_30 = arith.constant 0 : index
    %93 = vector.load %arg11[%c0_28, %c1, %c0_29, %c0_30] : memref<2x8x8x32xf32, #tpu.memory_space<vmem>>, vector<1x1x8x32xf32>
    %94 = vector.shape_cast %93 : vector<1x1x8x32xf32> to vector<8x32xf32>
    %95 = vector.shape_cast %92 : vector<8x32xf32> to vector<1x1x8x32xf32>
    tpu.vector_store %arg11[%c0_28, %c1, %c0_29, %c0_30], %95 {strides = array<i32>} : memref<2x8x8x32xf32, #tpu.memory_space<vmem>>, vector<1x1x8x32xf32>,
    %96 = vector.extract_strided_slice %23 {offsets = [16, 0], sizes = [8, 128], strides = [1, 1]} : vector<64x128xf32> to vector<8x128xf32>
    %97 = arith.truncf %85 : vector<8x32xf32> to vector<8x32xbf16>
    %cst_31 = arith.constant dense<0.000000e+00> : vector<8x128xf32>
    %98 = tpu.matmul %97, %14, %cst_31 {dimension_numbers = #tpu.dot_dimension_numbers<[1], [0], [0], [1], [0, 0, 1, 1], [], []>} : vector<8x32xbf16>, vector<32x128xbf16>, vector<8x128xf32> -> vector<8x128xf32>
    %99 = arith.addf %96, %98 : vector<8x128xf32>
    %100 = vector.broadcast %9 : vector<1x128xf32> to vector<8x128xf32>
    %101 = arith.mulf %100, %99 : vector<8x128xf32>
    %102 = math.tanh %101 : vector<8x128xf32>
    %103 = vector.broadcast %9 : vector<1x128xf32> to vector<8x128xf32>
    %104 = arith.mulf %103, %102 : vector<8x128xf32>
    %105 = vector.broadcast %12 : vector<1x128xf32> to vector<8x128xf32>
    %106 = arith.addf %104, %105 : vector<8x128xf32>
    %107 = vector.extract_strided_slice %106 {offsets = [0, 0], sizes = [8, 32], strides = [1, 1]} : vector<8x128xf32> to vector<8x32xf32>
    %108 = vector.extract_strided_slice %106 {offsets = [0, 32], sizes = [8, 32], strides = [1, 1]} : vector<8x128xf32> to vector<8x32xf32>
    %109 = vector.extract_strided_slice %106 {offsets = [0, 64], sizes = [8, 32], strides = [1, 1]} : vector<8x128xf32> to vector<8x32xf32>
    %110 = vector.extract_strided_slice %106 {offsets = [0, 96], sizes = [8, 32], strides = [1, 1]} : vector<8x128xf32> to vector<8x32xf32>
    %111 = arith.mulf %108, %88 : vector<8x32xf32>
    %112 = arith.mulf %107, %109 : vector<8x32xf32>
    %113 = arith.addf %111, %112 : vector<8x32xf32>
    %114 = math.tanh %113 : vector<8x32xf32>
    %115 = arith.mulf %110, %114 : vector<8x32xf32>
    %c2_i32 = arith.constant 2 : i32
    %116 = vector.broadcast %c2_i32 : i32 to vector<8x1xi32>
    %117 = arith.cmpi sgt, %0, %116 : vector<8x1xi32>
    %118 = vector.shape_cast %117 : vector<8x1xi1> to vector<8x1xi1>
    %119 = vector.broadcast %118 : vector<8x1xi1> to vector<8x32xi1>
    %120 = arith.select %119, %115, %85 : vector<8x32xi1>, vector<8x32xf32>
    %121 = vector.shape_cast %117 : vector<8x1xi1> to vector<8x1xi1>
    %122 = vector.broadcast %121 : vector<8x1xi1> to vector<8x32xi1>
    %123 = arith.select %122, %113, %88 : vector<8x32xi1>, vector<8x32xf32>
    %cst_32 = arith.constant 0.000000e+00 : f32
    %124 = vector.shape_cast %117 : vector<8x1xi1> to vector<8x1xi1>
    %125 = vector.broadcast %124 : vector<8x1xi1> to vector<8x32xi1>
    %126 = vector.broadcast %cst_32 : f32 to vector<8x32xf32>
    %127 = arith.select %125, %115, %126 : vector<8x32xi1>, vector<8x32xf32>
    %c0_33 = arith.constant 0 : index
    %c2 = arith.constant 2 : index
    %c0_34 = arith.constant 0 : index
    %c0_35 = arith.constant 0 : index
    %128 = vector.load %arg11[%c0_33, %c2, %c0_34, %c0_35] : memref<2x8x8x32xf32, #tpu.memory_space<vmem>>, vector<1x1x8x32xf32>
    %129 = vector.shape_cast %128 : vector<1x1x8x32xf32> to vector<8x32xf32>
    %130 = vector.shape_cast %127 : vector<8x32xf32> to vector<1x1x8x32xf32>
    tpu.vector_store %arg11[%c0_33, %c2, %c0_34, %c0_35], %130 {strides = array<i32>} : memref<2x8x8x32xf32, #tpu.memory_space<vmem>>, vector<1x1x8x32xf32>,
    %131 = vector.extract_strided_slice %23 {offsets = [24, 0], sizes = [8, 128], strides = [1, 1]} : vector<64x128xf32> to vector<8x128xf32>
    %132 = arith.truncf %120 : vector<8x32xf32> to vector<8x32xbf16>
    %cst_36 = arith.constant dense<0.000000e+00> : vector<8x128xf32>
    %133 = tpu.matmul %132, %14, %cst_36 {dimension_numbers = #tpu.dot_dimension_numbers<[1], [0], [0], [1], [0, 0, 1, 1], [], []>} : vector<8x32xbf16>, vector<32x128xbf16>, vector<8x128xf32> -> vector<8x128xf32>
    %134 = arith.addf %131, %133 : vector<8x128xf32>
    %135 = vector.broadcast %9 : vector<1x128xf32> to vector<8x128xf32>
    %136 = arith.mulf %135, %134 : vector<8x128xf32>
    %137 = math.tanh %136 : vector<8x128xf32>
    %138 = vector.broadcast %9 : vector<1x128xf32> to vector<8x128xf32>
    %139 = arith.mulf %138, %137 : vector<8x128xf32>
    %140 = vector.broadcast %12 : vector<1x128xf32> to vector<8x128xf32>
    %141 = arith.addf %139, %140 : vector<8x128xf32>
    %142 = vector.extract_strided_slice %141 {offsets = [0, 0], sizes = [8, 32], strides = [1, 1]} : vector<8x128xf32> to vector<8x32xf32>
    %143 = vector.extract_strided_slice %141 {offsets = [0, 32], sizes = [8, 32], strides = [1, 1]} : vector<8x128xf32> to vector<8x32xf32>
    %144 = vector.extract_strided_slice %141 {offsets = [0, 64], sizes = [8, 32], strides = [1, 1]} : vector<8x128xf32> to vector<8x32xf32>
    %145 = vector.extract_strided_slice %141 {offsets = [0, 96], sizes = [8, 32], strides = [1, 1]} : vector<8x128xf32> to vector<8x32xf32>
    %146 = arith.mulf %143, %123 : vector<8x32xf32>
    %147 = arith.mulf %142, %144 : vector<8x32xf32>
    %148 = arith.addf %146, %147 : vector<8x32xf32>
    %149 = math.tanh %148 : vector<8x32xf32>
    %150 = arith.mulf %145, %149 : vector<8x32xf32>
    %c3_i32 = arith.constant 3 : i32
    %151 = vector.broadcast %c3_i32 : i32 to vector<8x1xi32>
    %152 = arith.cmpi sgt, %0, %151 : vector<8x1xi32>
    %153 = vector.shape_cast %152 : vector<8x1xi1> to vector<8x1xi1>
    %154 = vector.broadcast %153 : vector<8x1xi1> to vector<8x32xi1>
    %155 = arith.select %154, %150, %120 : vector<8x32xi1>, vector<8x32xf32>
    %156 = vector.shape_cast %152 : vector<8x1xi1> to vector<8x1xi1>
    %157 = vector.broadcast %156 : vector<8x1xi1> to vector<8x32xi1>
    %158 = arith.select %157, %148, %123 : vector<8x32xi1>, vector<8x32xf32>
    %cst_37 = arith.constant 0.000000e+00 : f32
    %159 = vector.shape_cast %152 : vector<8x1xi1> to vector<8x1xi1>
    %160 = vector.broadcast %159 : vector<8x1xi1> to vector<8x32xi1>
    %161 = vector.broadcast %cst_37 : f32 to vector<8x32xf32>
    %162 = arith.select %160, %150, %161 : vector<8x32xi1>, vector<8x32xf32>
    %c0_38 = arith.constant 0 : index
    %c3 = arith.constant 3 : index
    %c0_39 = arith.constant 0 : index
    %c0_40 = arith.constant 0 : index
    %163 = vector.load %arg11[%c0_38, %c3, %c0_39, %c0_40] : memref<2x8x8x32xf32, #tpu.memory_space<vmem>>, vector<1x1x8x32xf32>
    %164 = vector.shape_cast %163 : vector<1x1x8x32xf32> to vector<8x32xf32>
    %165 = vector.shape_cast %162 : vector<8x32xf32> to vector<1x1x8x32xf32>
    tpu.vector_store %arg11[%c0_38, %c3, %c0_39, %c0_40], %165 {strides = array<i32>} : memref<2x8x8x32xf32, #tpu.memory_space<vmem>>, vector<1x1x8x32xf32>,
    %166 = vector.extract_strided_slice %23 {offsets = [32, 0], sizes = [8, 128], strides = [1, 1]} : vector<64x128xf32> to vector<8x128xf32>
    %167 = arith.truncf %155 : vector<8x32xf32> to vector<8x32xbf16>
    %cst_41 = arith.constant dense<0.000000e+00> : vector<8x128xf32>
    %168 = tpu.matmul %167, %14, %cst_41 {dimension_numbers = #tpu.dot_dimension_numbers<[1], [0], [0], [1], [0, 0, 1, 1], [], []>} : vector<8x32xbf16>, vector<32x128xbf16>, vector<8x128xf32> -> vector<8x128xf32>
    %169 = arith.addf %166, %168 : vector<8x128xf32>
    %170 = vector.broadcast %9 : vector<1x128xf32> to vector<8x128xf32>
    %171 = arith.mulf %170, %169 : vector<8x128xf32>
    %172 = math.tanh %171 : vector<8x128xf32>
    %173 = vector.broadcast %9 : vector<1x128xf32> to vector<8x128xf32>
    %174 = arith.mulf %173, %172 : vector<8x128xf32>
    %175 = vector.broadcast %12 : vector<1x128xf32> to vector<8x128xf32>
    %176 = arith.addf %174, %175 : vector<8x128xf32>
    %177 = vector.extract_strided_slice %176 {offsets = [0, 0], sizes = [8, 32], strides = [1, 1]} : vector<8x128xf32> to vector<8x32xf32>
    %178 = vector.extract_strided_slice %176 {offsets = [0, 32], sizes = [8, 32], strides = [1, 1]} : vector<8x128xf32> to vector<8x32xf32>
    %179 = vector.extract_strided_slice %176 {offsets = [0, 64], sizes = [8, 32], strides = [1, 1]} : vector<8x128xf32> to vector<8x32xf32>
    %180 = vector.extract_strided_slice %176 {offsets = [0, 96], sizes = [8, 32], strides = [1, 1]} : vector<8x128xf32> to vector<8x32xf32>
    %181 = arith.mulf %178, %158 : vector<8x32xf32>
    %182 = arith.mulf %177, %179 : vector<8x32xf32>
    %183 = arith.addf %181, %182 : vector<8x32xf32>
    %184 = math.tanh %183 : vector<8x32xf32>
    %185 = arith.mulf %180, %184 : vector<8x32xf32>
    %c4_i32 = arith.constant 4 : i32
    %186 = vector.broadcast %c4_i32 : i32 to vector<8x1xi32>
    %187 = arith.cmpi sgt, %0, %186 : vector<8x1xi32>
    %188 = vector.shape_cast %187 : vector<8x1xi1> to vector<8x1xi1>
    %189 = vector.broadcast %188 : vector<8x1xi1> to vector<8x32xi1>
    %190 = arith.select %189, %185, %155 : vector<8x32xi1>, vector<8x32xf32>
    %191 = vector.shape_cast %187 : vector<8x1xi1> to vector<8x1xi1>
    %192 = vector.broadcast %191 : vector<8x1xi1> to vector<8x32xi1>
    %193 = arith.select %192, %183, %158 : vector<8x32xi1>, vector<8x32xf32>
    %cst_42 = arith.constant 0.000000e+00 : f32
    %194 = vector.shape_cast %187 : vector<8x1xi1> to vector<8x1xi1>
    %195 = vector.broadcast %194 : vector<8x1xi1> to vector<8x32xi1>
    %196 = vector.broadcast %cst_42 : f32 to vector<8x32xf32>
    %197 = arith.select %195, %185, %196 : vector<8x32xi1>, vector<8x32xf32>
    %c0_43 = arith.constant 0 : index
    %c4 = arith.constant 4 : index
    %c0_44 = arith.constant 0 : index
    %c0_45 = arith.constant 0 : index
    %198 = vector.load %arg11[%c0_43, %c4, %c0_44, %c0_45] : memref<2x8x8x32xf32, #tpu.memory_space<vmem>>, vector<1x1x8x32xf32>
    %199 = vector.shape_cast %198 : vector<1x1x8x32xf32> to vector<8x32xf32>
    %200 = vector.shape_cast %197 : vector<8x32xf32> to vector<1x1x8x32xf32>
    tpu.vector_store %arg11[%c0_43, %c4, %c0_44, %c0_45], %200 {strides = array<i32>} : memref<2x8x8x32xf32, #tpu.memory_space<vmem>>, vector<1x1x8x32xf32>,
    %201 = vector.extract_strided_slice %23 {offsets = [40, 0], sizes = [8, 128], strides = [1, 1]} : vector<64x128xf32> to vector<8x128xf32>
    %202 = arith.truncf %190 : vector<8x32xf32> to vector<8x32xbf16>
    %cst_46 = arith.constant dense<0.000000e+00> : vector<8x128xf32>
    %203 = tpu.matmul %202, %14, %cst_46 {dimension_numbers = #tpu.dot_dimension_numbers<[1], [0], [0], [1], [0, 0, 1, 1], [], []>} : vector<8x32xbf16>, vector<32x128xbf16>, vector<8x128xf32> -> vector<8x128xf32>
    %204 = arith.addf %201, %203 : vector<8x128xf32>
    %205 = vector.broadcast %9 : vector<1x128xf32> to vector<8x128xf32>
    %206 = arith.mulf %205, %204 : vector<8x128xf32>
    %207 = math.tanh %206 : vector<8x128xf32>
    %208 = vector.broadcast %9 : vector<1x128xf32> to vector<8x128xf32>
    %209 = arith.mulf %208, %207 : vector<8x128xf32>
    %210 = vector.broadcast %12 : vector<1x128xf32> to vector<8x128xf32>
    %211 = arith.addf %209, %210 : vector<8x128xf32>
    %212 = vector.extract_strided_slice %211 {offsets = [0, 0], sizes = [8, 32], strides = [1, 1]} : vector<8x128xf32> to vector<8x32xf32>
    %213 = vector.extract_strided_slice %211 {offsets = [0, 32], sizes = [8, 32], strides = [1, 1]} : vector<8x128xf32> to vector<8x32xf32>
    %214 = vector.extract_strided_slice %211 {offsets = [0, 64], sizes = [8, 32], strides = [1, 1]} : vector<8x128xf32> to vector<8x32xf32>
    %215 = vector.extract_strided_slice %211 {offsets = [0, 96], sizes = [8, 32], strides = [1, 1]} : vector<8x128xf32> to vector<8x32xf32>
    %216 = arith.mulf %213, %193 : vector<8x32xf32>
    %217 = arith.mulf %212, %214 : vector<8x32xf32>
    %218 = arith.addf %216, %217 : vector<8x32xf32>
    %219 = math.tanh %218 : vector<8x32xf32>
    %220 = arith.mulf %215, %219 : vector<8x32xf32>
    %c5_i32 = arith.constant 5 : i32
    %221 = vector.broadcast %c5_i32 : i32 to vector<8x1xi32>
    %222 = arith.cmpi sgt, %0, %221 : vector<8x1xi32>
    %223 = vector.shape_cast %222 : vector<8x1xi1> to vector<8x1xi1>
    %224 = vector.broadcast %223 : vector<8x1xi1> to vector<8x32xi1>
    %225 = arith.select %224, %220, %190 : vector<8x32xi1>, vector<8x32xf32>
    %226 = vector.shape_cast %222 : vector<8x1xi1> to vector<8x1xi1>
    %227 = vector.broadcast %226 : vector<8x1xi1> to vector<8x32xi1>
    %228 = arith.select %227, %218, %193 : vector<8x32xi1>, vector<8x32xf32>
    %cst_47 = arith.constant 0.000000e+00 : f32
    %229 = vector.shape_cast %222 : vector<8x1xi1> to vector<8x1xi1>
    %230 = vector.broadcast %229 : vector<8x1xi1> to vector<8x32xi1>
    %231 = vector.broadcast %cst_47 : f32 to vector<8x32xf32>
    %232 = arith.select %230, %220, %231 : vector<8x32xi1>, vector<8x32xf32>
    %c0_48 = arith.constant 0 : index
    %c5 = arith.constant 5 : index
    %c0_49 = arith.constant 0 : index
    %c0_50 = arith.constant 0 : index
    %233 = vector.load %arg11[%c0_48, %c5, %c0_49, %c0_50] : memref<2x8x8x32xf32, #tpu.memory_space<vmem>>, vector<1x1x8x32xf32>
    %234 = vector.shape_cast %233 : vector<1x1x8x32xf32> to vector<8x32xf32>
    %235 = vector.shape_cast %232 : vector<8x32xf32> to vector<1x1x8x32xf32>
    tpu.vector_store %arg11[%c0_48, %c5, %c0_49, %c0_50], %235 {strides = array<i32>} : memref<2x8x8x32xf32, #tpu.memory_space<vmem>>, vector<1x1x8x32xf32>,
    %236 = vector.extract_strided_slice %23 {offsets = [48, 0], sizes = [8, 128], strides = [1, 1]} : vector<64x128xf32> to vector<8x128xf32>
    %237 = arith.truncf %225 : vector<8x32xf32> to vector<8x32xbf16>
    %cst_51 = arith.constant dense<0.000000e+00> : vector<8x128xf32>
    %238 = tpu.matmul %237, %14, %cst_51 {dimension_numbers = #tpu.dot_dimension_numbers<[1], [0], [0], [1], [0, 0, 1, 1], [], []>} : vector<8x32xbf16>, vector<32x128xbf16>, vector<8x128xf32> -> vector<8x128xf32>
    %239 = arith.addf %236, %238 : vector<8x128xf32>
    %240 = vector.broadcast %9 : vector<1x128xf32> to vector<8x128xf32>
    %241 = arith.mulf %240, %239 : vector<8x128xf32>
    %242 = math.tanh %241 : vector<8x128xf32>
    %243 = vector.broadcast %9 : vector<1x128xf32> to vector<8x128xf32>
    %244 = arith.mulf %243, %242 : vector<8x128xf32>
    %245 = vector.broadcast %12 : vector<1x128xf32> to vector<8x128xf32>
    %246 = arith.addf %244, %245 : vector<8x128xf32>
    %247 = vector.extract_strided_slice %246 {offsets = [0, 0], sizes = [8, 32], strides = [1, 1]} : vector<8x128xf32> to vector<8x32xf32>
    %248 = vector.extract_strided_slice %246 {offsets = [0, 32], sizes = [8, 32], strides = [1, 1]} : vector<8x128xf32> to vector<8x32xf32>
    %249 = vector.extract_strided_slice %246 {offsets = [0, 64], sizes = [8, 32], strides = [1, 1]} : vector<8x128xf32> to vector<8x32xf32>
    %250 = vector.extract_strided_slice %246 {offsets = [0, 96], sizes = [8, 32], strides = [1, 1]} : vector<8x128xf32> to vector<8x32xf32>
    %251 = arith.mulf %248, %228 : vector<8x32xf32>
    %252 = arith.mulf %247, %249 : vector<8x32xf32>
    %253 = arith.addf %251, %252 : vector<8x32xf32>
    %254 = math.tanh %253 : vector<8x32xf32>
    %255 = arith.mulf %250, %254 : vector<8x32xf32>
    %c6_i32 = arith.constant 6 : i32
    %256 = vector.broadcast %c6_i32 : i32 to vector<8x1xi32>
    %257 = arith.cmpi sgt, %0, %256 : vector<8x1xi32>
    %258 = vector.shape_cast %257 : vector<8x1xi1> to vector<8x1xi1>
    %259 = vector.broadcast %258 : vector<8x1xi1> to vector<8x32xi1>
    %260 = arith.select %259, %255, %225 : vector<8x32xi1>, vector<8x32xf32>
    %261 = vector.shape_cast %257 : vector<8x1xi1> to vector<8x1xi1>
    %262 = vector.broadcast %261 : vector<8x1xi1> to vector<8x32xi1>
    %263 = arith.select %262, %253, %228 : vector<8x32xi1>, vector<8x32xf32>
    %cst_52 = arith.constant 0.000000e+00 : f32
    %264 = vector.shape_cast %257 : vector<8x1xi1> to vector<8x1xi1>
    %265 = vector.broadcast %264 : vector<8x1xi1> to vector<8x32xi1>
    %266 = vector.broadcast %cst_52 : f32 to vector<8x32xf32>
    %267 = arith.select %265, %255, %266 : vector<8x32xi1>, vector<8x32xf32>
    %c0_53 = arith.constant 0 : index
    %c6 = arith.constant 6 : index
    %c0_54 = arith.constant 0 : index
    %c0_55 = arith.constant 0 : index
    %268 = vector.load %arg11[%c0_53, %c6, %c0_54, %c0_55] : memref<2x8x8x32xf32, #tpu.memory_space<vmem>>, vector<1x1x8x32xf32>
    %269 = vector.shape_cast %268 : vector<1x1x8x32xf32> to vector<8x32xf32>
    %270 = vector.shape_cast %267 : vector<8x32xf32> to vector<1x1x8x32xf32>
    tpu.vector_store %arg11[%c0_53, %c6, %c0_54, %c0_55], %270 {strides = array<i32>} : memref<2x8x8x32xf32, #tpu.memory_space<vmem>>, vector<1x1x8x32xf32>,
    %271 = vector.extract_strided_slice %23 {offsets = [56, 0], sizes = [8, 128], strides = [1, 1]} : vector<64x128xf32> to vector<8x128xf32>
    %272 = arith.truncf %260 : vector<8x32xf32> to vector<8x32xbf16>
    %cst_56 = arith.constant dense<0.000000e+00> : vector<8x128xf32>
    %273 = tpu.matmul %272, %14, %cst_56 {dimension_numbers = #tpu.dot_dimension_numbers<[1], [0], [0], [1], [0, 0, 1, 1], [], []>} : vector<8x32xbf16>, vector<32x128xbf16>, vector<8x128xf32> -> vector<8x128xf32>
    %274 = arith.addf %271, %273 : vector<8x128xf32>
    %275 = vector.broadcast %9 : vector<1x128xf32> to vector<8x128xf32>
    %276 = arith.mulf %275, %274 : vector<8x128xf32>
    %277 = math.tanh %276 : vector<8x128xf32>
    %278 = vector.broadcast %9 : vector<1x128xf32> to vector<8x128xf32>
    %279 = arith.mulf %278, %277 : vector<8x128xf32>
    %280 = vector.broadcast %12 : vector<1x128xf32> to vector<8x128xf32>
    %281 = arith.addf %279, %280 : vector<8x128xf32>
    %282 = vector.extract_strided_slice %281 {offsets = [0, 0], sizes = [8, 32], strides = [1, 1]} : vector<8x128xf32> to vector<8x32xf32>
    %283 = vector.extract_strided_slice %281 {offsets = [0, 32], sizes = [8, 32], strides = [1, 1]} : vector<8x128xf32> to vector<8x32xf32>
    %284 = vector.extract_strided_slice %281 {offsets = [0, 64], sizes = [8, 32], strides = [1, 1]} : vector<8x128xf32> to vector<8x32xf32>
    %285 = vector.extract_strided_slice %281 {offsets = [0, 96], sizes = [8, 32], strides = [1, 1]} : vector<8x128xf32> to vector<8x32xf32>
    %286 = arith.mulf %283, %263 : vector<8x32xf32>
    %287 = arith.mulf %282, %284 : vector<8x32xf32>
    %288 = arith.addf %286, %287 : vector<8x32xf32>
    %289 = math.tanh %288 : vector<8x32xf32>
    %290 = arith.mulf %285, %289 : vector<8x32xf32>
    %c7_i32 = arith.constant 7 : i32
    %291 = vector.broadcast %c7_i32 : i32 to vector<8x1xi32>
    %292 = arith.cmpi sgt, %0, %291 : vector<8x1xi32>
    %cst_57 = arith.constant 0.000000e+00 : f32
    %293 = vector.shape_cast %292 : vector<8x1xi1> to vector<8x1xi1>
    %294 = vector.broadcast %293 : vector<8x1xi1> to vector<8x32xi1>
    %295 = vector.broadcast %cst_57 : f32 to vector<8x32xf32>
    %296 = arith.select %294, %290, %295 : vector<8x32xi1>, vector<8x32xf32>
    %c0_58 = arith.constant 0 : index
    %c7 = arith.constant 7 : index
    %c0_59 = arith.constant 0 : index
    %c0_60 = arith.constant 0 : index
    %297 = vector.load %arg11[%c0_58, %c7, %c0_59, %c0_60] : memref<2x8x8x32xf32, #tpu.memory_space<vmem>>, vector<1x1x8x32xf32>
    %298 = vector.shape_cast %297 : vector<1x1x8x32xf32> to vector<8x32xf32>
    %299 = vector.shape_cast %296 : vector<8x32xf32> to vector<1x1x8x32xf32>
    tpu.vector_store %arg11[%c0_58, %c7, %c0_59, %c0_60], %299 {strides = array<i32>} : memref<2x8x8x32xf32, #tpu.memory_space<vmem>>, vector<1x1x8x32xf32>,
    %c0_61 = arith.constant 0 : index
    %c0_62 = arith.constant 0 : index
    %c0_63 = arith.constant 0 : index
    %c0_64 = arith.constant 0 : index
    %300 = vector.load %arg11[%c0_61, %c0_62, %c0_63, %c0_64] : memref<2x8x8x32xf32, #tpu.memory_space<vmem>>, vector<1x8x8x32xf32>
    %301 = vector.shape_cast %300 : vector<1x8x8x32xf32> to vector<8x8x32xf32>
    %302 = vector.shape_cast %301 : vector<8x8x32xf32> to vector<64x32xf32>
    %303 = arith.truncf %302 : vector<64x32xf32> to vector<64x32xbf16>
    %cst_65 = arith.constant dense<0.000000e+00> : vector<64x128xf32>
    %304 = tpu.matmul %303, %15, %cst_65 {dimension_numbers = #tpu.dot_dimension_numbers<[1], [0], [0], [1], [0, 0, 1, 1], [], []>} : vector<64x32xbf16>, vector<32x128xbf16>, vector<64x128xf32> -> vector<64x128xf32>
    %c0_66 = arith.constant 0 : index
    %c0_67 = arith.constant 0 : index
    %305 = vector.load %arg7[%c0_66, %c0_67] : memref<1x128xf32, #tpu.memory_space<vmem>>, vector<1x128xf32>
    %306 = vector.broadcast %305 : vector<1x128xf32> to vector<64x128xf32>
    %307 = arith.addf %304, %306 : vector<64x128xf32>
    %cst_68 = arith.constant 0.000000e+00 : f32
    %308 = vector.broadcast %cst_68 : f32 to vector<8x32xf32>
    %cst_69 = arith.constant 0.000000e+00 : f32
    %309 = vector.broadcast %cst_69 : f32 to vector<8x32xf32>
    %310 = vector.extract_strided_slice %307 {offsets = [0, 0], sizes = [8, 128], strides = [1, 1]} : vector<64x128xf32> to vector<8x128xf32>
    %311 = arith.truncf %308 : vector<8x32xf32> to vector<8x32xbf16>
    %cst_70 = arith.constant dense<0.000000e+00> : vector<8x128xf32>
    %312 = tpu.matmul %311, %16, %cst_70 {dimension_numbers = #tpu.dot_dimension_numbers<[1], [0], [0], [1], [0, 0, 1, 1], [], []>} : vector<8x32xbf16>, vector<32x128xbf16>, vector<8x128xf32> -> vector<8x128xf32>
    %313 = arith.addf %310, %312 : vector<8x128xf32>
    %314 = vector.broadcast %9 : vector<1x128xf32> to vector<8x128xf32>
    %315 = arith.mulf %314, %313 : vector<8x128xf32>
    %316 = math.tanh %315 : vector<8x128xf32>
    %317 = vector.broadcast %9 : vector<1x128xf32> to vector<8x128xf32>
    %318 = arith.mulf %317, %316 : vector<8x128xf32>
    %319 = vector.broadcast %12 : vector<1x128xf32> to vector<8x128xf32>
    %320 = arith.addf %318, %319 : vector<8x128xf32>
    %321 = vector.extract_strided_slice %320 {offsets = [0, 0], sizes = [8, 32], strides = [1, 1]} : vector<8x128xf32> to vector<8x32xf32>
    %322 = vector.extract_strided_slice %320 {offsets = [0, 32], sizes = [8, 32], strides = [1, 1]} : vector<8x128xf32> to vector<8x32xf32>
    %323 = vector.extract_strided_slice %320 {offsets = [0, 64], sizes = [8, 32], strides = [1, 1]} : vector<8x128xf32> to vector<8x32xf32>
    %324 = vector.extract_strided_slice %320 {offsets = [0, 96], sizes = [8, 32], strides = [1, 1]} : vector<8x128xf32> to vector<8x32xf32>
    %325 = arith.mulf %322, %309 : vector<8x32xf32>
    %326 = arith.mulf %321, %323 : vector<8x32xf32>
    %327 = arith.addf %325, %326 : vector<8x32xf32>
    %328 = math.tanh %327 : vector<8x32xf32>
    %329 = arith.mulf %324, %328 : vector<8x32xf32>
    %c0_i32_71 = arith.constant 0 : i32
    %330 = vector.broadcast %c0_i32_71 : i32 to vector<8x1xi32>
    %331 = arith.cmpi sgt, %0, %330 : vector<8x1xi32>
    %332 = vector.shape_cast %331 : vector<8x1xi1> to vector<8x1xi1>
    %333 = vector.broadcast %332 : vector<8x1xi1> to vector<8x32xi1>
    %334 = arith.select %333, %329, %308 : vector<8x32xi1>, vector<8x32xf32>
    %335 = vector.shape_cast %331 : vector<8x1xi1> to vector<8x1xi1>
    %336 = vector.broadcast %335 : vector<8x1xi1> to vector<8x32xi1>
    %337 = arith.select %336, %327, %309 : vector<8x32xi1>, vector<8x32xf32>
    %cst_72 = arith.constant 0.000000e+00 : f32
    %338 = vector.shape_cast %331 : vector<8x1xi1> to vector<8x1xi1>
    %339 = vector.broadcast %338 : vector<8x1xi1> to vector<8x32xi1>
    %340 = vector.broadcast %cst_72 : f32 to vector<8x32xf32>
    %341 = arith.select %339, %329, %340 : vector<8x32xi1>, vector<8x32xf32>
    %c1_73 = arith.constant 1 : index
    %c0_74 = arith.constant 0 : index
    %c0_75 = arith.constant 0 : index
    %c0_76 = arith.constant 0 : index
    %342 = vector.load %arg11[%c1_73, %c0_74, %c0_75, %c0_76] : memref<2x8x8x32xf32, #tpu.memory_space<vmem>>, vector<1x1x8x32xf32>
    %343 = vector.shape_cast %342 : vector<1x1x8x32xf32> to vector<8x32xf32>
    %344 = vector.shape_cast %341 : vector<8x32xf32> to vector<1x1x8x32xf32>
    tpu.vector_store %arg11[%c1_73, %c0_74, %c0_75, %c0_76], %344 {strides = array<i32>} : memref<2x8x8x32xf32, #tpu.memory_space<vmem>>, vector<1x1x8x32xf32>,
    %345 = vector.extract_strided_slice %307 {offsets = [8, 0], sizes = [8, 128], strides = [1, 1]} : vector<64x128xf32> to vector<8x128xf32>
    %346 = arith.truncf %334 : vector<8x32xf32> to vector<8x32xbf16>
    %cst_77 = arith.constant dense<0.000000e+00> : vector<8x128xf32>
    %347 = tpu.matmul %346, %16, %cst_77 {dimension_numbers = #tpu.dot_dimension_numbers<[1], [0], [0], [1], [0, 0, 1, 1], [], []>} : vector<8x32xbf16>, vector<32x128xbf16>, vector<8x128xf32> -> vector<8x128xf32>
    %348 = arith.addf %345, %347 : vector<8x128xf32>
    %349 = vector.broadcast %9 : vector<1x128xf32> to vector<8x128xf32>
    %350 = arith.mulf %349, %348 : vector<8x128xf32>
    %351 = math.tanh %350 : vector<8x128xf32>
    %352 = vector.broadcast %9 : vector<1x128xf32> to vector<8x128xf32>
    %353 = arith.mulf %352, %351 : vector<8x128xf32>
    %354 = vector.broadcast %12 : vector<1x128xf32> to vector<8x128xf32>
    %355 = arith.addf %353, %354 : vector<8x128xf32>
    %356 = vector.extract_strided_slice %355 {offsets = [0, 0], sizes = [8, 32], strides = [1, 1]} : vector<8x128xf32> to vector<8x32xf32>
    %357 = vector.extract_strided_slice %355 {offsets = [0, 32], sizes = [8, 32], strides = [1, 1]} : vector<8x128xf32> to vector<8x32xf32>
    %358 = vector.extract_strided_slice %355 {offsets = [0, 64], sizes = [8, 32], strides = [1, 1]} : vector<8x128xf32> to vector<8x32xf32>
    %359 = vector.extract_strided_slice %355 {offsets = [0, 96], sizes = [8, 32], strides = [1, 1]} : vector<8x128xf32> to vector<8x32xf32>
    %360 = arith.mulf %357, %337 : vector<8x32xf32>
    %361 = arith.mulf %356, %358 : vector<8x32xf32>
    %362 = arith.addf %360, %361 : vector<8x32xf32>
    %363 = math.tanh %362 : vector<8x32xf32>
    %364 = arith.mulf %359, %363 : vector<8x32xf32>
    %c1_i32_78 = arith.constant 1 : i32
    %365 = vector.broadcast %c1_i32_78 : i32 to vector<8x1xi32>
    %366 = arith.cmpi sgt, %0, %365 : vector<8x1xi32>
    %367 = vector.shape_cast %366 : vector<8x1xi1> to vector<8x1xi1>
    %368 = vector.broadcast %367 : vector<8x1xi1> to vector<8x32xi1>
    %369 = arith.select %368, %364, %334 : vector<8x32xi1>, vector<8x32xf32>
    %370 = vector.shape_cast %366 : vector<8x1xi1> to vector<8x1xi1>
    %371 = vector.broadcast %370 : vector<8x1xi1> to vector<8x32xi1>
    %372 = arith.select %371, %362, %337 : vector<8x32xi1>, vector<8x32xf32>
    %cst_79 = arith.constant 0.000000e+00 : f32
    %373 = vector.shape_cast %366 : vector<8x1xi1> to vector<8x1xi1>
    %374 = vector.broadcast %373 : vector<8x1xi1> to vector<8x32xi1>
    %375 = vector.broadcast %cst_79 : f32 to vector<8x32xf32>
    %376 = arith.select %374, %364, %375 : vector<8x32xi1>, vector<8x32xf32>
    %c1_80 = arith.constant 1 : index
    %c1_81 = arith.constant 1 : index
    %c0_82 = arith.constant 0 : index
    %c0_83 = arith.constant 0 : index
    %377 = vector.load %arg11[%c1_80, %c1_81, %c0_82, %c0_83] : memref<2x8x8x32xf32, #tpu.memory_space<vmem>>, vector<1x1x8x32xf32>
    %378 = vector.shape_cast %377 : vector<1x1x8x32xf32> to vector<8x32xf32>
    %379 = vector.shape_cast %376 : vector<8x32xf32> to vector<1x1x8x32xf32>
    tpu.vector_store %arg11[%c1_80, %c1_81, %c0_82, %c0_83], %379 {strides = array<i32>} : memref<2x8x8x32xf32, #tpu.memory_space<vmem>>, vector<1x1x8x32xf32>,
    %380 = vector.extract_strided_slice %307 {offsets = [16, 0], sizes = [8, 128], strides = [1, 1]} : vector<64x128xf32> to vector<8x128xf32>
    %381 = arith.truncf %369 : vector<8x32xf32> to vector<8x32xbf16>
    %cst_84 = arith.constant dense<0.000000e+00> : vector<8x128xf32>
    %382 = tpu.matmul %381, %16, %cst_84 {dimension_numbers = #tpu.dot_dimension_numbers<[1], [0], [0], [1], [0, 0, 1, 1], [], []>} : vector<8x32xbf16>, vector<32x128xbf16>, vector<8x128xf32> -> vector<8x128xf32>
    %383 = arith.addf %380, %382 : vector<8x128xf32>
    %384 = vector.broadcast %9 : vector<1x128xf32> to vector<8x128xf32>
    %385 = arith.mulf %384, %383 : vector<8x128xf32>
    %386 = math.tanh %385 : vector<8x128xf32>
    %387 = vector.broadcast %9 : vector<1x128xf32> to vector<8x128xf32>
    %388 = arith.mulf %387, %386 : vector<8x128xf32>
    %389 = vector.broadcast %12 : vector<1x128xf32> to vector<8x128xf32>
    %390 = arith.addf %388, %389 : vector<8x128xf32>
    %391 = vector.extract_strided_slice %390 {offsets = [0, 0], sizes = [8, 32], strides = [1, 1]} : vector<8x128xf32> to vector<8x32xf32>
    %392 = vector.extract_strided_slice %390 {offsets = [0, 32], sizes = [8, 32], strides = [1, 1]} : vector<8x128xf32> to vector<8x32xf32>
    %393 = vector.extract_strided_slice %390 {offsets = [0, 64], sizes = [8, 32], strides = [1, 1]} : vector<8x128xf32> to vector<8x32xf32>
    %394 = vector.extract_strided_slice %390 {offsets = [0, 96], sizes = [8, 32], strides = [1, 1]} : vector<8x128xf32> to vector<8x32xf32>
    %395 = arith.mulf %392, %372 : vector<8x32xf32>
    %396 = arith.mulf %391, %393 : vector<8x32xf32>
    %397 = arith.addf %395, %396 : vector<8x32xf32>
    %398 = math.tanh %397 : vector<8x32xf32>
    %399 = arith.mulf %394, %398 : vector<8x32xf32>
    %c2_i32_85 = arith.constant 2 : i32
    %400 = vector.broadcast %c2_i32_85 : i32 to vector<8x1xi32>
    %401 = arith.cmpi sgt, %0, %400 : vector<8x1xi32>
    %402 = vector.shape_cast %401 : vector<8x1xi1> to vector<8x1xi1>
    %403 = vector.broadcast %402 : vector<8x1xi1> to vector<8x32xi1>
    %404 = arith.select %403, %399, %369 : vector<8x32xi1>, vector<8x32xf32>
    %405 = vector.shape_cast %401 : vector<8x1xi1> to vector<8x1xi1>
    %406 = vector.broadcast %405 : vector<8x1xi1> to vector<8x32xi1>
    %407 = arith.select %406, %397, %372 : vector<8x32xi1>, vector<8x32xf32>
    %cst_86 = arith.constant 0.000000e+00 : f32
    %408 = vector.shape_cast %401 : vector<8x1xi1> to vector<8x1xi1>
    %409 = vector.broadcast %408 : vector<8x1xi1> to vector<8x32xi1>
    %410 = vector.broadcast %cst_86 : f32 to vector<8x32xf32>
    %411 = arith.select %409, %399, %410 : vector<8x32xi1>, vector<8x32xf32>
    %c1_87 = arith.constant 1 : index
    %c2_88 = arith.constant 2 : index
    %c0_89 = arith.constant 0 : index
    %c0_90 = arith.constant 0 : index
    %412 = vector.load %arg11[%c1_87, %c2_88, %c0_89, %c0_90] : memref<2x8x8x32xf32, #tpu.memory_space<vmem>>, vector<1x1x8x32xf32>
    %413 = vector.shape_cast %412 : vector<1x1x8x32xf32> to vector<8x32xf32>
    %414 = vector.shape_cast %411 : vector<8x32xf32> to vector<1x1x8x32xf32>
    tpu.vector_store %arg11[%c1_87, %c2_88, %c0_89, %c0_90], %414 {strides = array<i32>} : memref<2x8x8x32xf32, #tpu.memory_space<vmem>>, vector<1x1x8x32xf32>,
    %415 = vector.extract_strided_slice %307 {offsets = [24, 0], sizes = [8, 128], strides = [1, 1]} : vector<64x128xf32> to vector<8x128xf32>
    %416 = arith.truncf %404 : vector<8x32xf32> to vector<8x32xbf16>
    %cst_91 = arith.constant dense<0.000000e+00> : vector<8x128xf32>
    %417 = tpu.matmul %416, %16, %cst_91 {dimension_numbers = #tpu.dot_dimension_numbers<[1], [0], [0], [1], [0, 0, 1, 1], [], []>} : vector<8x32xbf16>, vector<32x128xbf16>, vector<8x128xf32> -> vector<8x128xf32>
    %418 = arith.addf %415, %417 : vector<8x128xf32>
    %419 = vector.broadcast %9 : vector<1x128xf32> to vector<8x128xf32>
    %420 = arith.mulf %419, %418 : vector<8x128xf32>
    %421 = math.tanh %420 : vector<8x128xf32>
    %422 = vector.broadcast %9 : vector<1x128xf32> to vector<8x128xf32>
    %423 = arith.mulf %422, %421 : vector<8x128xf32>
    %424 = vector.broadcast %12 : vector<1x128xf32> to vector<8x128xf32>
    %425 = arith.addf %423, %424 : vector<8x128xf32>
    %426 = vector.extract_strided_slice %425 {offsets = [0, 0], sizes = [8, 32], strides = [1, 1]} : vector<8x128xf32> to vector<8x32xf32>
    %427 = vector.extract_strided_slice %425 {offsets = [0, 32], sizes = [8, 32], strides = [1, 1]} : vector<8x128xf32> to vector<8x32xf32>
    %428 = vector.extract_strided_slice %425 {offsets = [0, 64], sizes = [8, 32], strides = [1, 1]} : vector<8x128xf32> to vector<8x32xf32>
    %429 = vector.extract_strided_slice %425 {offsets = [0, 96], sizes = [8, 32], strides = [1, 1]} : vector<8x128xf32> to vector<8x32xf32>
    %430 = arith.mulf %427, %407 : vector<8x32xf32>
    %431 = arith.mulf %426, %428 : vector<8x32xf32>
    %432 = arith.addf %430, %431 : vector<8x32xf32>
    %433 = math.tanh %432 : vector<8x32xf32>
    %434 = arith.mulf %429, %433 : vector<8x32xf32>
    %c3_i32_92 = arith.constant 3 : i32
    %435 = vector.broadcast %c3_i32_92 : i32 to vector<8x1xi32>
    %436 = arith.cmpi sgt, %0, %435 : vector<8x1xi32>
    %437 = vector.shape_cast %436 : vector<8x1xi1> to vector<8x1xi1>
    %438 = vector.broadcast %437 : vector<8x1xi1> to vector<8x32xi1>
    %439 = arith.select %438, %434, %404 : vector<8x32xi1>, vector<8x32xf32>
    %440 = vector.shape_cast %436 : vector<8x1xi1> to vector<8x1xi1>
    %441 = vector.broadcast %440 : vector<8x1xi1> to vector<8x32xi1>
    %442 = arith.select %441, %432, %407 : vector<8x32xi1>, vector<8x32xf32>
    %cst_93 = arith.constant 0.000000e+00 : f32
    %443 = vector.shape_cast %436 : vector<8x1xi1> to vector<8x1xi1>
    %444 = vector.broadcast %443 : vector<8x1xi1> to vector<8x32xi1>
    %445 = vector.broadcast %cst_93 : f32 to vector<8x32xf32>
    %446 = arith.select %444, %434, %445 : vector<8x32xi1>, vector<8x32xf32>
    %c1_94 = arith.constant 1 : index
    %c3_95 = arith.constant 3 : index
    %c0_96 = arith.constant 0 : index
    %c0_97 = arith.constant 0 : index
    %447 = vector.load %arg11[%c1_94, %c3_95, %c0_96, %c0_97] : memref<2x8x8x32xf32, #tpu.memory_space<vmem>>, vector<1x1x8x32xf32>
    %448 = vector.shape_cast %447 : vector<1x1x8x32xf32> to vector<8x32xf32>
    %449 = vector.shape_cast %446 : vector<8x32xf32> to vector<1x1x8x32xf32>
    tpu.vector_store %arg11[%c1_94, %c3_95, %c0_96, %c0_97], %449 {strides = array<i32>} : memref<2x8x8x32xf32, #tpu.memory_space<vmem>>, vector<1x1x8x32xf32>,
    %450 = vector.extract_strided_slice %307 {offsets = [32, 0], sizes = [8, 128], strides = [1, 1]} : vector<64x128xf32> to vector<8x128xf32>
    %451 = arith.truncf %439 : vector<8x32xf32> to vector<8x32xbf16>
    %cst_98 = arith.constant dense<0.000000e+00> : vector<8x128xf32>
    %452 = tpu.matmul %451, %16, %cst_98 {dimension_numbers = #tpu.dot_dimension_numbers<[1], [0], [0], [1], [0, 0, 1, 1], [], []>} : vector<8x32xbf16>, vector<32x128xbf16>, vector<8x128xf32> -> vector<8x128xf32>
    %453 = arith.addf %450, %452 : vector<8x128xf32>
    %454 = vector.broadcast %9 : vector<1x128xf32> to vector<8x128xf32>
    %455 = arith.mulf %454, %453 : vector<8x128xf32>
    %456 = math.tanh %455 : vector<8x128xf32>
    %457 = vector.broadcast %9 : vector<1x128xf32> to vector<8x128xf32>
    %458 = arith.mulf %457, %456 : vector<8x128xf32>
    %459 = vector.broadcast %12 : vector<1x128xf32> to vector<8x128xf32>
    %460 = arith.addf %458, %459 : vector<8x128xf32>
    %461 = vector.extract_strided_slice %460 {offsets = [0, 0], sizes = [8, 32], strides = [1, 1]} : vector<8x128xf32> to vector<8x32xf32>
    %462 = vector.extract_strided_slice %460 {offsets = [0, 32], sizes = [8, 32], strides = [1, 1]} : vector<8x128xf32> to vector<8x32xf32>
    %463 = vector.extract_strided_slice %460 {offsets = [0, 64], sizes = [8, 32], strides = [1, 1]} : vector<8x128xf32> to vector<8x32xf32>
    %464 = vector.extract_strided_slice %460 {offsets = [0, 96], sizes = [8, 32], strides = [1, 1]} : vector<8x128xf32> to vector<8x32xf32>
    %465 = arith.mulf %462, %442 : vector<8x32xf32>
    %466 = arith.mulf %461, %463 : vector<8x32xf32>
    %467 = arith.addf %465, %466 : vector<8x32xf32>
    %468 = math.tanh %467 : vector<8x32xf32>
    %469 = arith.mulf %464, %468 : vector<8x32xf32>
    %c4_i32_99 = arith.constant 4 : i32
    %470 = vector.broadcast %c4_i32_99 : i32 to vector<8x1xi32>
    %471 = arith.cmpi sgt, %0, %470 : vector<8x1xi32>
    %472 = vector.shape_cast %471 : vector<8x1xi1> to vector<8x1xi1>
    %473 = vector.broadcast %472 : vector<8x1xi1> to vector<8x32xi1>
    %474 = arith.select %473, %469, %439 : vector<8x32xi1>, vector<8x32xf32>
    %475 = vector.shape_cast %471 : vector<8x1xi1> to vector<8x1xi1>
    %476 = vector.broadcast %475 : vector<8x1xi1> to vector<8x32xi1>
    %477 = arith.select %476, %467, %442 : vector<8x32xi1>, vector<8x32xf32>
    %cst_100 = arith.constant 0.000000e+00 : f32
    %478 = vector.shape_cast %471 : vector<8x1xi1> to vector<8x1xi1>
    %479 = vector.broadcast %478 : vector<8x1xi1> to vector<8x32xi1>
    %480 = vector.broadcast %cst_100 : f32 to vector<8x32xf32>
    %481 = arith.select %479, %469, %480 : vector<8x32xi1>, vector<8x32xf32>
    %c1_101 = arith.constant 1 : index
    %c4_102 = arith.constant 4 : index
    %c0_103 = arith.constant 0 : index
    %c0_104 = arith.constant 0 : index
    %482 = vector.load %arg11[%c1_101, %c4_102, %c0_103, %c0_104] : memref<2x8x8x32xf32, #tpu.memory_space<vmem>>, vector<1x1x8x32xf32>
    %483 = vector.shape_cast %482 : vector<1x1x8x32xf32> to vector<8x32xf32>
    %484 = vector.shape_cast %481 : vector<8x32xf32> to vector<1x1x8x32xf32>
    tpu.vector_store %arg11[%c1_101, %c4_102, %c0_103, %c0_104], %484 {strides = array<i32>} : memref<2x8x8x32xf32, #tpu.memory_space<vmem>>, vector<1x1x8x32xf32>,
    %485 = vector.extract_strided_slice %307 {offsets = [40, 0], sizes = [8, 128], strides = [1, 1]} : vector<64x128xf32> to vector<8x128xf32>
    %486 = arith.truncf %474 : vector<8x32xf32> to vector<8x32xbf16>
    %cst_105 = arith.constant dense<0.000000e+00> : vector<8x128xf32>
    %487 = tpu.matmul %486, %16, %cst_105 {dimension_numbers = #tpu.dot_dimension_numbers<[1], [0], [0], [1], [0, 0, 1, 1], [], []>} : vector<8x32xbf16>, vector<32x128xbf16>, vector<8x128xf32> -> vector<8x128xf32>
    %488 = arith.addf %485, %487 : vector<8x128xf32>
    %489 = vector.broadcast %9 : vector<1x128xf32> to vector<8x128xf32>
    %490 = arith.mulf %489, %488 : vector<8x128xf32>
    %491 = math.tanh %490 : vector<8x128xf32>
    %492 = vector.broadcast %9 : vector<1x128xf32> to vector<8x128xf32>
    %493 = arith.mulf %492, %491 : vector<8x128xf32>
    %494 = vector.broadcast %12 : vector<1x128xf32> to vector<8x128xf32>
    %495 = arith.addf %493, %494 : vector<8x128xf32>
    %496 = vector.extract_strided_slice %495 {offsets = [0, 0], sizes = [8, 32], strides = [1, 1]} : vector<8x128xf32> to vector<8x32xf32>
    %497 = vector.extract_strided_slice %495 {offsets = [0, 32], sizes = [8, 32], strides = [1, 1]} : vector<8x128xf32> to vector<8x32xf32>
    %498 = vector.extract_strided_slice %495 {offsets = [0, 64], sizes = [8, 32], strides = [1, 1]} : vector<8x128xf32> to vector<8x32xf32>
    %499 = vector.extract_strided_slice %495 {offsets = [0, 96], sizes = [8, 32], strides = [1, 1]} : vector<8x128xf32> to vector<8x32xf32>
    %500 = arith.mulf %497, %477 : vector<8x32xf32>
    %501 = arith.mulf %496, %498 : vector<8x32xf32>
    %502 = arith.addf %500, %501 : vector<8x32xf32>
    %503 = math.tanh %502 : vector<8x32xf32>
    %504 = arith.mulf %499, %503 : vector<8x32xf32>
    %c5_i32_106 = arith.constant 5 : i32
    %505 = vector.broadcast %c5_i32_106 : i32 to vector<8x1xi32>
    %506 = arith.cmpi sgt, %0, %505 : vector<8x1xi32>
    %507 = vector.shape_cast %506 : vector<8x1xi1> to vector<8x1xi1>
    %508 = vector.broadcast %507 : vector<8x1xi1> to vector<8x32xi1>
    %509 = arith.select %508, %504, %474 : vector<8x32xi1>, vector<8x32xf32>
    %510 = vector.shape_cast %506 : vector<8x1xi1> to vector<8x1xi1>
    %511 = vector.broadcast %510 : vector<8x1xi1> to vector<8x32xi1>
    %512 = arith.select %511, %502, %477 : vector<8x32xi1>, vector<8x32xf32>
    %cst_107 = arith.constant 0.000000e+00 : f32
    %513 = vector.shape_cast %506 : vector<8x1xi1> to vector<8x1xi1>
    %514 = vector.broadcast %513 : vector<8x1xi1> to vector<8x32xi1>
    %515 = vector.broadcast %cst_107 : f32 to vector<8x32xf32>
    %516 = arith.select %514, %504, %515 : vector<8x32xi1>, vector<8x32xf32>
    %c1_108 = arith.constant 1 : index
    %c5_109 = arith.constant 5 : index
    %c0_110 = arith.constant 0 : index
    %c0_111 = arith.constant 0 : index
    %517 = vector.load %arg11[%c1_108, %c5_109, %c0_110, %c0_111] : memref<2x8x8x32xf32, #tpu.memory_space<vmem>>, vector<1x1x8x32xf32>
    %518 = vector.shape_cast %517 : vector<1x1x8x32xf32> to vector<8x32xf32>
    %519 = vector.shape_cast %516 : vector<8x32xf32> to vector<1x1x8x32xf32>
    tpu.vector_store %arg11[%c1_108, %c5_109, %c0_110, %c0_111], %519 {strides = array<i32>} : memref<2x8x8x32xf32, #tpu.memory_space<vmem>>, vector<1x1x8x32xf32>,
    %520 = vector.extract_strided_slice %307 {offsets = [48, 0], sizes = [8, 128], strides = [1, 1]} : vector<64x128xf32> to vector<8x128xf32>
    %521 = arith.truncf %509 : vector<8x32xf32> to vector<8x32xbf16>
    %cst_112 = arith.constant dense<0.000000e+00> : vector<8x128xf32>
    %522 = tpu.matmul %521, %16, %cst_112 {dimension_numbers = #tpu.dot_dimension_numbers<[1], [0], [0], [1], [0, 0, 1, 1], [], []>} : vector<8x32xbf16>, vector<32x128xbf16>, vector<8x128xf32> -> vector<8x128xf32>
    %523 = arith.addf %520, %522 : vector<8x128xf32>
    %524 = vector.broadcast %9 : vector<1x128xf32> to vector<8x128xf32>
    %525 = arith.mulf %524, %523 : vector<8x128xf32>
    %526 = math.tanh %525 : vector<8x128xf32>
    %527 = vector.broadcast %9 : vector<1x128xf32> to vector<8x128xf32>
    %528 = arith.mulf %527, %526 : vector<8x128xf32>
    %529 = vector.broadcast %12 : vector<1x128xf32> to vector<8x128xf32>
    %530 = arith.addf %528, %529 : vector<8x128xf32>
    %531 = vector.extract_strided_slice %530 {offsets = [0, 0], sizes = [8, 32], strides = [1, 1]} : vector<8x128xf32> to vector<8x32xf32>
    %532 = vector.extract_strided_slice %530 {offsets = [0, 32], sizes = [8, 32], strides = [1, 1]} : vector<8x128xf32> to vector<8x32xf32>
    %533 = vector.extract_strided_slice %530 {offsets = [0, 64], sizes = [8, 32], strides = [1, 1]} : vector<8x128xf32> to vector<8x32xf32>
    %534 = vector.extract_strided_slice %530 {offsets = [0, 96], sizes = [8, 32], strides = [1, 1]} : vector<8x128xf32> to vector<8x32xf32>
    %535 = arith.mulf %532, %512 : vector<8x32xf32>
    %536 = arith.mulf %531, %533 : vector<8x32xf32>
    %537 = arith.addf %535, %536 : vector<8x32xf32>
    %538 = math.tanh %537 : vector<8x32xf32>
    %539 = arith.mulf %534, %538 : vector<8x32xf32>
    %c6_i32_113 = arith.constant 6 : i32
    %540 = vector.broadcast %c6_i32_113 : i32 to vector<8x1xi32>
    %541 = arith.cmpi sgt, %0, %540 : vector<8x1xi32>
    %542 = vector.shape_cast %541 : vector<8x1xi1> to vector<8x1xi1>
    %543 = vector.broadcast %542 : vector<8x1xi1> to vector<8x32xi1>
    %544 = arith.select %543, %539, %509 : vector<8x32xi1>, vector<8x32xf32>
    %545 = vector.shape_cast %541 : vector<8x1xi1> to vector<8x1xi1>
    %546 = vector.broadcast %545 : vector<8x1xi1> to vector<8x32xi1>
    %547 = arith.select %546, %537, %512 : vector<8x32xi1>, vector<8x32xf32>
    %cst_114 = arith.constant 0.000000e+00 : f32
    %548 = vector.shape_cast %541 : vector<8x1xi1> to vector<8x1xi1>
    %549 = vector.broadcast %548 : vector<8x1xi1> to vector<8x32xi1>
    %550 = vector.broadcast %cst_114 : f32 to vector<8x32xf32>
    %551 = arith.select %549, %539, %550 : vector<8x32xi1>, vector<8x32xf32>
    %c1_115 = arith.constant 1 : index
    %c6_116 = arith.constant 6 : index
    %c0_117 = arith.constant 0 : index
    %c0_118 = arith.constant 0 : index
    %552 = vector.load %arg11[%c1_115, %c6_116, %c0_117, %c0_118] : memref<2x8x8x32xf32, #tpu.memory_space<vmem>>, vector<1x1x8x32xf32>
    %553 = vector.shape_cast %552 : vector<1x1x8x32xf32> to vector<8x32xf32>
    %554 = vector.shape_cast %551 : vector<8x32xf32> to vector<1x1x8x32xf32>
    tpu.vector_store %arg11[%c1_115, %c6_116, %c0_117, %c0_118], %554 {strides = array<i32>} : memref<2x8x8x32xf32, #tpu.memory_space<vmem>>, vector<1x1x8x32xf32>,
    %555 = vector.extract_strided_slice %307 {offsets = [56, 0], sizes = [8, 128], strides = [1, 1]} : vector<64x128xf32> to vector<8x128xf32>
    %556 = arith.truncf %544 : vector<8x32xf32> to vector<8x32xbf16>
    %cst_119 = arith.constant dense<0.000000e+00> : vector<8x128xf32>
    %557 = tpu.matmul %556, %16, %cst_119 {dimension_numbers = #tpu.dot_dimension_numbers<[1], [0], [0], [1], [0, 0, 1, 1], [], []>} : vector<8x32xbf16>, vector<32x128xbf16>, vector<8x128xf32> -> vector<8x128xf32>
    %558 = arith.addf %555, %557 : vector<8x128xf32>
    %559 = vector.broadcast %9 : vector<1x128xf32> to vector<8x128xf32>
    %560 = arith.mulf %559, %558 : vector<8x128xf32>
    %561 = math.tanh %560 : vector<8x128xf32>
    %562 = vector.broadcast %9 : vector<1x128xf32> to vector<8x128xf32>
    %563 = arith.mulf %562, %561 : vector<8x128xf32>
    %564 = vector.broadcast %12 : vector<1x128xf32> to vector<8x128xf32>
    %565 = arith.addf %563, %564 : vector<8x128xf32>
    %566 = vector.extract_strided_slice %565 {offsets = [0, 0], sizes = [8, 32], strides = [1, 1]} : vector<8x128xf32> to vector<8x32xf32>
    %567 = vector.extract_strided_slice %565 {offsets = [0, 32], sizes = [8, 32], strides = [1, 1]} : vector<8x128xf32> to vector<8x32xf32>
    %568 = vector.extract_strided_slice %565 {offsets = [0, 64], sizes = [8, 32], strides = [1, 1]} : vector<8x128xf32> to vector<8x32xf32>
    %569 = vector.extract_strided_slice %565 {offsets = [0, 96], sizes = [8, 32], strides = [1, 1]} : vector<8x128xf32> to vector<8x32xf32>
    %570 = arith.mulf %567, %547 : vector<8x32xf32>
    %571 = arith.mulf %566, %568 : vector<8x32xf32>
    %572 = arith.addf %570, %571 : vector<8x32xf32>
    %573 = math.tanh %572 : vector<8x32xf32>
    %574 = arith.mulf %569, %573 : vector<8x32xf32>
    %c7_i32_120 = arith.constant 7 : i32
    %575 = vector.broadcast %c7_i32_120 : i32 to vector<8x1xi32>
    %576 = arith.cmpi sgt, %0, %575 : vector<8x1xi32>
    %cst_121 = arith.constant 0.000000e+00 : f32
    %577 = vector.shape_cast %576 : vector<8x1xi1> to vector<8x1xi1>
    %578 = vector.broadcast %577 : vector<8x1xi1> to vector<8x32xi1>
    %579 = vector.broadcast %cst_121 : f32 to vector<8x32xf32>
    %580 = arith.select %578, %574, %579 : vector<8x32xi1>, vector<8x32xf32>
    %c1_122 = arith.constant 1 : index
    %c7_123 = arith.constant 7 : index
    %c0_124 = arith.constant 0 : index
    %c0_125 = arith.constant 0 : index
    %581 = vector.load %arg11[%c1_122, %c7_123, %c0_124, %c0_125] : memref<2x8x8x32xf32, #tpu.memory_space<vmem>>, vector<1x1x8x32xf32>
    %582 = vector.shape_cast %581 : vector<1x1x8x32xf32> to vector<8x32xf32>
    %583 = vector.shape_cast %580 : vector<8x32xf32> to vector<1x1x8x32xf32>
    tpu.vector_store %arg11[%c1_122, %c7_123, %c0_124, %c0_125], %583 {strides = array<i32>} : memref<2x8x8x32xf32, #tpu.memory_space<vmem>>, vector<1x1x8x32xf32>,
    %c1_126 = arith.constant 1 : index
    %c0_127 = arith.constant 0 : index
    %c0_128 = arith.constant 0 : index
    %c0_129 = arith.constant 0 : index
    %584 = vector.load %arg11[%c1_126, %c0_127, %c0_128, %c0_129] : memref<2x8x8x32xf32, #tpu.memory_space<vmem>>, vector<1x8x8x32xf32>
    %585 = vector.shape_cast %584 : vector<1x8x8x32xf32> to vector<8x8x32xf32>
    %586 = vector.extract_strided_slice %301 {offsets = [0, 0, 0], sizes = [8, 4, 32], strides = [1, 1, 1]} : vector<8x8x32xf32> to vector<8x4x32xf32>
    %587 = vector.extract_strided_slice %301 {offsets = [0, 4, 0], sizes = [8, 4, 32], strides = [1, 1, 1]} : vector<8x8x32xf32> to vector<8x4x32xf32>
    %588 = vector.extract_strided_slice %585 {offsets = [0, 0, 0], sizes = [8, 4, 32], strides = [1, 1, 1]} : vector<8x8x32xf32> to vector<8x4x32xf32>
    %589 = vector.extract_strided_slice %585 {offsets = [0, 4, 0], sizes = [8, 4, 32], strides = [1, 1, 1]} : vector<8x8x32xf32> to vector<8x4x32xf32>
    %c0_130 = arith.constant 0 : index
    %c0_131 = arith.constant 0 : index
    %c0_132 = arith.constant 0 : index
    %590 = vector.load %arg8[%c0_130, %c0_131, %c0_132] : memref<8x4x64xf32, #tpu.memory_space<vmem>>, vector<8x4x32xf32>
    tpu.vector_store %arg8[%c0_130, %c0_131, %c0_132], %586 {strides = array<i32>} : memref<8x4x64xf32, #tpu.memory_space<vmem>>, vector<8x4x32xf32>,
    %c0_133 = arith.constant 0 : index
    %c0_134 = arith.constant 0 : index
    %c32 = arith.constant 32 : index
    %591 = vector.load %arg8[%c0_133, %c0_134, %c32] : memref<8x4x64xf32, #tpu.memory_space<vmem>>, vector<8x4x32xf32>
    tpu.vector_store %arg8[%c0_133, %c0_134, %c32], %587 {strides = array<i32>} : memref<8x4x64xf32, #tpu.memory_space<vmem>>, vector<8x4x32xf32>,
    %592 = tpu.iota {dimensions = array<i32: 0>} : vector<8x4x1xi32>
    %593 = vector.extract_strided_slice %0 {offsets = [0, 0], sizes = [4, 1], strides = [1, 1]} : vector<8x1xi32> to vector<4x1xi32>
    %594 = vector.shape_cast %593 : vector<4x1xi32> to vector<1x4x1xi32>
    %c1_i32_135 = arith.constant 1 : i32
    %595 = vector.broadcast %c1_i32_135 : i32 to vector<1x4x1xi32>
    %596 = arith.subi %594, %595 : vector<1x4x1xi32>
    %597 = vector.broadcast %596 : vector<1x4x1xi32> to vector<8x4x1xi32>
    %598 = arith.subi %597, %592 : vector<8x4x1xi32>
    %c3_i32_136 = arith.constant 3 : i32
    %599 = vector.broadcast %c3_i32_136 : i32 to vector<1x4x1xi32>
    %600 = arith.subi %594, %599 : vector<1x4x1xi32>
    %601 = vector.broadcast %600 : vector<1x4x1xi32> to vector<8x4x1xi32>
    %602 = arith.subi %601, %592 : vector<8x4x1xi32>
    %c2_i32_137 = arith.constant 2 : i32
    %603 = vector.broadcast %c2_i32_137 : i32 to vector<1x4x1xi32>
    %604 = arith.subi %594, %603 : vector<1x4x1xi32>
    %605 = vector.broadcast %604 : vector<1x4x1xi32> to vector<8x4x1xi32>
    %606 = arith.cmpi slt, %592, %605 : vector<8x4x1xi32>
    %cst_138 = arith.constant 0.000000e+00 : f32
    %607 = vector.broadcast %cst_138 : f32 to vector<8x4x32xf32>
    %cst_139 = arith.constant 0.000000e+00 : f32
    %608 = vector.broadcast %cst_139 : f32 to vector<8x4x32xf32>
    %609 = vector.extract_strided_slice %589 {offsets = [0, 0, 0], sizes = [1, 4, 32], strides = [1, 1, 1]} : vector<8x4x32xf32> to vector<1x4x32xf32>
    %610 = vector.shape_cast %609 : vector<1x4x32xf32> to vector<4x32xf32>
    %611 = vector.shape_cast %610 : vector<4x32xf32> to vector<1x4x32xf32>
    %c0_i32_140 = arith.constant 0 : i32
    %612 = vector.broadcast %c0_i32_140 : i32 to vector<8x4x1xi32>
    %613 = arith.cmpi eq, %598, %612 : vector<8x4x1xi32>
    %614 = vector.shape_cast %613 : vector<8x4x1xi1> to vector<8x4x1xi1>
    %615 = vector.broadcast %614 : vector<8x4x1xi1> to vector<8x4x32xi1>
    %616 = vector.shape_cast %611 : vector<1x4x32xf32> to vector<1x4x32xf32>
    %617 = vector.broadcast %616 : vector<1x4x32xf32> to vector<8x4x32xf32>
    %618 = arith.select %615, %617, %607 : vector<8x4x32xi1>, vector<8x4x32xf32>
    %c0_i32_141 = arith.constant 0 : i32
    %619 = vector.broadcast %c0_i32_141 : i32 to vector<8x4x1xi32>
    %620 = arith.cmpi eq, %602, %619 : vector<8x4x1xi32>
    %621 = vector.shape_cast %620 : vector<8x4x1xi1> to vector<8x4x1xi1>
    %622 = vector.broadcast %621 : vector<8x4x1xi1> to vector<8x4x32xi1>
    %623 = vector.shape_cast %611 : vector<1x4x32xf32> to vector<1x4x32xf32>
    %624 = vector.broadcast %623 : vector<1x4x32xf32> to vector<8x4x32xf32>
    %625 = arith.select %622, %624, %608 : vector<8x4x32xi1>, vector<8x4x32xf32>
    %626 = vector.extract_strided_slice %589 {offsets = [1, 0, 0], sizes = [1, 4, 32], strides = [1, 1, 1]} : vector<8x4x32xf32> to vector<1x4x32xf32>
    %627 = vector.shape_cast %626 : vector<1x4x32xf32> to vector<4x32xf32>
    %628 = vector.shape_cast %627 : vector<4x32xf32> to vector<1x4x32xf32>
    %c1_i32_142 = arith.constant 1 : i32
    %629 = vector.broadcast %c1_i32_142 : i32 to vector<8x4x1xi32>
    %630 = arith.cmpi eq, %598, %629 : vector<8x4x1xi32>
    %631 = vector.shape_cast %630 : vector<8x4x1xi1> to vector<8x4x1xi1>
    %632 = vector.broadcast %631 : vector<8x4x1xi1> to vector<8x4x32xi1>
    %633 = vector.shape_cast %628 : vector<1x4x32xf32> to vector<1x4x32xf32>
    %634 = vector.broadcast %633 : vector<1x4x32xf32> to vector<8x4x32xf32>
    %635 = arith.select %632, %634, %618 : vector<8x4x32xi1>, vector<8x4x32xf32>
    %c1_i32_143 = arith.constant 1 : i32
    %636 = vector.broadcast %c1_i32_143 : i32 to vector<8x4x1xi32>
    %637 = arith.cmpi eq, %602, %636 : vector<8x4x1xi32>
    %638 = vector.shape_cast %637 : vector<8x4x1xi1> to vector<8x4x1xi1>
    %639 = vector.broadcast %638 : vector<8x4x1xi1> to vector<8x4x32xi1>
    %640 = vector.shape_cast %628 : vector<1x4x32xf32> to vector<1x4x32xf32>
    %641 = vector.broadcast %640 : vector<1x4x32xf32> to vector<8x4x32xf32>
    %642 = arith.select %639, %641, %625 : vector<8x4x32xi1>, vector<8x4x32xf32>
    %643 = vector.extract_strided_slice %589 {offsets = [2, 0, 0], sizes = [1, 4, 32], strides = [1, 1, 1]} : vector<8x4x32xf32> to vector<1x4x32xf32>
    %644 = vector.shape_cast %643 : vector<1x4x32xf32> to vector<4x32xf32>
    %645 = vector.shape_cast %644 : vector<4x32xf32> to vector<1x4x32xf32>
    %c2_i32_144 = arith.constant 2 : i32
    %646 = vector.broadcast %c2_i32_144 : i32 to vector<8x4x1xi32>
    %647 = arith.cmpi eq, %598, %646 : vector<8x4x1xi32>
    %648 = vector.shape_cast %647 : vector<8x4x1xi1> to vector<8x4x1xi1>
    %649 = vector.broadcast %648 : vector<8x4x1xi1> to vector<8x4x32xi1>
    %650 = vector.shape_cast %645 : vector<1x4x32xf32> to vector<1x4x32xf32>
    %651 = vector.broadcast %650 : vector<1x4x32xf32> to vector<8x4x32xf32>
    %652 = arith.select %649, %651, %635 : vector<8x4x32xi1>, vector<8x4x32xf32>
    %c2_i32_145 = arith.constant 2 : i32
    %653 = vector.broadcast %c2_i32_145 : i32 to vector<8x4x1xi32>
    %654 = arith.cmpi eq, %602, %653 : vector<8x4x1xi32>
    %655 = vector.shape_cast %654 : vector<8x4x1xi1> to vector<8x4x1xi1>
    %656 = vector.broadcast %655 : vector<8x4x1xi1> to vector<8x4x32xi1>
    %657 = vector.shape_cast %645 : vector<1x4x32xf32> to vector<1x4x32xf32>
    %658 = vector.broadcast %657 : vector<1x4x32xf32> to vector<8x4x32xf32>
    %659 = arith.select %656, %658, %642 : vector<8x4x32xi1>, vector<8x4x32xf32>
    %660 = vector.extract_strided_slice %589 {offsets = [3, 0, 0], sizes = [1, 4, 32], strides = [1, 1, 1]} : vector<8x4x32xf32> to vector<1x4x32xf32>
    %661 = vector.shape_cast %660 : vector<1x4x32xf32> to vector<4x32xf32>
    %662 = vector.shape_cast %661 : vector<4x32xf32> to vector<1x4x32xf32>
    %c3_i32_146 = arith.constant 3 : i32
    %663 = vector.broadcast %c3_i32_146 : i32 to vector<8x4x1xi32>
    %664 = arith.cmpi eq, %598, %663 : vector<8x4x1xi32>
    %665 = vector.shape_cast %664 : vector<8x4x1xi1> to vector<8x4x1xi1>
    %666 = vector.broadcast %665 : vector<8x4x1xi1> to vector<8x4x32xi1>
    %667 = vector.shape_cast %662 : vector<1x4x32xf32> to vector<1x4x32xf32>
    %668 = vector.broadcast %667 : vector<1x4x32xf32> to vector<8x4x32xf32>
    %669 = arith.select %666, %668, %652 : vector<8x4x32xi1>, vector<8x4x32xf32>
    %c3_i32_147 = arith.constant 3 : i32
    %670 = vector.broadcast %c3_i32_147 : i32 to vector<8x4x1xi32>
    %671 = arith.cmpi eq, %602, %670 : vector<8x4x1xi32>
    %672 = vector.shape_cast %671 : vector<8x4x1xi1> to vector<8x4x1xi1>
    %673 = vector.broadcast %672 : vector<8x4x1xi1> to vector<8x4x32xi1>
    %674 = vector.shape_cast %662 : vector<1x4x32xf32> to vector<1x4x32xf32>
    %675 = vector.broadcast %674 : vector<1x4x32xf32> to vector<8x4x32xf32>
    %676 = arith.select %673, %675, %659 : vector<8x4x32xi1>, vector<8x4x32xf32>
    %677 = vector.extract_strided_slice %589 {offsets = [4, 0, 0], sizes = [1, 4, 32], strides = [1, 1, 1]} : vector<8x4x32xf32> to vector<1x4x32xf32>
    %678 = vector.shape_cast %677 : vector<1x4x32xf32> to vector<4x32xf32>
    %679 = vector.shape_cast %678 : vector<4x32xf32> to vector<1x4x32xf32>
    %c4_i32_148 = arith.constant 4 : i32
    %680 = vector.broadcast %c4_i32_148 : i32 to vector<8x4x1xi32>
    %681 = arith.cmpi eq, %598, %680 : vector<8x4x1xi32>
    %682 = vector.shape_cast %681 : vector<8x4x1xi1> to vector<8x4x1xi1>
    %683 = vector.broadcast %682 : vector<8x4x1xi1> to vector<8x4x32xi1>
    %684 = vector.shape_cast %679 : vector<1x4x32xf32> to vector<1x4x32xf32>
    %685 = vector.broadcast %684 : vector<1x4x32xf32> to vector<8x4x32xf32>
    %686 = arith.select %683, %685, %669 : vector<8x4x32xi1>, vector<8x4x32xf32>
    %c4_i32_149 = arith.constant 4 : i32
    %687 = vector.broadcast %c4_i32_149 : i32 to vector<8x4x1xi32>
    %688 = arith.cmpi eq, %602, %687 : vector<8x4x1xi32>
    %689 = vector.shape_cast %688 : vector<8x4x1xi1> to vector<8x4x1xi1>
    %690 = vector.broadcast %689 : vector<8x4x1xi1> to vector<8x4x32xi1>
    %691 = vector.shape_cast %679 : vector<1x4x32xf32> to vector<1x4x32xf32>
    %692 = vector.broadcast %691 : vector<1x4x32xf32> to vector<8x4x32xf32>
    %693 = arith.select %690, %692, %676 : vector<8x4x32xi1>, vector<8x4x32xf32>
    %694 = vector.extract_strided_slice %589 {offsets = [5, 0, 0], sizes = [1, 4, 32], strides = [1, 1, 1]} : vector<8x4x32xf32> to vector<1x4x32xf32>
    %695 = vector.shape_cast %694 : vector<1x4x32xf32> to vector<4x32xf32>
    %696 = vector.shape_cast %695 : vector<4x32xf32> to vector<1x4x32xf32>
    %c5_i32_150 = arith.constant 5 : i32
    %697 = vector.broadcast %c5_i32_150 : i32 to vector<8x4x1xi32>
    %698 = arith.cmpi eq, %598, %697 : vector<8x4x1xi32>
    %699 = vector.shape_cast %698 : vector<8x4x1xi1> to vector<8x4x1xi1>
    %700 = vector.broadcast %699 : vector<8x4x1xi1> to vector<8x4x32xi1>
    %701 = vector.shape_cast %696 : vector<1x4x32xf32> to vector<1x4x32xf32>
    %702 = vector.broadcast %701 : vector<1x4x32xf32> to vector<8x4x32xf32>
    %703 = arith.select %700, %702, %686 : vector<8x4x32xi1>, vector<8x4x32xf32>
    %c5_i32_151 = arith.constant 5 : i32
    %704 = vector.broadcast %c5_i32_151 : i32 to vector<8x4x1xi32>
    %705 = arith.cmpi eq, %602, %704 : vector<8x4x1xi32>
    %706 = vector.shape_cast %705 : vector<8x4x1xi1> to vector<8x4x1xi1>
    %707 = vector.broadcast %706 : vector<8x4x1xi1> to vector<8x4x32xi1>
    %708 = vector.shape_cast %696 : vector<1x4x32xf32> to vector<1x4x32xf32>
    %709 = vector.broadcast %708 : vector<1x4x32xf32> to vector<8x4x32xf32>
    %710 = arith.select %707, %709, %693 : vector<8x4x32xi1>, vector<8x4x32xf32>
    %711 = vector.extract_strided_slice %589 {offsets = [6, 0, 0], sizes = [1, 4, 32], strides = [1, 1, 1]} : vector<8x4x32xf32> to vector<1x4x32xf32>
    %712 = vector.shape_cast %711 : vector<1x4x32xf32> to vector<4x32xf32>
    %713 = vector.shape_cast %712 : vector<4x32xf32> to vector<1x4x32xf32>
    %c6_i32_152 = arith.constant 6 : i32
    %714 = vector.broadcast %c6_i32_152 : i32 to vector<8x4x1xi32>
    %715 = arith.cmpi eq, %598, %714 : vector<8x4x1xi32>
    %716 = vector.shape_cast %715 : vector<8x4x1xi1> to vector<8x4x1xi1>
    %717 = vector.broadcast %716 : vector<8x4x1xi1> to vector<8x4x32xi1>
    %718 = vector.shape_cast %713 : vector<1x4x32xf32> to vector<1x4x32xf32>
    %719 = vector.broadcast %718 : vector<1x4x32xf32> to vector<8x4x32xf32>
    %720 = arith.select %717, %719, %703 : vector<8x4x32xi1>, vector<8x4x32xf32>
    %c6_i32_153 = arith.constant 6 : i32
    %721 = vector.broadcast %c6_i32_153 : i32 to vector<8x4x1xi32>
    %722 = arith.cmpi eq, %602, %721 : vector<8x4x1xi32>
    %723 = vector.shape_cast %722 : vector<8x4x1xi1> to vector<8x4x1xi1>
    %724 = vector.broadcast %723 : vector<8x4x1xi1> to vector<8x4x32xi1>
    %725 = vector.shape_cast %713 : vector<1x4x32xf32> to vector<1x4x32xf32>
    %726 = vector.broadcast %725 : vector<1x4x32xf32> to vector<8x4x32xf32>
    %727 = arith.select %724, %726, %710 : vector<8x4x32xi1>, vector<8x4x32xf32>
    %728 = vector.extract_strided_slice %589 {offsets = [7, 0, 0], sizes = [1, 4, 32], strides = [1, 1, 1]} : vector<8x4x32xf32> to vector<1x4x32xf32>
    %729 = vector.shape_cast %728 : vector<1x4x32xf32> to vector<4x32xf32>
    %730 = vector.shape_cast %729 : vector<4x32xf32> to vector<1x4x32xf32>
    %c7_i32_154 = arith.constant 7 : i32
    %731 = vector.broadcast %c7_i32_154 : i32 to vector<8x4x1xi32>
    %732 = arith.cmpi eq, %598, %731 : vector<8x4x1xi32>
    %733 = vector.shape_cast %732 : vector<8x4x1xi1> to vector<8x4x1xi1>
    %734 = vector.broadcast %733 : vector<8x4x1xi1> to vector<8x4x32xi1>
    %735 = vector.shape_cast %730 : vector<1x4x32xf32> to vector<1x4x32xf32>
    %736 = vector.broadcast %735 : vector<1x4x32xf32> to vector<8x4x32xf32>
    %737 = arith.select %734, %736, %720 : vector<8x4x32xi1>, vector<8x4x32xf32>
    %c7_i32_155 = arith.constant 7 : i32
    %738 = vector.broadcast %c7_i32_155 : i32 to vector<8x4x1xi32>
    %739 = arith.cmpi eq, %602, %738 : vector<8x4x1xi32>
    %740 = vector.shape_cast %739 : vector<8x4x1xi1> to vector<8x4x1xi1>
    %741 = vector.broadcast %740 : vector<8x4x1xi1> to vector<8x4x32xi1>
    %742 = vector.shape_cast %730 : vector<1x4x32xf32> to vector<1x4x32xf32>
    %743 = vector.broadcast %742 : vector<1x4x32xf32> to vector<8x4x32xf32>
    %744 = arith.select %741, %743, %727 : vector<8x4x32xi1>, vector<8x4x32xf32>
    %c0_156 = arith.constant 0 : index
    %c0_157 = arith.constant 0 : index
    %c0_158 = arith.constant 0 : index
    %745 = vector.load %arg9[%c0_156, %c0_157, %c0_158] : memref<8x4x64xf32, #tpu.memory_space<vmem>>, vector<8x4x32xf32>
    tpu.vector_store %arg9[%c0_156, %c0_157, %c0_158], %588 {strides = array<i32>} : memref<8x4x64xf32, #tpu.memory_space<vmem>>, vector<8x4x32xf32>,
    %c0_159 = arith.constant 0 : index
    %c0_160 = arith.constant 0 : index
    %c32_161 = arith.constant 32 : index
    %746 = vector.load %arg9[%c0_159, %c0_160, %c32_161] : memref<8x4x64xf32, #tpu.memory_space<vmem>>, vector<8x4x32xf32>
    tpu.vector_store %arg9[%c0_159, %c0_160, %c32_161], %737 {strides = array<i32>} : memref<8x4x64xf32, #tpu.memory_space<vmem>>, vector<8x4x32xf32>,
    %cst_162 = arith.constant 0.000000e+00 : f32
    %747 = vector.shape_cast %606 : vector<8x4x1xi1> to vector<8x4x1xi1>
    %748 = vector.broadcast %747 : vector<8x4x1xi1> to vector<8x4x32xi1>
    %749 = vector.broadcast %cst_162 : f32 to vector<8x4x32xf32>
    %750 = arith.select %748, %588, %749 : vector<8x4x32xi1>, vector<8x4x32xf32>
    %c0_163 = arith.constant 0 : index
    %c0_164 = arith.constant 0 : index
    %c0_165 = arith.constant 0 : index
    %751 = vector.load %arg10[%c0_163, %c0_164, %c0_165] : memref<8x4x64xf32, #tpu.memory_space<vmem>>, vector<8x4x32xf32>
    tpu.vector_store %arg10[%c0_163, %c0_164, %c0_165], %750 {strides = array<i32>} : memref<8x4x64xf32, #tpu.memory_space<vmem>>, vector<8x4x32xf32>,
    %c0_166 = arith.constant 0 : index
    %c0_167 = arith.constant 0 : index
    %c32_168 = arith.constant 32 : index
    %752 = vector.load %arg10[%c0_166, %c0_167, %c32_168] : memref<8x4x64xf32, #tpu.memory_space<vmem>>, vector<8x4x32xf32>
    tpu.vector_store %arg10[%c0_166, %c0_167, %c32_168], %744 {strides = array<i32>} : memref<8x4x64xf32, #tpu.memory_space<vmem>>, vector<8x4x32xf32>,
    return
  }
}

</mosaic_0001>

<llo_original>
// kernel: bilstm_forward.3
$region0: #{bilstm_forward.3}
  #allocation0 [shape = 'u32[]', space=smem, size = 0x4, offset = 0x4, fixed_abs, tag = 'smem constant byte address 0x4 - core index']
  #allocation1 [shape = 'u32[72,128]{1,0:T(1,128)}', space=vmem, size = 0x9000, scoped, tag = 'internal scratch']
  #allocation2 [shape = 'f32[32,64]{1,0:T(8,128)}', space=vmem, size = 0x4000, scoped, tag = 'scratch operand']
  %s0 = inlined_call_operand.vmem [shape: f32[32,64], index: 0, kind: input, shape index: {}]
  %s1 = inlined_call_operand.vmem [shape: bf16[64,64], index: 1, kind: input, shape index: {}]
  %s2 = inlined_call_operand.vmem [shape: f32[1,64], index: 2, kind: input, shape index: {}]
  %s3 = inlined_call_operand.hbm [shape: f32[32,64], index: 3, kind: output, shape index: {}]
  %s4 = sld [smem:[#allocation0]]
  $region30: #{bilstm_forward.3} parent=0
    _
  %s6 = ssub.s32 1, %s4
  %s7 = scalar_select 0, %s6, %s4
  $region1: #{bilstm_forward.3} parent=0
    #allocation3 [shape = 'u8[16384]{0}', space=vmem, size = 0x4000, scoped, tag = 'output window, operand 0, single buffered']
    #allocation4 [shape = 's32[1]{0}', space=sflag, size = 0x4, scoped, tag = 'scoped memory for bilstm_forward.3']
    %8 = vsyncpa [#allocation4], 0
    // Predicated region
    $region2: #{bilstm_forward.3} parent=1 // pred_check
      _
    $region3: #{bilstm_forward.3} parent=1 // pred_check_branch
      %10 = sbr.rel (0) target = $region5
    $region4: #{bilstm_forward.3} parent=1 // pred_region
      _
    $region5: #{bilstm_forward.3} parent=1 // pred_fallthru
      _
    // Predicated region
    $region6: #{bilstm_forward.3} parent=1 // pred_check
      _
    $region7: #{bilstm_forward.3} parent=1 // pred_check_branch
      %12 = sbr.rel (0) target = $region9
    $region8: #{bilstm_forward.3} parent=1 // pred_region
      _
    $region9: #{bilstm_forward.3} parent=1 // pred_fallthru
      _
    // Predicated region
    $region10: #{bilstm_forward.3} parent=1 // pred_check
      _
    $region11: #{bilstm_forward.3} parent=1 // pred_check_branch
      %14 = sbr.rel (0) target = $region13
    $region12: #{bilstm_forward.3} parent=1 // pred_region
      _
    $region13: #{bilstm_forward.3} parent=1 // pred_fallthru
      _
    %p16 = scmp.eq.s32.totalorder 0, 0
    // Predicated region
    $region14: #{bilstm_forward.3} parent=1 // pred_check
      %p17 = pneg %p16
    $region15: #{bilstm_forward.3} parent=1 // pred_check_branch
      %19 = sbr.rel (%p17) target = $region17
    $region16: #{bilstm_forward.3} parent=1 // pred_region
      %vm20 = vcmask 523264
      %21 = vst.msk [vmem:[#allocation2] sm:$0xff] %vm20, 0.0
      %22 = vst.msk [vmem:[#allocation2 + $0x8] sm:$0xff] %vm20, 0.0
      %23 = vst.msk [vmem:[#allocation2 + $0x10] sm:$0xff] %vm20, 0.0
      %24 = vst.msk [vmem:[#allocation2 + $0x18] sm:$0xff] %vm20, 0.0
    $region17: #{bilstm_forward.3} parent=1 // pred_fallthru
      _
    %v25 = vld [vmem:[#allocation2] sm:$0xff]
    %v26 = vld [vmem:[#allocation2 + $0x8] sm:$0xff]
    %v27 = vld [vmem:[#allocation2 + $0x10] sm:$0xff]
    %v28 = vld [vmem:[#allocation2 + $0x18] sm:$0xff]
    %v29 = vld [vmem:[%s0] sm:$0xff]
    %v30 = vld [vmem:[%s0 + $0x8] sm:$0xff]
    %v31 = vld [vmem:[%s0 + $0x10] sm:$0xff]
    %v32 = vld [vmem:[%s0 + $0x18] sm:$0xff]
    %v33 = vpack.c.bf16 %v30, %v29
    %v34 = vpack.c.bf16 %v32, %v31
    %v35 = vld [vmem:[%s1] sm:$0xf]
    %v36 = vld [vmem:[%s1 + $0x4] sm:$0xf]
    %v37 = vld [vmem:[%s1 + $0x8] sm:$0xf]
    %v38 = vld [vmem:[%s1 + $0xc] sm:$0xf]
    %v39 = vld [vmem:[%s1 + $0x10] sm:$0xf]
    %v40 = vld [vmem:[%s1 + $0x14] sm:$0xf]
    %v41 = vld [vmem:[%s1 + $0x18] sm:$0xf]
    %v42 = vld [vmem:[%s1 + $0x1c] sm:$0xf]
    %v51 = vunpack.c.l.b16 %v35
    %v52 = vunpack.c.l.b16 %v36
    %v53 = vunpack.c.l.b16 %v37
    %v54 = vunpack.c.l.b16 %v38
    %v55 = vunpack.c.l.b16 %v39
    %v56 = vunpack.c.l.b16 %v40
    %v57 = vunpack.c.l.b16 %v41
    %v58 = vunpack.c.l.b16 %v42
    %v59 = vpack.c.b16 %v52, %v51
    %v60 = vpack.c.b16 %v54, %v53
    %v61 = vpack.c.b16 %v56, %v55
    %v62 = vpack.c.b16 %v58, %v57
    %vm67 = vcmask 523264
    %v69 = vsel %vm67, %v33, 0
    %v72 = vsel %vm67, %v34, 0
    %74 = vmatpush.bf16.msra.mxu0 0
    %75 = vmatpush.bf16.msra.mxu0 0
    %76 = vmatpush.bf16.msra.mxu0 0
    %77 = vmatpush.bf16.msra.mxu0 0
    %78 = vmatpush.bf16.msra.mxu0 %v62
    %79 = vmatpush.bf16.msra.mxu0 %v61
    %80 = vmatpush.bf16.msra.mxu0 %v60
    %81 = vmatpush.bf16.msra.mxu0 %v59
    %82 = vmatmul.bf16.gmra.mxu0 %v69
    %v83 = vpop.f32.mrf.mxu0
    %v84 = vadd.f32 0.0, %v83
    %v85 = vpop.f32.mrf.mxu0
    %v86 = vadd.f32 0.0, %v85
    %87 = vmatmul.bf16.gmra.mxu0 %v72
    %v88 = vpop.f32.mrf.mxu0
    %v89 = vadd.f32 0.0, %v88
    %v90 = vpop.f32.mrf.mxu0
    %v91 = vadd.f32 0.0, %v90
    %92 = vdwg.mxu0
    %v93 = vadd.f32 %v25, %v84
    %v94 = vadd.f32 %v26, %v86
    %v95 = vadd.f32 %v27, %v89
    %v96 = vadd.f32 %v28, %v91
    %97 = vst.msk [vmem:[#allocation2] sm:$0xff] %vm67, %v93
    %98 = vst.msk [vmem:[#allocation2 + $0x8] sm:$0xff] %vm67, %v94
    %99 = vst.msk [vmem:[#allocation2 + $0x10] sm:$0xff] %vm67, %v95
    %100 = vst.msk [vmem:[#allocation2 + $0x18] sm:$0xff] %vm67, %v96
    // Predicated region
    $region18: #{bilstm_forward.3} parent=1 // pred_check
      %p101 = pneg %p16
    $region19: #{bilstm_forward.3} parent=1 // pred_check_branch
      %103 = sbr.rel (%p101) target = $region21
    $region20: #{bilstm_forward.3} parent=1 // pred_region
      %v104 = vld [vmem:[#allocation2] sm:$0xff]
      %v105 = vld [vmem:[#allocation2 + $0x8] sm:$0xff]
      %v106 = vld [vmem:[#allocation2 + $0x10] sm:$0xff]
      %v107 = vld [vmem:[#allocation2 + $0x18] sm:$0xff]
      %v108 = vld [vmem:[%s2] sm:$0x1]
      %v110 = vperm.slane %v108, 0
      %v112 = vadd.f32 %v104, %v110
      %v113 = vadd.f32 %v105, %v110
      %v114 = vadd.f32 %v106, %v110
      %v115 = vadd.f32 %v107, %v110
      %116 = vst.msk [vmem:[#allocation3] sm:$0xff] %vm67, %v112
      %117 = vst.msk [vmem:[#allocation3 + $0x8] sm:$0xff] %vm67, %v113
      %118 = vst.msk [vmem:[#allocation3 + $0x10] sm:$0xff] %vm67, %v114
      %119 = vst.msk [vmem:[#allocation3 + $0x18] sm:$0xff] %vm67, %v115
    $region21: #{bilstm_forward.3} parent=1 // pred_fallthru
      _
    // Predicated region
    $region22: #{bilstm_forward.3} parent=1 // pred_check
      _
    $region23: #{bilstm_forward.3} parent=1 // pred_check_branch
      %121 = sbr.rel (0) target = $region25
    $region24: #{bilstm_forward.3} parent=1 // pred_region
      %123 = vsyncadd [#allocation4], 0
      %s124 = sshll.u32 [#allocation3], 4
      %s125 = int_to_ptr.vmem [resolvable:$true] %s124
      %s126 = sshll.u32 %s3, 4
      %s127 = int_to_ptr.hbm [resolvable:$true] %s126
      %132 = dma.vmem_to_hbm [thread:$0]  %s125, 512, %s127, [#allocation4], 128, 128, 8
    $region25: #{bilstm_forward.3} parent=1 // pred_fallthru
      _
    // Predicated region
    $region26: #{bilstm_forward.3} parent=1 // pred_check
      _
    $region27: #{bilstm_forward.3} parent=1 // pred_check_branch
      %134 = sbr.rel (0) target = $region29
    $region28: #{bilstm_forward.3} parent=1 // pred_region
      %136 = dma.done [#allocation4], 512
    $region29: #{bilstm_forward.3} parent=1 // pred_fallthru
      _
    %137 = vsyncpa [#allocation4], 1

// kernel: bilstm_forward.2
$region0: #{bilstm_forward.2}
  #allocation0 [shape = 'u32[]', space=smem, size = 0x4, offset = 0x4, fixed_abs, tag = 'smem constant byte address 0x4 - core index']
  #allocation1 [shape = 'u32[72,128]{1,0:T(1,128)}', space=vmem, size = 0x9000, scoped, tag = 'internal scratch']
  #allocation2 [shape = 'f32[2,8,8,32]{3,2,1,0:T(8,128)}', space=vmem, size = 0x10000, scoped, tag = 'scratch operand']
  %s0 = inlined_call_operand.vmem [shape: f32[8,8,32], index: 0, kind: input, shape index: {}]
  %s1 = inlined_call_operand.vmem [shape: s32[8,1], index: 1, kind: input, shape index: {}]
  %s2 = inlined_call_operand.vmem [shape: bf16[32,128], index: 2, kind: input, shape index: {}]
  %s3 = inlined_call_operand.vmem [shape: bf16[32,128], index: 3, kind: input, shape index: {}]
  %s4 = inlined_call_operand.vmem [shape: f32[1,128], index: 4, kind: input, shape index: {}]
  %s5 = inlined_call_operand.vmem [shape: bf16[32,128], index: 5, kind: input, shape index: {}]
  %s6 = inlined_call_operand.vmem [shape: bf16[32,128], index: 6, kind: input, shape index: {}]
  %s7 = inlined_call_operand.vmem [shape: f32[1,128], index: 7, kind: input, shape index: {}]
  %s8 = inlined_call_operand.vmem [shape: f32[8,4,64], index: 8, kind: output, shape index: {0}]
  %s9 = inlined_call_operand.vmem [shape: f32[8,4,64], index: 9, kind: output, shape index: {1}]
  %s10 = inlined_call_operand.vmem [shape: f32[8,4,64], index: 10, kind: output, shape index: {2}]
  %11 = xla_tuple %s8, %s9, %s10
  %s12 = sld [smem:[#allocation0]]
  $region58: #{bilstm_forward.2} parent=0
    _
  %s14 = ssub.s32 1, %s12
  %s15 = scalar_select 0, %s14, %s12
  // Predicated region
  $region2: #{bilstm_forward.2} parent=0 // pred_check
    _
  $region3: #{bilstm_forward.2} parent=0 // pred_check_branch
    %17 = sbr.rel (0) target = $region5
  $region4: #{bilstm_forward.2} parent=0 // pred_region
    _
  $region5: #{bilstm_forward.2} parent=0 // pred_fallthru
    _
  // Predicated region
  $region6: #{bilstm_forward.2} parent=0 // pred_check
    _
  $region7: #{bilstm_forward.2} parent=0 // pred_check_branch
    %19 = sbr.rel (0) target = $region9
  $region8: #{bilstm_forward.2} parent=0 // pred_region
    _
  $region9: #{bilstm_forward.2} parent=0 // pred_fallthru
    _
  // Predicated region
  $region10: #{bilstm_forward.2} parent=0 // pred_check
    _
  $region11: #{bilstm_forward.2} parent=0 // pred_check_branch
    %21 = sbr.rel (0) target = $region13
  $region12: #{bilstm_forward.2} parent=0 // pred_region
    _
  $region13: #{bilstm_forward.2} parent=0 // pred_fallthru
    _
  // Predicated region
  $region14: #{bilstm_forward.2} parent=0 // pred_check
    _
  $region15: #{bilstm_forward.2} parent=0 // pred_check_branch
    %23 = sbr.rel (0) target = $region17
  $region16: #{bilstm_forward.2} parent=0 // pred_region
    _
  $region17: #{bilstm_forward.2} parent=0 // pred_fallthru
    _
  // Predicated region
  $region18: #{bilstm_forward.2} parent=0 // pred_check
    _
  $region19: #{bilstm_forward.2} parent=0 // pred_check_branch
    %25 = sbr.rel (0) target = $region21
  $region20: #{bilstm_forward.2} parent=0 // pred_region
    _
  $region21: #{bilstm_forward.2} parent=0 // pred_fallthru
    _
  // Predicated region
  $region22: #{bilstm_forward.2} parent=0 // pred_check
    _
  $region23: #{bilstm_forward.2} parent=0 // pred_check_branch
    %27 = sbr.rel (0) target = $region25
  $region24: #{bilstm_forward.2} parent=0 // pred_region
    _
  $region25: #{bilstm_forward.2} parent=0 // pred_fallthru
    _
  // Predicated region
  $region26: #{bilstm_forward.2} parent=0 // pred_check
    _
  $region27: #{bilstm_forward.2} parent=0 // pred_check_branch
    %29 = sbr.rel (0) target = $region29
  $region28: #{bilstm_forward.2} parent=0 // pred_region
    _
  $region29: #{bilstm_forward.2} parent=0 // pred_fallthru
    _
  // Predicated region
  $region30: #{bilstm_forward.2} parent=0 // pred_check
    _
  $region31: #{bilstm_forward.2} parent=0 // pred_check_branch
    %31 = sbr.rel (0) target = $region33
  $region32: #{bilstm_forward.2} parent=0 // pred_region
    _
  $region33: #{bilstm_forward.2} parent=0 // pred_fallthru
    _
  %v33 = vld [vmem:[%s1] sm:$0xff]
  %v34 = vlaneseq
  %v35 = vand.u32 %v34, 127
  %vm36 = vcmp.ge.s32.totalorder %v35, 64
  %vm37 = vcmp.lt.s32.totalorder %v35, 96
  %vm38 = vmand %vm36, %vm37
  %v39 = vsel %vm38, 1.0, 0.5
  %v40 = vsel %vm38, 0.0, 0.5
  %v41 = vld [vmem:[%s2] sm:$0xf]
  %v42 = vld [vmem:[%s2 + $0x4] sm:$0xf]
  %v43 = vld [vmem:[%s2 + $0x8] sm:$0xf]
  %v44 = vld [vmem:[%s2 + $0xc] sm:$0xf]
  %v45 = vld [vmem:[%s3] sm:$0xf]
  %v46 = vld [vmem:[%s3 + $0x4] sm:$0xf]
  %v47 = vld [vmem:[%s3 + $0x8] sm:$0xf]
  %v48 = vld [vmem:[%s3 + $0xc] sm:$0xf]
  %v49 = vld [vmem:[%s5] sm:$0xf]
  %v50 = vld [vmem:[%s5 + $0x4] sm:$0xf]
  %v51 = vld [vmem:[%s5 + $0x8] sm:$0xf]
  %v52 = vld [vmem:[%s5 + $0xc] sm:$0xf]
  %v53 = vld [vmem:[%s6] sm:$0xf]
  %v54 = vld [vmem:[%s6 + $0x4] sm:$0xf]
  %v55 = vld [vmem:[%s6 + $0x8] sm:$0xf]
  %v56 = vld [vmem:[%s6 + $0xc] sm:$0xf]
  %v57 = vld [vmem:[%s0] sm:$0xff]
  %v58 = vld [vmem:[%s0 + $0x8] sm:$0xff]
  %v59 = vld [vmem:[%s0 + $0x10] sm:$0xff]
  %v60 = vld [vmem:[%s0 + $0x18] sm:$0xff]
  %v61 = vld [vmem:[%s0 + $0x20] sm:$0xff]
  %v62 = vld [vmem:[%s0 + $0x28] sm:$0xff]
  %v63 = vld [vmem:[%s0 + $0x30] sm:$0xff]
  %v64 = vld [vmem:[%s0 + $0x38] sm:$0xff]
  %v65 = vpack.c.bf16 %v58, %v57
  %v66 = vpack.c.bf16 %v60, %v59
  %v67 = vpack.c.bf16 %v62, %v61
  %v68 = vpack.c.bf16 %v64, %v63
  %v69 = vld [vmem:[%s4] sm:$0x1]
  %v71 = vperm.slane %v69, 0
  %v77 = vunpack.c.l.b16 %v41
  %v78 = vunpack.c.l.b16 %v42
  %v79 = vunpack.c.l.b16 %v43
  %v80 = vunpack.c.l.b16 %v44
  %v81 = vpack.c.b16 %v78, %v77
  %v82 = vpack.c.b16 %v80, %v79
  %vm85 = vcmask 261120
  %v87 = vsel %vm85, %v65, 0
  %v90 = vsel %vm85, %v66, 0
  %v93 = vsel %vm85, %v67, 0
  %v96 = vsel %vm85, %v68, 0
  %98 = vmatpush.bf16.msra.mxu0 0
  %99 = vmatpush.bf16.msra.mxu0 0
  %100 = vmatpush.bf16.msra.mxu0 0
  %101 = vmatpush.bf16.msra.mxu0 0
  %102 = vmatpush.bf16.msra.mxu0 0
  %103 = vmatpush.bf16.msra.mxu0 0
  %104 = vmatpush.bf16.msra.mxu0 %v82
  %105 = vmatpush.bf16.msra.mxu0 %v81
  %106 = vmatmul.bf16.gmra.mxu0 %v87
  %v107 = vpop.f32.mrf.mxu0
  %v108 = vadd.f32 %v71, %v107
  %v109 = vpop.f32.mrf.mxu0
  %v110 = vadd.f32 %v71, %v109
  %111 = vmatmul.bf16.gmra.mxu0 %v90
  %v112 = vpop.f32.mrf.mxu0
  %v113 = vadd.f32 %v71, %v112
  %v114 = vpop.f32.mrf.mxu0
  %v115 = vadd.f32 %v71, %v114
  %116 = vmatmul.bf16.gmra.mxu0 %v93
  %v117 = vpop.f32.mrf.mxu0
  %v118 = vadd.f32 %v71, %v117
  %v119 = vpop.f32.mrf.mxu0
  %v120 = vadd.f32 %v71, %v119
  %121 = vmatmul.bf16.gmra.mxu0 %v96
  %v122 = vpop.f32.mrf.mxu0
  %v123 = vadd.f32 %v71, %v122
  %v124 = vpop.f32.mrf.mxu0
  %v125 = vadd.f32 %v71, %v124
  %126 = vdwg.mxu0
  %v131 = vunpack.c.l.b16 %v45
  %v132 = vunpack.c.l.b16 %v46
  %v133 = vunpack.c.l.b16 %v47
  %v134 = vunpack.c.l.b16 %v48
  %v135 = vpack.c.b16 %v132, %v131
  %v136 = vpack.c.b16 %v134, %v133
  %v140 = vsel %vm85, 0, 0
  %142 = vmatpush.bf16.msra.mxu0 0
  %143 = vmatpush.bf16.msra.mxu0 0
  %144 = vmatpush.bf16.msra.mxu0 0
  %145 = vmatpush.bf16.msra.mxu0 0
  %146 = vmatpush.bf16.msra.mxu0 0
  %147 = vmatpush.bf16.msra.mxu0 0
  %148 = vmatpush.bf16.msra.mxu0 %v136
  %149 = vmatpush.bf16.msra.mxu0 %v135
  %150 = vmatmul.bf16.gmra.mxu0 %v140
  %v151 = vpop.f32.mrf.mxu0
  %v152 = vadd.f32 0.0, %v151
  %v153 = vpop.f32.mrf.mxu0
  %154 = vdwg.mxu0
  %v155 = vadd.f32 %v108, %v152
  %v156 = vmul.f32 %v39, %v155
  %v157 = vtanh.pop %v156
  %v158 = vmul.f32 %v39, %v157
  %v159 = vadd.f32 %v158, %v40
  %v160 = vmul.f32 %v159, 0.0
  %162 = vrot.lane.b32.xlu0 %v159, 64
  %v163 = vpop.permute.xlu0 %162
  %v165 = vmul.f32 %v159, %v163
  %167 = vrot.lane.b32.xlu0 %v165, 32
  %v168 = vpop.permute.xlu0 %167
  %v170 = vadd.f32 %v160, %v168
  %v171 = vtanh.pop %v170
  %173 = vrot.lane.b32.xlu0 %v171, 64
  %v174 = vpop.permute.xlu0 %173
  %v176 = vmul.f32 %v159, %v174
  %vm177 = vcmp.gt.s32.totalorder %v33, 0
  %v178 = vsel %vm177, 1, 0
  %179 = vset.pattern.permute.xlu0 0
  %180 = vperm.xlu0 %179, %v178
  %v181 = vpop.permute.xlu0 %180
  %vm182 = vcmp.eq.s32.totalorder %v181, 1
  %v183 = vsel %vm182, %v176, 0.0
  %v184 = vsel %vm182, %v170, 0.0
  %186 = vrot.lane.b32.xlu0 %v183, 32
  %v187 = vpop.permute.xlu0 %186
  %189 = vst.msk [vmem:[#allocation2] sm:$0xff] %vm85, %v187
  %v190 = vpack.c.bf16 %v183, %v183
  %192 = vrot.lane.b32.xlu0 %v190, 32
  %v193 = vpop.permute.xlu0 %192
  %v195 = vsel %vm85, %v193, 0
  %197 = vmatpush.bf16.msra.mxu0 0
  %198 = vmatpush.bf16.msra.mxu0 0
  %199 = vmatpush.bf16.msra.mxu0 0
  %200 = vmatpush.bf16.msra.mxu0 0
  %201 = vmatpush.bf16.msra.mxu0 0
  %202 = vmatpush.bf16.msra.mxu0 0
  %203 = vmatpush.bf16.msra.mxu0 %v136
  %204 = vmatpush.bf16.msra.mxu0 %v135
  %205 = vmatmul.bf16.gmra.mxu0 %v195
  %v206 = vpop.f32.mrf.mxu0
  %v207 = vadd.f32 0.0, %v206
  %v208 = vpop.f32.mrf.mxu0
  %209 = vdwg.mxu0
  %v210 = vadd.f32 %v110, %v207
  %v211 = vmul.f32 %v39, %v210
  %v212 = vtanh.pop %v211
  %v213 = vmul.f32 %v39, %v212
  %v214 = vadd.f32 %v213, %v40
  %v215 = vmul.f32 %v214, %v184
  %217 = vrot.lane.b32.xlu0 %v214, 64
  %v218 = vpop.permute.xlu0 %217
  %v220 = vmul.f32 %v214, %v218
  %222 = vrot.lane.b32.xlu0 %v220, 32
  %v223 = vpop.permute.xlu0 %222
  %v225 = vadd.f32 %v215, %v223
  %v226 = vtanh.pop %v225
  %228 = vrot.lane.b32.xlu0 %v226, 64
  %v229 = vpop.permute.xlu0 %228
  %v231 = vmul.f32 %v214, %v229
  %vm232 = vcmp.gt.s32.totalorder %v33, 1
  %v233 = vsel %vm232, 1, 0
  %234 = vset.pattern.permute.xlu0 0
  %235 = vperm.xlu0 %234, %v233
  %v236 = vpop.permute.xlu0 %235
  %vm237 = vcmp.eq.s32.totalorder %v236, 1
  %v238 = vsel %vm237, %v231, %v183
  %v239 = vsel %vm237, %v225, %v184
  %v240 = vsel %vm237, %v231, 0.0
  %242 = vrot.lane.b32.xlu0 %v240, 32
  %v243 = vpop.permute.xlu0 %242
  %s245 = scalar_lea.vmem [#allocation2], 8
  %246 = vst.msk [vmem:[%s245] sm:$0xff] %vm85, %v243
  %v247 = vpack.c.bf16 %v238, %v238
  %249 = vrot.lane.b32.xlu0 %v247, 32
  %v250 = vpop.permute.xlu0 %249
  %v252 = vsel %vm85, %v250, 0
  %254 = vmatpush.bf16.msra.mxu0 0
  %255 = vmatpush.bf16.msra.mxu0 0
  %256 = vmatpush.bf16.msra.mxu0 0
  %257 = vmatpush.bf16.msra.mxu0 0
  %258 = vmatpush.bf16.msra.mxu0 0
  %259 = vmatpush.bf16.msra.mxu0 0
  %260 = vmatpush.bf16.msra.mxu0 %v136
  %261 = vmatpush.bf16.msra.mxu0 %v135
  %262 = vmatmul.bf16.gmra.mxu0 %v252
  %v263 = vpop.f32.mrf.mxu0
  %v264 = vadd.f32 0.0, %v263
  %v265 = vpop.f32.mrf.mxu0
  %266 = vdwg.mxu0
  %v267 = vadd.f32 %v113, %v264
  %v268 = vmul.f32 %v39, %v267
  %v269 = vtanh.pop %v268
  %v270 = vmul.f32 %v39, %v269
  %v271 = vadd.f32 %v270, %v40
  %v272 = vmul.f32 %v271, %v239
  %274 = vrot.lane.b32.xlu0 %v271, 64
  %v275 = vpop.permute.xlu0 %274
  %v277 = vmul.f32 %v271, %v275
  %279 = vrot.lane.b32.xlu0 %v277, 32
  %v280 = vpop.permute.xlu0 %279
  %v282 = vadd.f32 %v272, %v280
  %v283 = vtanh.pop %v282
  %285 = vrot.lane.b32.xlu0 %v283, 64
  %v286 = vpop.permute.xlu0 %285
  %v288 = vmul.f32 %v271, %v286
  %vm289 = vcmp.gt.s32.totalorder %v33, 2
  %v290 = vsel %vm289, 1, 0
  %291 = vset.pattern.permute.xlu0 0
  %292 = vperm.xlu0 %291, %v290
  %v293 = vpop.permute.xlu0 %292
  %vm294 = vcmp.eq.s32.totalorder %v293, 1
  %v295 = vsel %vm294, %v288, %v238
  %v296 = vsel %vm294, %v282, %v239
  %v297 = vsel %vm294, %v288, 0.0
  %299 = vrot.lane.b32.xlu0 %v297, 32
  %v300 = vpop.permute.xlu0 %299
  %s302 = scalar_lea.vmem [#allocation2], 16
  %303 = vst.msk [vmem:[%s302] sm:$0xff] %vm85, %v300
  %v304 = vpack.c.bf16 %v295, %v295
  %306 = vrot.lane.b32.xlu0 %v304, 32
  %v307 = vpop.permute.xlu0 %306
  %v309 = vsel %vm85, %v307, 0
  %311 = vmatpush.bf16.msra.mxu0 0
  %312 = vmatpush.bf16.msra.mxu0 0
  %313 = vmatpush.bf16.msra.mxu0 0
  %314 = vmatpush.bf16.msra.mxu0 0
  %315 = vmatpush.bf16.msra.mxu0 0
  %316 = vmatpush.bf16.msra.mxu0 0
  %317 = vmatpush.bf16.msra.mxu0 %v136
  %318 = vmatpush.bf16.msra.mxu0 %v135
  %319 = vmatmul.bf16.gmra.mxu0 %v309
  %v320 = vpop.f32.mrf.mxu0
  %v321 = vadd.f32 0.0, %v320
  %v322 = vpop.f32.mrf.mxu0
  %323 = vdwg.mxu0
  %v324 = vadd.f32 %v115, %v321
  %v325 = vmul.f32 %v39, %v324
  %v326 = vtanh.pop %v325
  %v327 = vmul.f32 %v39, %v326
  %v328 = vadd.f32 %v327, %v40
  %v329 = vmul.f32 %v328, %v296
  %331 = vrot.lane.b32.xlu0 %v328, 64
  %v332 = vpop.permute.xlu0 %331
  %v334 = vmul.f32 %v328, %v332
  %336 = vrot.lane.b32.xlu0 %v334, 32
  %v337 = vpop.permute.xlu0 %336
  %v339 = vadd.f32 %v329, %v337
  %v340 = vtanh.pop %v339
  %342 = vrot.lane.b32.xlu0 %v340, 64
  %v343 = vpop.permute.xlu0 %342
  %v345 = vmul.f32 %v328, %v343
  %vm346 = vcmp.gt.s32.totalorder %v33, 3
  %v347 = vsel %vm346, 1, 0
  %348 = vset.pattern.permute.xlu0 0
  %349 = vperm.xlu0 %348, %v347
  %v350 = vpop.permute.xlu0 %349
  %vm351 = vcmp.eq.s32.totalorder %v350, 1
  %v352 = vsel %vm351, %v345, %v295
  %v353 = vsel %vm351, %v339, %v296
  %v354 = vsel %vm351, %v345, 0.0
  %356 = vrot.lane.b32.xlu0 %v354, 32
  %v357 = vpop.permute.xlu0 %356
  %s359 = scalar_lea.vmem [#allocation2], 24
  %360 = vst.msk [vmem:[%s359] sm:$0xff] %vm85, %v357
  %v361 = vpack.c.bf16 %v352, %v352
  %363 = vrot.lane.b32.xlu0 %v361, 32
  %v364 = vpop.permute.xlu0 %363
  %v366 = vsel %vm85, %v364, 0
  %368 = vmatpush.bf16.msra.mxu0 0
  %369 = vmatpush.bf16.msra.mxu0 0
  %370 = vmatpush.bf16.msra.mxu0 0
  %371 = vmatpush.bf16.msra.mxu0 0
  %372 = vmatpush.bf16.msra.mxu0 0
  %373 = vmatpush.bf16.msra.mxu0 0
  %374 = vmatpush.bf16.msra.mxu0 %v136
  %375 = vmatpush.bf16.msra.mxu0 %v135
  %376 = vmatmul.bf16.gmra.mxu0 %v366
  %v377 = vpop.f32.mrf.mxu0
  %v378 = vadd.f32 0.0, %v377
  %v379 = vpop.f32.mrf.mxu0
  %380 = vdwg.mxu0
  %v381 = vadd.f32 %v118, %v378
  %v382 = vmul.f32 %v39, %v381
  %v383 = vtanh.pop %v382
  %v384 = vmul.f32 %v39, %v383
  %v385 = vadd.f32 %v384, %v40
  %v386 = vmul.f32 %v385, %v353
  %388 = vrot.lane.b32.xlu0 %v385, 64
  %v389 = vpop.permute.xlu0 %388
  %v391 = vmul.f32 %v385, %v389
  %393 = vrot.lane.b32.xlu0 %v391, 32
  %v394 = vpop.permute.xlu0 %393
  %v396 = vadd.f32 %v386, %v394
  %v397 = vtanh.pop %v396
  %399 = vrot.lane.b32.xlu0 %v397, 64
  %v400 = vpop.permute.xlu0 %399
  %v402 = vmul.f32 %v385, %v400
  %vm403 = vcmp.gt.s32.totalorder %v33, 4
  %v404 = vsel %vm403, 1, 0
  %405 = vset.pattern.permute.xlu0 0
  %406 = vperm.xlu0 %405, %v404
  %v407 = vpop.permute.xlu0 %406
  %vm408 = vcmp.eq.s32.totalorder %v407, 1
  %v409 = vsel %vm408, %v402, %v352
  %v410 = vsel %vm408, %v396, %v353
  %v411 = vsel %vm408, %v402, 0.0
  %413 = vrot.lane.b32.xlu0 %v411, 32
  %v414 = vpop.permute.xlu0 %413
  %s416 = scalar_lea.vmem [#allocation2], 32
  %417 = vst.msk [vmem:[%s416] sm:$0xff] %vm85, %v414
  %v418 = vpack.c.bf16 %v409, %v409
  %420 = vrot.lane.b32.xlu0 %v418, 32
  %v421 = vpop.permute.xlu0 %420
  %v423 = vsel %vm85, %v421, 0
  %425 = vmatpush.bf16.msra.mxu0 0
  %426 = vmatpush.bf16.msra.mxu0 0
  %427 = vmatpush.bf16.msra.mxu0 0
  %428 = vmatpush.bf16.msra.mxu0 0
  %429 = vmatpush.bf16.msra.mxu0 0
  %430 = vmatpush.bf16.msra.mxu0 0
  %431 = vmatpush.bf16.msra.mxu0 %v136
  %432 = vmatpush.bf16.msra.mxu0 %v135
  %433 = vmatmul.bf16.gmra.mxu0 %v423
  %v434 = vpop.f32.mrf.mxu0
  %v435 = vadd.f32 0.0, %v434
  %v436 = vpop.f32.mrf.mxu0
  %437 = vdwg.mxu0
  %v438 = vadd.f32 %v120, %v435
  %v439 = vmul.f32 %v39, %v438
  %v440 = vtanh.pop %v439
  %v441 = vmul.f32 %v39, %v440
  %v442 = vadd.f32 %v441, %v40
  %v443 = vmul.f32 %v442, %v410
  %445 = vrot.lane.b32.xlu0 %v442, 64
  %v446 = vpop.permute.xlu0 %445
  %v448 = vmul.f32 %v442, %v446
  %450 = vrot.lane.b32.xlu0 %v448, 32
  %v451 = vpop.permute.xlu0 %450
  %v453 = vadd.f32 %v443, %v451
  %v454 = vtanh.pop %v453
  %456 = vrot.lane.b32.xlu0 %v454, 64
  %v457 = vpop.permute.xlu0 %456
  %v459 = vmul.f32 %v442, %v457
  %vm460 = vcmp.gt.s32.totalorder %v33, 5
  %v461 = vsel %vm460, 1, 0
  %462 = vset.pattern.permute.xlu0 0
  %463 = vperm.xlu0 %462, %v461
  %v464 = vpop.permute.xlu0 %463
  %vm465 = vcmp.eq.s32.totalorder %v464, 1
  %v466 = vsel %vm465, %v459, %v409
  %v467 = vsel %vm465, %v453, %v410
  %v468 = vsel %vm465, %v459, 0.0
  %470 = vrot.lane.b32.xlu0 %v468, 32
  %v471 = vpop.permute.xlu0 %470
  %s473 = scalar_lea.vmem [#allocation2], 40
  %474 = vst.msk [vmem:[%s473] sm:$0xff] %vm85, %v471
  %v475 = vpack.c.bf16 %v466, %v466
  %477 = vrot.lane.b32.xlu0 %v475, 32
  %v478 = vpop.permute.xlu0 %477
  %v480 = vsel %vm85, %v478, 0
  %482 = vmatpush.bf16.msra.mxu0 0
  %483 = vmatpush.bf16.msra.mxu0 0
  %484 = vmatpush.bf16.msra.mxu0 0
  %485 = vmatpush.bf16.msra.mxu0 0
  %486 = vmatpush.bf16.msra.mxu0 0
  %487 = vmatpush.bf16.msra.mxu0 0
  %488 = vmatpush.bf16.msra.mxu0 %v136
  %489 = vmatpush.bf16.msra.mxu0 %v135
  %490 = vmatmul.bf16.gmra.mxu0 %v480
  %v491 = vpop.f32.mrf.mxu0
  %v492 = vadd.f32 0.0, %v491
  %v493 = vpop.f32.mrf.mxu0
  %494 = vdwg.mxu0
  %v495 = vadd.f32 %v123, %v492
  %v496 = vmul.f32 %v39, %v495
  %v497 = vtanh.pop %v496
  %v498 = vmul.f32 %v39, %v497
  %v499 = vadd.f32 %v498, %v40
  %v500 = vmul.f32 %v499, %v467
  %502 = vrot.lane.b32.xlu0 %v499, 64
  %v503 = vpop.permute.xlu0 %502
  %v505 = vmul.f32 %v499, %v503
  %507 = vrot.lane.b32.xlu0 %v505, 32
  %v508 = vpop.permute.xlu0 %507
  %v510 = vadd.f32 %v500, %v508
  %v511 = vtanh.pop %v510
  %513 = vrot.lane.b32.xlu0 %v511, 64
  %v514 = vpop.permute.xlu0 %513
  %v516 = vmul.f32 %v499, %v514
  %vm517 = vcmp.gt.s32.totalorder %v33, 6
  %v518 = vsel %vm517, 1, 0
  %519 = vset.pattern.permute.xlu0 0
  %520 = vperm.xlu0 %519, %v518
  %v521 = vpop.permute.xlu0 %520
  %vm522 = vcmp.eq.s32.totalorder %v521, 1
  %v523 = vsel %vm522, %v516, %v466
  %v524 = vsel %vm522, %v510, %v467
  %v525 = vsel %vm522, %v516, 0.0
  %527 = vrot.lane.b32.xlu0 %v525, 32
  %v528 = vpop.permute.xlu0 %527
  %s530 = scalar_lea.vmem [#allocation2], 48
  %531 = vst.msk [vmem:[%s530] sm:$0xff] %vm85, %v528
  %v532 = vpack.c.bf16 %v523, %v523
  %534 = vrot.lane.b32.xlu0 %v532, 32
  %v535 = vpop.permute.xlu0 %534
  %v537 = vsel %vm85, %v535, 0
  %539 = vmatpush.bf16.msra.mxu0 0
  %540 = vmatpush.bf16.msra.mxu0 0
  %541 = vmatpush.bf16.msra.mxu0 0
  %542 = vmatpush.bf16.msra.mxu0 0
  %543 = vmatpush.bf16.msra.mxu0 0
  %544 = vmatpush.bf16.msra.mxu0 0
  %545 = vmatpush.bf16.msra.mxu0 %v136
  %546 = vmatpush.bf16.msra.mxu0 %v135
  %547 = vmatmul.bf16.gmra.mxu0 %v537
  %v548 = vpop.f32.mrf.mxu0
  %v549 = vadd.f32 0.0, %v548
  %v550 = vpop.f32.mrf.mxu0
  %551 = vdwg.mxu0
  %v552 = vadd.f32 %v125, %v549
  %v553 = vmul.f32 %v39, %v552
  %v554 = vtanh.pop %v553
  %v555 = vmul.f32 %v39, %v554
  %v556 = vadd.f32 %v555, %v40
  %v557 = vmul.f32 %v556, %v524
  %559 = vrot.lane.b32.xlu0 %v556, 64
  %v560 = vpop.permute.xlu0 %559
  %v562 = vmul.f32 %v556, %v560
  %564 = vrot.lane.b32.xlu0 %v562, 32
  %v565 = vpop.permute.xlu0 %564
  %v567 = vadd.f32 %v557, %v565
  %v568 = vtanh.pop %v567
  %570 = vrot.lane.b32.xlu0 %v568, 64
  %v571 = vpop.permute.xlu0 %570
  %v573 = vmul.f32 %v556, %v571
  %vm574 = vcmp.gt.s32.totalorder %v33, 7
  %v575 = vsel %vm574, 1, 0
  %576 = vset.pattern.permute.xlu0 0
  %577 = vperm.xlu0 %576, %v575
  %v578 = vpop.permute.xlu0 %577
  %vm579 = vcmp.eq.s32.totalorder %v578, 1
  %v580 = vsel %vm579, %v573, 0.0
  %582 = vrot.lane.b32.xlu0 %v580, 32
  %v583 = vpop.permute.xlu0 %582
  %s585 = scalar_lea.vmem [#allocation2], 56
  %586 = vst.msk [vmem:[%s585] sm:$0xff] %vm85, %v583
  %v587 = vld [vmem:[#allocation2] sm:$0xff]
  %v588 = vld [vmem:[#allocation2 + $0x8] sm:$0xff]
  %v589 = vld [vmem:[#allocation2 + $0x10] sm:$0xff]
  %v590 = vld [vmem:[#allocation2 + $0x18] sm:$0xff]
  %v591 = vld [vmem:[#allocation2 + $0x20] sm:$0xff]
  %v592 = vld [vmem:[#allocation2 + $0x28] sm:$0xff]
  %v593 = vld [vmem:[#allocation2 + $0x30] sm:$0xff]
  %v594 = vld [vmem:[#allocation2 + $0x38] sm:$0xff]
  %v595 = vpack.c.bf16 %v588, %v587
  %v596 = vpack.c.bf16 %v590, %v589
  %v597 = vpack.c.bf16 %v592, %v591
  %v598 = vpack.c.bf16 %v594, %v593
  %v599 = vld [vmem:[%s7] sm:$0x1]
  %v601 = vperm.slane %v599, 0
  %v607 = vunpack.c.l.b16 %v49
  %v608 = vunpack.c.l.b16 %v50
  %v609 = vunpack.c.l.b16 %v51
  %v610 = vunpack.c.l.b16 %v52
  %v611 = vpack.c.b16 %v608, %v607
  %v612 = vpack.c.b16 %v610, %v609
  %v616 = vsel %vm85, %v595, 0
  %v619 = vsel %vm85, %v596, 0
  %v622 = vsel %vm85, %v597, 0
  %v625 = vsel %vm85, %v598, 0
  %627 = vmatpush.bf16.msra.mxu0 0
  %628 = vmatpush.bf16.msra.mxu0 0
  %629 = vmatpush.bf16.msra.mxu0 0
  %630 = vmatpush.bf16.msra.mxu0 0
  %631 = vmatpush.bf16.msra.mxu0 0
  %632 = vmatpush.bf16.msra.mxu0 0
  %633 = vmatpush.bf16.msra.mxu0 %v612
  %634 = vmatpush.bf16.msra.mxu0 %v611
  %635 = vmatmul.bf16.gmra.mxu0 %v616
  %v636 = vpop.f32.mrf.mxu0
  %v637 = vadd.f32 %v601, %v636
  %v638 = vpop.f32.mrf.mxu0
  %v639 = vadd.f32 %v601, %v638
  %640 = vmatmul.bf16.gmra.mxu0 %v619
  %v641 = vpop.f32.mrf.mxu0
  %v642 = vadd.f32 %v601, %v641
  %v643 = vpop.f32.mrf.mxu0
  %v644 = vadd.f32 %v601, %v643
  %645 = vmatmul.bf16.gmra.mxu0 %v622
  %v646 = vpop.f32.mrf.mxu0
  %v647 = vadd.f32 %v601, %v646
  %v648 = vpop.f32.mrf.mxu0
  %v649 = vadd.f32 %v601, %v648
  %650 = vmatmul.bf16.gmra.mxu0 %v625
  %v651 = vpop.f32.mrf.mxu0
  %v652 = vadd.f32 %v601, %v651
  %v653 = vpop.f32.mrf.mxu0
  %v654 = vadd.f32 %v601, %v653
  %655 = vdwg.mxu0
  %v660 = vunpack.c.l.b16 %v53
  %v661 = vunpack.c.l.b16 %v54
  %v662 = vunpack.c.l.b16 %v55
  %v663 = vunpack.c.l.b16 %v56
  %v664 = vpack.c.b16 %v661, %v660
  %v665 = vpack.c.b16 %v663, %v662
  %668 = vmatpush.bf16.msra.mxu0 0
  %669 = vmatpush.bf16.msra.mxu0 0
  %670 = vmatpush.bf16.msra.mxu0 0
  %671 = vmatpush.bf16.msra.mxu0 0
  %672 = vmatpush.bf16.msra.mxu0 0
  %673 = vmatpush.bf16.msra.mxu0 0
  %674 = vmatpush.bf16.msra.mxu0 %v665
  %675 = vmatpush.bf16.msra.mxu0 %v664
  %676 = vmatmul.bf16.gmra.mxu0 %v140
  %v677 = vpop.f32.mrf.mxu0
  %v678 = vadd.f32 0.0, %v677
  %v679 = vpop.f32.mrf.mxu0
  %680 = vdwg.mxu0
  %v681 = vadd.f32 %v637, %v678
  %v682 = vmul.f32 %v39, %v681
  %v683 = vtanh.pop %v682
  %v684 = vmul.f32 %v39, %v683
  %v685 = vadd.f32 %v684, %v40
  %v686 = vmul.f32 %v685, 0.0
  %688 = vrot.lane.b32.xlu0 %v685, 64
  %v689 = vpop.permute.xlu0 %688
  %v691 = vmul.f32 %v685, %v689
  %693 = vrot.lane.b32.xlu0 %v691, 32
  %v694 = vpop.permute.xlu0 %693
  %v696 = vadd.f32 %v686, %v694
  %v697 = vtanh.pop %v696
  %699 = vrot.lane.b32.xlu0 %v697, 64
  %v700 = vpop.permute.xlu0 %699
  %v702 = vmul.f32 %v685, %v700
  %v703 = vsel %vm182, %v702, 0.0
  %v704 = vsel %vm182, %v696, 0.0
  %706 = vrot.lane.b32.xlu0 %v703, 32
  %v707 = vpop.permute.xlu0 %706
  %s709 = scalar_lea.vmem [#allocation2], 64
  %710 = vst.msk [vmem:[%s709] sm:$0xff] %vm85, %v707
  %v711 = vpack.c.bf16 %v703, %v703
  %713 = vrot.lane.b32.xlu0 %v711, 32
  %v714 = vpop.permute.xlu0 %713
  %v716 = vsel %vm85, %v714, 0
  %718 = vmatpush.bf16.msra.mxu0 0
  %719 = vmatpush.bf16.msra.mxu0 0
  %720 = vmatpush.bf16.msra.mxu0 0
  %721 = vmatpush.bf16.msra.mxu0 0
  %722 = vmatpush.bf16.msra.mxu0 0
  %723 = vmatpush.bf16.msra.mxu0 0
  %724 = vmatpush.bf16.msra.mxu0 %v665
  %725 = vmatpush.bf16.msra.mxu0 %v664
  %726 = vmatmul.bf16.gmra.mxu0 %v716
  %v727 = vpop.f32.mrf.mxu0
  %v728 = vadd.f32 0.0, %v727
  %v729 = vpop.f32.mrf.mxu0
  %730 = vdwg.mxu0
  %v731 = vadd.f32 %v639, %v728
  %v732 = vmul.f32 %v39, %v731
  %v733 = vtanh.pop %v732
  %v734 = vmul.f32 %v39, %v733
  %v735 = vadd.f32 %v734, %v40
  %v736 = vmul.f32 %v735, %v704
  %738 = vrot.lane.b32.xlu0 %v735, 64
  %v739 = vpop.permute.xlu0 %738
  %v741 = vmul.f32 %v735, %v739
  %743 = vrot.lane.b32.xlu0 %v741, 32
  %v744 = vpop.permute.xlu0 %743
  %v746 = vadd.f32 %v736, %v744
  %v747 = vtanh.pop %v746
  %749 = vrot.lane.b32.xlu0 %v747, 64
  %v750 = vpop.permute.xlu0 %749
  %v752 = vmul.f32 %v735, %v750
  %v753 = vsel %vm237, %v752, %v703
  %v754 = vsel %vm237, %v746, %v704
  %v755 = vsel %vm237, %v752, 0.0
  %757 = vrot.lane.b32.xlu0 %v755, 32
  %v758 = vpop.permute.xlu0 %757
  %s760 = scalar_lea.vmem [#allocation2], 72
  %761 = vst.msk [vmem:[%s760] sm:$0xff] %vm85, %v758
  %v762 = vpack.c.bf16 %v753, %v753
  %764 = vrot.lane.b32.xlu0 %v762, 32
  %v765 = vpop.permute.xlu0 %764
  %v767 = vsel %vm85, %v765, 0
  %769 = vmatpush.bf16.msra.mxu0 0
  %770 = vmatpush.bf16.msra.mxu0 0
  %771 = vmatpush.bf16.msra.mxu0 0
  %772 = vmatpush.bf16.msra.mxu0 0
  %773 = vmatpush.bf16.msra.mxu0 0
  %774 = vmatpush.bf16.msra.mxu0 0
  %775 = vmatpush.bf16.msra.mxu0 %v665
  %776 = vmatpush.bf16.msra.mxu0 %v664
  %777 = vmatmul.bf16.gmra.mxu0 %v767
  %v778 = vpop.f32.mrf.mxu0
  %v779 = vadd.f32 0.0, %v778
  %v780 = vpop.f32.mrf.mxu0
  %781 = vdwg.mxu0
  %v782 = vadd.f32 %v642, %v779
  %v783 = vmul.f32 %v39, %v782
  %v784 = vtanh.pop %v783
  %v785 = vmul.f32 %v39, %v784
  %v786 = vadd.f32 %v785, %v40
  %v787 = vmul.f32 %v786, %v754
  %789 = vrot.lane.b32.xlu0 %v786, 64
  %v790 = vpop.permute.xlu0 %789
  %v792 = vmul.f32 %v786, %v790
  %794 = vrot.lane.b32.xlu0 %v792, 32
  %v795 = vpop.permute.xlu0 %794
  %v797 = vadd.f32 %v787, %v795
  %v798 = vtanh.pop %v797
  %800 = vrot.lane.b32.xlu0 %v798, 64
  %v801 = vpop.permute.xlu0 %800
  %v803 = vmul.f32 %v786, %v801
  %v804 = vsel %vm294, %v803, %v753
  %v805 = vsel %vm294, %v797, %v754
  %v806 = vsel %vm294, %v803, 0.0
  %808 = vrot.lane.b32.xlu0 %v806, 32
  %v809 = vpop.permute.xlu0 %808
  %s811 = scalar_lea.vmem [#allocation2], 80
  %812 = vst.msk [vmem:[%s811] sm:$0xff] %vm85, %v809
  %v813 = vpack.c.bf16 %v804, %v804
  %815 = vrot.lane.b32.xlu0 %v813, 32
  %v816 = vpop.permute.xlu0 %815
  %v818 = vsel %vm85, %v816, 0
  %820 = vmatpush.bf16.msra.mxu0 0
  %821 = vmatpush.bf16.msra.mxu0 0
  %822 = vmatpush.bf16.msra.mxu0 0
  %823 = vmatpush.bf16.msra.mxu0 0
  %824 = vmatpush.bf16.msra.mxu0 0
  %825 = vmatpush.bf16.msra.mxu0 0
  %826 = vmatpush.bf16.msra.mxu0 %v665
  %827 = vmatpush.bf16.msra.mxu0 %v664
  %828 = vmatmul.bf16.gmra.mxu0 %v818
  %v829 = vpop.f32.mrf.mxu0
  %v830 = vadd.f32 0.0, %v829
  %v831 = vpop.f32.mrf.mxu0
  %832 = vdwg.mxu0
  %v833 = vadd.f32 %v644, %v830
  %v834 = vmul.f32 %v39, %v833
  %v835 = vtanh.pop %v834
  %v836 = vmul.f32 %v39, %v835
  %v837 = vadd.f32 %v836, %v40
  %v838 = vmul.f32 %v837, %v805
  %840 = vrot.lane.b32.xlu0 %v837, 64
  %v841 = vpop.permute.xlu0 %840
  %v843 = vmul.f32 %v837, %v841
  %845 = vrot.lane.b32.xlu0 %v843, 32
  %v846 = vpop.permute.xlu0 %845
  %v848 = vadd.f32 %v838, %v846
  %v849 = vtanh.pop %v848
  %851 = vrot.lane.b32.xlu0 %v849, 64
  %v852 = vpop.permute.xlu0 %851
  %v854 = vmul.f32 %v837, %v852
  %v855 = vsel %vm351, %v854, %v804
  %v856 = vsel %vm351, %v848, %v805
  %v857 = vsel %vm351, %v854, 0.0
  %859 = vrot.lane.b32.xlu0 %v857, 32
  %v860 = vpop.permute.xlu0 %859
  %s862 = scalar_lea.vmem [#allocation2], 88
  %863 = vst.msk [vmem:[%s862] sm:$0xff] %vm85, %v860
  %v864 = vpack.c.bf16 %v855, %v855
  %866 = vrot.lane.b32.xlu0 %v864, 32
  %v867 = vpop.permute.xlu0 %866
  %v869 = vsel %vm85, %v867, 0
  %871 = vmatpush.bf16.msra.mxu0 0
  %872 = vmatpush.bf16.msra.mxu0 0
  %873 = vmatpush.bf16.msra.mxu0 0
  %874 = vmatpush.bf16.msra.mxu0 0
  %875 = vmatpush.bf16.msra.mxu0 0
  %876 = vmatpush.bf16.msra.mxu0 0
  %877 = vmatpush.bf16.msra.mxu0 %v665
  %878 = vmatpush.bf16.msra.mxu0 %v664
  %879 = vmatmul.bf16.gmra.mxu0 %v869
  %v880 = vpop.f32.mrf.mxu0
  %v881 = vadd.f32 0.0, %v880
  %v882 = vpop.f32.mrf.mxu0
  %883 = vdwg.mxu0
  %v884 = vadd.f32 %v647, %v881
  %v885 = vmul.f32 %v39, %v884
  %v886 = vtanh.pop %v885
  %v887 = vmul.f32 %v39, %v886
  %v888 = vadd.f32 %v887, %v40
  %v889 = vmul.f32 %v888, %v856
  %891 = vrot.lane.b32.xlu0 %v888, 64
  %v892 = vpop.permute.xlu0 %891
  %v894 = vmul.f32 %v888, %v892
  %896 = vrot.lane.b32.xlu0 %v894, 32
  %v897 = vpop.permute.xlu0 %896
  %v899 = vadd.f32 %v889, %v897
  %v900 = vtanh.pop %v899
  %902 = vrot.lane.b32.xlu0 %v900, 64
  %v903 = vpop.permute.xlu0 %902
  %v905 = vmul.f32 %v888, %v903
  %v906 = vsel %vm408, %v905, %v855
  %v907 = vsel %vm408, %v899, %v856
  %v908 = vsel %vm408, %v905, 0.0
  %910 = vrot.lane.b32.xlu0 %v908, 32
  %v911 = vpop.permute.xlu0 %910
  %s913 = scalar_lea.vmem [#allocation2], 96
  %914 = vst.msk [vmem:[%s913] sm:$0xff] %vm85, %v911
  %v915 = vpack.c.bf16 %v906, %v906
  %917 = vrot.lane.b32.xlu0 %v915, 32
  %v918 = vpop.permute.xlu0 %917
  %v920 = vsel %vm85, %v918, 0
  %922 = vmatpush.bf16.msra.mxu0 0
  %923 = vmatpush.bf16.msra.mxu0 0
  %924 = vmatpush.bf16.msra.mxu0 0
  %925 = vmatpush.bf16.msra.mxu0 0
  %926 = vmatpush.bf16.msra.mxu0 0
  %927 = vmatpush.bf16.msra.mxu0 0
  %928 = vmatpush.bf16.msra.mxu0 %v665
  %929 = vmatpush.bf16.msra.mxu0 %v664
  %930 = vmatmul.bf16.gmra.mxu0 %v920
  %v931 = vpop.f32.mrf.mxu0
  %v932 = vadd.f32 0.0, %v931
  %v933 = vpop.f32.mrf.mxu0
  %934 = vdwg.mxu0
  %v935 = vadd.f32 %v649, %v932
  %v936 = vmul.f32 %v39, %v935
  %v937 = vtanh.pop %v936
  %v938 = vmul.f32 %v39, %v937
  %v939 = vadd.f32 %v938, %v40
  %v940 = vmul.f32 %v939, %v907
  %942 = vrot.lane.b32.xlu0 %v939, 64
  %v943 = vpop.permute.xlu0 %942
  %v945 = vmul.f32 %v939, %v943
  %947 = vrot.lane.b32.xlu0 %v945, 32
  %v948 = vpop.permute.xlu0 %947
  %v950 = vadd.f32 %v940, %v948
  %v951 = vtanh.pop %v950
  %953 = vrot.lane.b32.xlu0 %v951, 64
  %v954 = vpop.permute.xlu0 %953
  %v956 = vmul.f32 %v939, %v954
  %v957 = vsel %vm465, %v956, %v906
  %v958 = vsel %vm465, %v950, %v907
  %v959 = vsel %vm465, %v956, 0.0
  %961 = vrot.lane.b32.xlu0 %v959, 32
  %v962 = vpop.permute.xlu0 %961
  %s964 = scalar_lea.vmem [#allocation2], 104
  %965 = vst.msk [vmem:[%s964] sm:$0xff] %vm85, %v962
  %v966 = vpack.c.bf16 %v957, %v957
  %968 = vrot.lane.b32.xlu0 %v966, 32
  %v969 = vpop.permute.xlu0 %968
  %v971 = vsel %vm85, %v969, 0
  %973 = vmatpush.bf16.msra.mxu0 0
  %974 = vmatpush.bf16.msra.mxu0 0
  %975 = vmatpush.bf16.msra.mxu0 0
  %976 = vmatpush.bf16.msra.mxu0 0
  %977 = vmatpush.bf16.msra.mxu0 0
  %978 = vmatpush.bf16.msra.mxu0 0
  %979 = vmatpush.bf16.msra.mxu0 %v665
  %980 = vmatpush.bf16.msra.mxu0 %v664
  %981 = vmatmul.bf16.gmra.mxu0 %v971
  %v982 = vpop.f32.mrf.mxu0
  %v983 = vadd.f32 0.0, %v982
  %v984 = vpop.f32.mrf.mxu0
  %985 = vdwg.mxu0
  %v986 = vadd.f32 %v652, %v983
  %v987 = vmul.f32 %v39, %v986
  %v988 = vtanh.pop %v987
  %v989 = vmul.f32 %v39, %v988
  %v990 = vadd.f32 %v989, %v40
  %v991 = vmul.f32 %v990, %v958
  %993 = vrot.lane.b32.xlu0 %v990, 64
  %v994 = vpop.permute.xlu0 %993
  %v996 = vmul.f32 %v990, %v994
  %998 = vrot.lane.b32.xlu0 %v996, 32
  %v999 = vpop.permute.xlu0 %998
  %v1001 = vadd.f32 %v991, %v999
  %v1002 = vtanh.pop %v1001
  %1004 = vrot.lane.b32.xlu0 %v1002, 64
  %v1005 = vpop.permute.xlu0 %1004
  %v1007 = vmul.f32 %v990, %v1005
  %v1008 = vsel %vm522, %v1007, %v957
  %v1009 = vsel %vm522, %v1001, %v958
  %v1010 = vsel %vm522, %v1007, 0.0
  %1012 = vrot.lane.b32.xlu0 %v1010, 32
  %v1013 = vpop.permute.xlu0 %1012
  %s1015 = scalar_lea.vmem [#allocation2], 112
  %1016 = vst.msk [vmem:[%s1015] sm:$0xff] %vm85, %v1013
  %v1017 = vpack.c.bf16 %v1008, %v1008
  %1019 = vrot.lane.b32.xlu0 %v1017, 32
  %v1020 = vpop.permute.xlu0 %1019
  %v1022 = vsel %vm85, %v1020, 0
  %1024 = vmatpush.bf16.msra.mxu0 0
  %1025 = vmatpush.bf16.msra.mxu0 0
  %1026 = vmatpush.bf16.msra.mxu0 0
  %1027 = vmatpush.bf16.msra.mxu0 0
  %1028 = vmatpush.bf16.msra.mxu0 0
  %1029 = vmatpush.bf16.msra.mxu0 0
  %1030 = vmatpush.bf16.msra.mxu0 %v665
  %1031 = vmatpush.bf16.msra.mxu0 %v664
  %1032 = vmatmul.bf16.gmra.mxu0 %v1022
  %v1033 = vpop.f32.mrf.mxu0
  %v1034 = vadd.f32 0.0, %v1033
  %v1035 = vpop.f32.mrf.mxu0
  %1036 = vdwg.mxu0
  %v1037 = vadd.f32 %v654, %v1034
  %v1038 = vmul.f32 %v39, %v1037
  %v1039 = vtanh.pop %v1038
  %v1040 = vmul.f32 %v39, %v1039
  %v1041 = vadd.f32 %v1040, %v40
  %v1042 = vmul.f32 %v1041, %v1009
  %1044 = vrot.lane.b32.xlu0 %v1041, 64
  %v1045 = vpop.permute.xlu0 %1044
  %v1047 = vmul.f32 %v1041, %v1045
  %1049 = vrot.lane.b32.xlu0 %v1047, 32
  %v1050 = vpop.permute.xlu0 %1049
  %v1052 = vadd.f32 %v1042, %v1050
  %v1053 = vtanh.pop %v1052
  %1055 = vrot.lane.b32.xlu0 %v1053, 64
  %v1056 = vpop.permute.xlu0 %1055
  %v1058 = vmul.f32 %v1041, %v1056
  %v1059 = vsel %vm579, %v1058, 0.0
  %1061 = vrot.lane.b32.xlu0 %v1059, 32
  %v1062 = vpop.permute.xlu0 %1061
  %s1064 = scalar_lea.vmem [#allocation2], 120
  %1065 = vst.msk [vmem:[%s1064] sm:$0xff] %vm85, %v1062
  %v1066 = vld [vmem:[%s709] sm:$0xff]
  %v1067 = vld [vmem:[%s709 + $0x8] sm:$0xff]
  %v1068 = vld [vmem:[%s709 + $0x10] sm:$0xff]
  %v1069 = vld [vmem:[%s709 + $0x18] sm:$0xff]
  %v1070 = vld [vmem:[%s709 + $0x20] sm:$0xff]
  %v1071 = vld [vmem:[%s709 + $0x28] sm:$0xff]
  %v1072 = vld [vmem:[%s709 + $0x30] sm:$0xff]
  %v1073 = vld [vmem:[%s709 + $0x38] sm:$0xff]
  %vm1074 = vcmask 257024
  %1075 = vst.msk [vmem:[%s8] sm:$0xf] %vm1074, %v587
  %1076 = vst.msk [vmem:[%s8 + $0x4] sm:$0xf] %vm1074, %v588
  %1077 = vst.msk [vmem:[%s8 + $0x8] sm:$0xf] %vm1074, %v589
  %1078 = vst.msk [vmem:[%s8 + $0xc] sm:$0xf] %vm1074, %v590
  %1079 = vst.msk [vmem:[%s8 + $0x10] sm:$0xf] %vm1074, %v591
  %1080 = vst.msk [vmem:[%s8 + $0x14] sm:$0xf] %vm1074, %v592
  %1081 = vst.msk [vmem:[%s8 + $0x18] sm:$0xf] %vm1074, %v593
  %1082 = vst.msk [vmem:[%s8 + $0x1c] sm:$0xf] %vm1074, %v594
  %1091 = vrot.lane.b32.xlu0 %v587, 32
  %v1092 = vpop.permute.xlu0 %1091
  %1093 = vrot.lane.b32.xlu0 %v588, 32
  %v1094 = vpop.permute.xlu0 %1093
  %1095 = vrot.lane.b32.xlu0 %v589, 32
  %v1096 = vpop.permute.xlu0 %1095
  %1097 = vrot.lane.b32.xlu0 %v590, 32
  %v1098 = vpop.permute.xlu0 %1097
  %1099 = vrot.lane.b32.xlu0 %v591, 32
  %v1100 = vpop.permute.xlu0 %1099
  %1101 = vrot.lane.b32.xlu0 %v592, 32
  %v1102 = vpop.permute.xlu0 %1101
  %1103 = vrot.lane.b32.xlu0 %v593, 32
  %v1104 = vpop.permute.xlu0 %1103
  %1105 = vrot.lane.b32.xlu0 %v594, 32
  %v1106 = vpop.permute.xlu0 %1105
  %vm1115 = vcmask 523524
  %1116 = vst.msk [vmem:[%s8 - $0x4] sm:$0xf0] %vm1115, %v1092
  %1117 = vst.msk [vmem:[%s8] sm:$0xf0] %vm1115, %v1094
  %1118 = vst.msk [vmem:[%s8 + $0x4] sm:$0xf0] %vm1115, %v1096
  %1119 = vst.msk [vmem:[%s8 + $0x8] sm:$0xf0] %vm1115, %v1098
  %1120 = vst.msk [vmem:[%s8 + $0xc] sm:$0xf0] %vm1115, %v1100
  %1121 = vst.msk [vmem:[%s8 + $0x10] sm:$0xf0] %vm1115, %v1102
  %1122 = vst.msk [vmem:[%s8 + $0x14] sm:$0xf0] %vm1115, %v1104
  %1123 = vst.msk [vmem:[%s8 + $0x18] sm:$0xf0] %vm1115, %v1106
  %v1124 = vsub.s32 %v33, 1
  %v1125 = vsub.s32 %v1124, 1
  %v1126 = vsub.s32 %v1124, 2
  %v1127 = vsub.s32 %v1124, 3
  %v1128 = vsub.s32 %v1124, 4
  %v1129 = vsub.s32 %v1124, 5
  %v1130 = vsub.s32 %v1124, 6
  %v1131 = vsub.s32 %v1124, 7
  %v1132 = vsub.s32 %v33, 3
  %v1133 = vsub.s32 %v1132, 1
  %v1134 = vsub.s32 %v1132, 2
  %v1135 = vsub.s32 %v1132, 3
  %v1136 = vsub.s32 %v1132, 4
  %v1137 = vsub.s32 %v1132, 5
  %v1138 = vsub.s32 %v1132, 6
  %v1139 = vsub.s32 %v1132, 7
  %v1140 = vsub.s32 %v33, 2
  %vm1141 = vcmp.gt.s32.totalorder %v1140, 0
  %vm1142 = vcmp.gt.s32.totalorder %v1140, 1
  %vm1143 = vcmp.gt.s32.totalorder %v1140, 2
  %vm1144 = vcmp.gt.s32.totalorder %v1140, 3
  %vm1145 = vcmp.gt.s32.totalorder %v1140, 4
  %vm1146 = vcmp.gt.s32.totalorder %v1140, 5
  %vm1147 = vcmp.gt.s32.totalorder %v1140, 6
  %vm1148 = vcmp.gt.s32.totalorder %v1140, 7
  %vm1149 = vcmp.eq.s32.totalorder %v1124, 0
  %vm1150 = vcmp.eq.s32.totalorder %v1125, 0
  %vm1151 = vcmp.eq.s32.totalorder %v1126, 0
  %vm1152 = vcmp.eq.s32.totalorder %v1127, 0
  %vm1153 = vcmp.eq.s32.totalorder %v1128, 0
  %vm1154 = vcmp.eq.s32.totalorder %v1129, 0
  %vm1155 = vcmp.eq.s32.totalorder %v1130, 0
  %vm1156 = vcmp.eq.s32.totalorder %v1131, 0
  %v1157 = vsel %vm1149, 1, 0
  %v1158 = vsel %vm1150, 1, 0
  %v1159 = vsel %vm1151, 1, 0
  %v1160 = vsel %vm1152, 1, 0
  %v1161 = vsel %vm1153, 1, 0
  %v1162 = vsel %vm1154, 1, 0
  %v1163 = vsel %vm1155, 1, 0
  %v1164 = vsel %vm1156, 1, 0
  %1165 = vset.pattern.permute.xlu0 0
  %1166 = vperm.xlu0 %1165, %v1157
  %v1167 = vpop.permute.xlu0 %1166
  %1168 = vset.pattern.permute.xlu0 0
  %1169 = vperm.xlu0 %1168, %v1158
  %v1170 = vpop.permute.xlu0 %1169
  %1171 = vset.pattern.permute.xlu0 0
  %1172 = vperm.xlu0 %1171, %v1159
  %v1173 = vpop.permute.xlu0 %1172
  %1174 = vset.pattern.permute.xlu0 0
  %1175 = vperm.xlu0 %1174, %v1160
  %v1176 = vpop.permute.xlu0 %1175
  %1177 = vset.pattern.permute.xlu0 0
  %1178 = vperm.xlu0 %1177, %v1161
  %v1179 = vpop.permute.xlu0 %1178
  %1180 = vset.pattern.permute.xlu0 0
  %1181 = vperm.xlu0 %1180, %v1162
  %v1182 = vpop.permute.xlu0 %1181
  %1183 = vset.pattern.permute.xlu0 0
  %1184 = vperm.xlu0 %1183, %v1163
  %v1185 = vpop.permute.xlu0 %1184
  %1186 = vset.pattern.permute.xlu0 0
  %1187 = vperm.xlu0 %1186, %v1164
  %v1188 = vpop.permute.xlu0 %1187
  %vm1189 = vcmp.eq.s32.totalorder %v1167, 1
  %vm1190 = vcmp.eq.s32.totalorder %v1170, 1
  %vm1191 = vcmp.eq.s32.totalorder %v1173, 1
  %vm1192 = vcmp.eq.s32.totalorder %v1176, 1
  %vm1193 = vcmp.eq.s32.totalorder %v1179, 1
  %vm1194 = vcmp.eq.s32.totalorder %v1182, 1
  %vm1195 = vcmp.eq.s32.totalorder %v1185, 1
  %vm1196 = vcmp.eq.s32.totalorder %v1188, 1
  %v1198 = vrot.slane %v1066, 4
  %v1200 = vsel %vm1189, %v1198, 0.0
  %v1201 = vsel %vm1190, %v1198, 0.0
  %v1202 = vsel %vm1191, %v1198, 0.0
  %v1203 = vsel %vm1192, %v1198, 0.0
  %v1204 = vsel %vm1193, %v1198, 0.0
  %v1205 = vsel %vm1194, %v1198, 0.0
  %v1206 = vsel %vm1195, %v1198, 0.0
  %v1207 = vsel %vm1196, %v1198, 0.0
  %vm1208 = vcmp.eq.s32.totalorder %v1132, 0
  %vm1209 = vcmp.eq.s32.totalorder %v1133, 0
  %vm1210 = vcmp.eq.s32.totalorder %v1134, 0
  %vm1211 = vcmp.eq.s32.totalorder %v1135, 0
  %vm1212 = vcmp.eq.s32.totalorder %v1136, 0
  %vm1213 = vcmp.eq.s32.totalorder %v1137, 0
  %vm1214 = vcmp.eq.s32.totalorder %v1138, 0
  %vm1215 = vcmp.eq.s32.totalorder %v1139, 0
  %v1216 = vsel %vm1208, 1, 0
  %v1217 = vsel %vm1209, 1, 0
  %v1218 = vsel %vm1210, 1, 0
  %v1219 = vsel %vm1211, 1, 0
  %v1220 = vsel %vm1212, 1, 0
  %v1221 = vsel %vm1213, 1, 0
  %v1222 = vsel %vm1214, 1, 0
  %v1223 = vsel %vm1215, 1, 0
  %1224 = vset.pattern.permute.xlu0 0
  %1225 = vperm.xlu0 %1224, %v1216
  %v1226 = vpop.permute.xlu0 %1225
  %1227 = vset.pattern.permute.xlu0 0
  %1228 = vperm.xlu0 %1227, %v1217
  %v1229 = vpop.permute.xlu0 %1228
  %1230 = vset.pattern.permute.xlu0 0
  %1231 = vperm.xlu0 %1230, %v1218
  %v1232 = vpop.permute.xlu0 %1231
  %1233 = vset.pattern.permute.xlu0 0
  %1234 = vperm.xlu0 %1233, %v1219
  %v1235 = vpop.permute.xlu0 %1234
  %1236 = vset.pattern.permute.xlu0 0
  %1237 = vperm.xlu0 %1236, %v1220
  %v1238 = vpop.permute.xlu0 %1237
  %1239 = vset.pattern.permute.xlu0 0
  %1240 = vperm.xlu0 %1239, %v1221
  %v1241 = vpop.permute.xlu0 %1240
  %1242 = vset.pattern.permute.xlu0 0
  %1243 = vperm.xlu0 %1242, %v1222
  %v1244 = vpop.permute.xlu0 %1243
  %1245 = vset.pattern.permute.xlu0 0
  %1246 = vperm.xlu0 %1245, %v1223
  %v1247 = vpop.permute.xlu0 %1246
  %vm1248 = vcmp.eq.s32.totalorder %v1226, 1
  %vm1249 = vcmp.eq.s32.totalorder %v1229, 1
  %vm1250 = vcmp.eq.s32.totalorder %v1232, 1
  %vm1251 = vcmp.eq.s32.totalorder %v1235, 1
  %vm1252 = vcmp.eq.s32.totalorder %v1238, 1
  %vm1253 = vcmp.eq.s32.totalorder %v1241, 1
  %vm1254 = vcmp.eq.s32.totalorder %v1244, 1
  %vm1255 = vcmp.eq.s32.totalorder %v1247, 1
  %v1256 = vsel %vm1248, %v1198, 0.0
  %v1257 = vsel %vm1249, %v1198, 0.0
  %v1258 = vsel %vm1250, %v1198, 0.0
  %v1259 = vsel %vm1251, %v1198, 0.0
  %v1260 = vsel %vm1252, %v1198, 0.0
  %v1261 = vsel %vm1253, %v1198, 0.0
  %v1262 = vsel %vm1254, %v1198, 0.0
  %v1263 = vsel %vm1255, %v1198, 0.0
  %vm1264 = vcmp.eq.s32.totalorder %v1124, 1
  %vm1265 = vcmp.eq.s32.totalorder %v1125, 1
  %vm1266 = vcmp.eq.s32.totalorder %v1126, 1
  %vm1267 = vcmp.eq.s32.totalorder %v1127, 1
  %vm1268 = vcmp.eq.s32.totalorder %v1128, 1
  %vm1269 = vcmp.eq.s32.totalorder %v1129, 1
  %vm1270 = vcmp.eq.s32.totalorder %v1130, 1
  %vm1271 = vcmp.eq.s32.totalorder %v1131, 1
  %v1272 = vsel %vm1264, 1, 0
  %v1273 = vsel %vm1265, 1, 0
  %v1274 = vsel %vm1266, 1, 0
  %v1275 = vsel %vm1267, 1, 0
  %v1276 = vsel %vm1268, 1, 0
  %v1277 = vsel %vm1269, 1, 0
  %v1278 = vsel %vm1270, 1, 0
  %v1279 = vsel %vm1271, 1, 0
  %1280 = vset.pattern.permute.xlu0 0
  %1281 = vperm.xlu0 %1280, %v1272
  %v1282 = vpop.permute.xlu0 %1281
  %1283 = vset.pattern.permute.xlu0 0
  %1284 = vperm.xlu0 %1283, %v1273
  %v1285 = vpop.permute.xlu0 %1284
  %1286 = vset.pattern.permute.xlu0 0
  %1287 = vperm.xlu0 %1286, %v1274
  %v1288 = vpop.permute.xlu0 %1287
  %1289 = vset.pattern.permute.xlu0 0
  %1290 = vperm.xlu0 %1289, %v1275
  %v1291 = vpop.permute.xlu0 %1290
  %1292 = vset.pattern.permute.xlu0 0
  %1293 = vperm.xlu0 %1292, %v1276
  %v1294 = vpop.permute.xlu0 %1293
  %1295 = vset.pattern.permute.xlu0 0
  %1296 = vperm.xlu0 %1295, %v1277
  %v1297 = vpop.permute.xlu0 %1296
  %1298 = vset.pattern.permute.xlu0 0
  %1299 = vperm.xlu0 %1298, %v1278
  %v1300 = vpop.permute.xlu0 %1299
  %1301 = vset.pattern.permute.xlu0 0
  %1302 = vperm.xlu0 %1301, %v1279
  %v1303 = vpop.permute.xlu0 %1302
  %vm1304 = vcmp.eq.s32.totalorder %v1282, 1
  %vm1305 = vcmp.eq.s32.totalorder %v1285, 1
  %vm1306 = vcmp.eq.s32.totalorder %v1288, 1
  %vm1307 = vcmp.eq.s32.totalorder %v1291, 1
  %vm1308 = vcmp.eq.s32.totalorder %v1294, 1
  %vm1309 = vcmp.eq.s32.totalorder %v1297, 1
  %vm1310 = vcmp.eq.s32.totalorder %v1300, 1
  %vm1311 = vcmp.eq.s32.totalorder %v1303, 1
  %v1313 = vrot.slane %v1067, 4
  %v1315 = vsel %vm1304, %v1313, %v1200
  %v1316 = vsel %vm1305, %v1313, %v1201
  %v1317 = vsel %vm1306, %v1313, %v1202
  %v1318 = vsel %vm1307, %v1313, %v1203
  %v1319 = vsel %vm1308, %v1313, %v1204
  %v1320 = vsel %vm1309, %v1313, %v1205
  %v1321 = vsel %vm1310, %v1313, %v1206
  %v1322 = vsel %vm1311, %v1313, %v1207
  %vm1323 = vcmp.eq.s32.totalorder %v1132, 1
  %vm1324 = vcmp.eq.s32.totalorder %v1133, 1
  %vm1325 = vcmp.eq.s32.totalorder %v1134, 1
  %vm1326 = vcmp.eq.s32.totalorder %v1135, 1
  %vm1327 = vcmp.eq.s32.totalorder %v1136, 1
  %vm1328 = vcmp.eq.s32.totalorder %v1137, 1
  %vm1329 = vcmp.eq.s32.totalorder %v1138, 1
  %vm1330 = vcmp.eq.s32.totalorder %v1139, 1
  %v1331 = vsel %vm1323, 1, 0
  %v1332 = vsel %vm1324, 1, 0
  %v1333 = vsel %vm1325, 1, 0
  %v1334 = vsel %vm1326, 1, 0
  %v1335 = vsel %vm1327, 1, 0
  %v1336 = vsel %vm1328, 1, 0
  %v1337 = vsel %vm1329, 1, 0
  %v1338 = vsel %vm1330, 1, 0
  %1339 = vset.pattern.permute.xlu0 0
  %1340 = vperm.xlu0 %1339, %v1331
  %v1341 = vpop.permute.xlu0 %1340
  %1342 = vset.pattern.permute.xlu0 0
  %1343 = vperm.xlu0 %1342, %v1332
  %v1344 = vpop.permute.xlu0 %1343
  %1345 = vset.pattern.permute.xlu0 0
  %1346 = vperm.xlu0 %1345, %v1333
  %v1347 = vpop.permute.xlu0 %1346
  %1348 = vset.pattern.permute.xlu0 0
  %1349 = vperm.xlu0 %1348, %v1334
  %v1350 = vpop.permute.xlu0 %1349
  %1351 = vset.pattern.permute.xlu0 0
  %1352 = vperm.xlu0 %1351, %v1335
  %v1353 = vpop.permute.xlu0 %1352
  %1354 = vset.pattern.permute.xlu0 0
  %1355 = vperm.xlu0 %1354, %v1336
  %v1356 = vpop.permute.xlu0 %1355
  %1357 = vset.pattern.permute.xlu0 0
  %1358 = vperm.xlu0 %1357, %v1337
  %v1359 = vpop.permute.xlu0 %1358
  %1360 = vset.pattern.permute.xlu0 0
  %1361 = vperm.xlu0 %1360, %v1338
  %v1362 = vpop.permute.xlu0 %1361
  %vm1363 = vcmp.eq.s32.totalorder %v1341, 1
  %vm1364 = vcmp.eq.s32.totalorder %v1344, 1
  %vm1365 = vcmp.eq.s32.totalorder %v1347, 1
  %vm1366 = vcmp.eq.s32.totalorder %v1350, 1
  %vm1367 = vcmp.eq.s32.totalorder %v1353, 1
  %vm1368 = vcmp.eq.s32.totalorder %v1356, 1
  %vm1369 = vcmp.eq.s32.totalorder %v1359, 1
  %vm1370 = vcmp.eq.s32.totalorder %v1362, 1
  %v1371 = vsel %vm1363, %v1313, %v1256
  %v1372 = vsel %vm1364, %v1313, %v1257
  %v1373 = vsel %vm1365, %v1313, %v1258
  %v1374 = vsel %vm1366, %v1313, %v1259
  %v1375 = vsel %vm1367, %v1313, %v1260
  %v1376 = vsel %vm1368, %v1313, %v1261
  %v1377 = vsel %vm1369, %v1313, %v1262
  %v1378 = vsel %vm1370, %v1313, %v1263
  %vm1379 = vcmp.eq.s32.totalorder %v1124, 2
  %vm1380 = vcmp.eq.s32.totalorder %v1125, 2
  %vm1381 = vcmp.eq.s32.totalorder %v1126, 2
  %vm1382 = vcmp.eq.s32.totalorder %v1127, 2
  %vm1383 = vcmp.eq.s32.totalorder %v1128, 2
  %vm1384 = vcmp.eq.s32.totalorder %v1129, 2
  %vm1385 = vcmp.eq.s32.totalorder %v1130, 2
  %vm1386 = vcmp.eq.s32.totalorder %v1131, 2
  %v1387 = vsel %vm1379, 1, 0
  %v1388 = vsel %vm1380, 1, 0
  %v1389 = vsel %vm1381, 1, 0
  %v1390 = vsel %vm1382, 1, 0
  %v1391 = vsel %vm1383, 1, 0
  %v1392 = vsel %vm1384, 1, 0
  %v1393 = vsel %vm1385, 1, 0
  %v1394 = vsel %vm1386, 1, 0
  %1395 = vset.pattern.permute.xlu0 0
  %1396 = vperm.xlu0 %1395, %v1387
  %v1397 = vpop.permute.xlu0 %1396
  %1398 = vset.pattern.permute.xlu0 0
  %1399 = vperm.xlu0 %1398, %v1388
  %v1400 = vpop.permute.xlu0 %1399
  %1401 = vset.pattern.permute.xlu0 0
  %1402 = vperm.xlu0 %1401, %v1389
  %v1403 = vpop.permute.xlu0 %1402
  %1404 = vset.pattern.permute.xlu0 0
  %1405 = vperm.xlu0 %1404, %v1390
  %v1406 = vpop.permute.xlu0 %1405
  %1407 = vset.pattern.permute.xlu0 0
  %1408 = vperm.xlu0 %1407, %v1391
  %v1409 = vpop.permute.xlu0 %1408
  %1410 = vset.pattern.permute.xlu0 0
  %1411 = vperm.xlu0 %1410, %v1392
  %v1412 = vpop.permute.xlu0 %1411
  %1413 = vset.pattern.permute.xlu0 0
  %1414 = vperm.xlu0 %1413, %v1393
  %v1415 = vpop.permute.xlu0 %1414
  %1416 = vset.pattern.permute.xlu0 0
  %1417 = vperm.xlu0 %1416, %v1394
  %v1418 = vpop.permute.xlu0 %1417
  %vm1419 = vcmp.eq.s32.totalorder %v1397, 1
  %vm1420 = vcmp.eq.s32.totalorder %v1400, 1
  %vm1421 = vcmp.eq.s32.totalorder %v1403, 1
  %vm1422 = vcmp.eq.s32.totalorder %v1406, 1
  %vm1423 = vcmp.eq.s32.totalorder %v1409, 1
  %vm1424 = vcmp.eq.s32.totalorder %v1412, 1
  %vm1425 = vcmp.eq.s32.totalorder %v1415, 1
  %vm1426 = vcmp.eq.s32.totalorder %v1418, 1
  %v1428 = vrot.slane %v1068, 4
  %v1430 = vsel %vm1419, %v1428, %v1315
  %v1431 = vsel %vm1420, %v1428, %v1316
  %v1432 = vsel %vm1421, %v1428, %v1317
  %v1433 = vsel %vm1422, %v1428, %v1318
  %v1434 = vsel %vm1423, %v1428, %v1319
  %v1435 = vsel %vm1424, %v1428, %v1320
  %v1436 = vsel %vm1425, %v1428, %v1321
  %v1437 = vsel %vm1426, %v1428, %v1322
  %vm1438 = vcmp.eq.s32.totalorder %v1132, 2
  %vm1439 = vcmp.eq.s32.totalorder %v1133, 2
  %vm1440 = vcmp.eq.s32.totalorder %v1134, 2
  %vm1441 = vcmp.eq.s32.totalorder %v1135, 2
  %vm1442 = vcmp.eq.s32.totalorder %v1136, 2
  %vm1443 = vcmp.eq.s32.totalorder %v1137, 2
  %vm1444 = vcmp.eq.s32.totalorder %v1138, 2
  %vm1445 = vcmp.eq.s32.totalorder %v1139, 2
  %v1446 = vsel %vm1438, 1, 0
  %v1447 = vsel %vm1439, 1, 0
  %v1448 = vsel %vm1440, 1, 0
  %v1449 = vsel %vm1441, 1, 0
  %v1450 = vsel %vm1442, 1, 0
  %v1451 = vsel %vm1443, 1, 0
  %v1452 = vsel %vm1444, 1, 0
  %v1453 = vsel %vm1445, 1, 0
  %1454 = vset.pattern.permute.xlu0 0
  %1455 = vperm.xlu0 %1454, %v1446
  %v1456 = vpop.permute.xlu0 %1455
  %1457 = vset.pattern.permute.xlu0 0
  %1458 = vperm.xlu0 %1457, %v1447
  %v1459 = vpop.permute.xlu0 %1458
  %1460 = vset.pattern.permute.xlu0 0
  %1461 = vperm.xlu0 %1460, %v1448
  %v1462 = vpop.permute.xlu0 %1461
  %1463 = vset.pattern.permute.xlu0 0
  %1464 = vperm.xlu0 %1463, %v1449
  %v1465 = vpop.permute.xlu0 %1464
  %1466 = vset.pattern.permute.xlu0 0
  %1467 = vperm.xlu0 %1466, %v1450
  %v1468 = vpop.permute.xlu0 %1467
  %1469 = vset.pattern.permute.xlu0 0
  %1470 = vperm.xlu0 %1469, %v1451
  %v1471 = vpop.permute.xlu0 %1470
  %1472 = vset.pattern.permute.xlu0 0
  %1473 = vperm.xlu0 %1472, %v1452
  %v1474 = vpop.permute.xlu0 %1473
  %1475 = vset.pattern.permute.xlu0 0
  %1476 = vperm.xlu0 %1475, %v1453
  %v1477 = vpop.permute.xlu0 %1476
  %vm1478 = vcmp.eq.s32.totalorder %v1456, 1
  %vm1479 = vcmp.eq.s32.totalorder %v1459, 1
  %vm1480 = vcmp.eq.s32.totalorder %v1462, 1
  %vm1481 = vcmp.eq.s32.totalorder %v1465, 1
  %vm1482 = vcmp.eq.s32.totalorder %v1468, 1
  %vm1483 = vcmp.eq.s32.totalorder %v1471, 1
  %vm1484 = vcmp.eq.s32.totalorder %v1474, 1
  %vm1485 = vcmp.eq.s32.totalorder %v1477, 1
  %v1486 = vsel %vm1478, %v1428, %v1371
  %v1487 = vsel %vm1479, %v1428, %v1372
  %v1488 = vsel %vm1480, %v1428, %v1373
  %v1489 = vsel %vm1481, %v1428, %v1374
  %v1490 = vsel %vm1482, %v1428, %v1375
  %v1491 = vsel %vm1483, %v1428, %v1376
  %v1492 = vsel %vm1484, %v1428, %v1377
  %v1493 = vsel %vm1485, %v1428, %v1378
  %vm1494 = vcmp.eq.s32.totalorder %v1124, 3
  %vm1495 = vcmp.eq.s32.totalorder %v1125, 3
  %vm1496 = vcmp.eq.s32.totalorder %v1126, 3
  %vm1497 = vcmp.eq.s32.totalorder %v1127, 3
  %vm1498 = vcmp.eq.s32.totalorder %v1128, 3
  %vm1499 = vcmp.eq.s32.totalorder %v1129, 3
  %vm1500 = vcmp.eq.s32.totalorder %v1130, 3
  %vm1501 = vcmp.eq.s32.totalorder %v1131, 3
  %v1502 = vsel %vm1494, 1, 0
  %v1503 = vsel %vm1495, 1, 0
  %v1504 = vsel %vm1496, 1, 0
  %v1505 = vsel %vm1497, 1, 0
  %v1506 = vsel %vm1498, 1, 0
  %v1507 = vsel %vm1499, 1, 0
  %v1508 = vsel %vm1500, 1, 0
  %v1509 = vsel %vm1501, 1, 0
  %1510 = vset.pattern.permute.xlu0 0
  %1511 = vperm.xlu0 %1510, %v1502
  %v1512 = vpop.permute.xlu0 %1511
  %1513 = vset.pattern.permute.xlu0 0
  %1514 = vperm.xlu0 %1513, %v1503
  %v1515 = vpop.permute.xlu0 %1514
  %1516 = vset.pattern.permute.xlu0 0
  %1517 = vperm.xlu0 %1516, %v1504
  %v1518 = vpop.permute.xlu0 %1517
  %1519 = vset.pattern.permute.xlu0 0
  %1520 = vperm.xlu0 %1519, %v1505
  %v1521 = vpop.permute.xlu0 %1520
  %1522 = vset.pattern.permute.xlu0 0
  %1523 = vperm.xlu0 %1522, %v1506
  %v1524 = vpop.permute.xlu0 %1523
  %1525 = vset.pattern.permute.xlu0 0
  %1526 = vperm.xlu0 %1525, %v1507
  %v1527 = vpop.permute.xlu0 %1526
  %1528 = vset.pattern.permute.xlu0 0
  %1529 = vperm.xlu0 %1528, %v1508
  %v1530 = vpop.permute.xlu0 %1529
  %1531 = vset.pattern.permute.xlu0 0
  %1532 = vperm.xlu0 %1531, %v1509
  %v1533 = vpop.permute.xlu0 %1532
  %vm1534 = vcmp.eq.s32.totalorder %v1512, 1
  %vm1535 = vcmp.eq.s32.totalorder %v1515, 1
  %vm1536 = vcmp.eq.s32.totalorder %v1518, 1
  %vm1537 = vcmp.eq.s32.totalorder %v1521, 1
  %vm1538 = vcmp.eq.s32.totalorder %v1524, 1
  %vm1539 = vcmp.eq.s32.totalorder %v1527, 1
  %vm1540 = vcmp.eq.s32.totalorder %v1530, 1
  %vm1541 = vcmp.eq.s32.totalorder %v1533, 1
  %v1543 = vrot.slane %v1069, 4
  %v1545 = vsel %vm1534, %v1543, %v1430
  %v1546 = vsel %vm1535, %v1543, %v1431
  %v1547 = vsel %vm1536, %v1543, %v1432
  %v1548 = vsel %vm1537, %v1543, %v1433
  %v1549 = vsel %vm1538, %v1543, %v1434
  %v1550 = vsel %vm1539, %v1543, %v1435
  %v1551 = vsel %vm1540, %v1543, %v1436
  %v1552 = vsel %vm1541, %v1543, %v1437
  %vm1553 = vcmp.eq.s32.totalorder %v1132, 3
  %vm1554 = vcmp.eq.s32.totalorder %v1133, 3
  %vm1555 = vcmp.eq.s32.totalorder %v1134, 3
  %vm1556 = vcmp.eq.s32.totalorder %v1135, 3
  %vm1557 = vcmp.eq.s32.totalorder %v1136, 3
  %vm1558 = vcmp.eq.s32.totalorder %v1137, 3
  %vm1559 = vcmp.eq.s32.totalorder %v1138, 3
  %vm1560 = vcmp.eq.s32.totalorder %v1139, 3
  %v1561 = vsel %vm1553, 1, 0
  %v1562 = vsel %vm1554, 1, 0
  %v1563 = vsel %vm1555, 1, 0
  %v1564 = vsel %vm1556, 1, 0
  %v1565 = vsel %vm1557, 1, 0
  %v1566 = vsel %vm1558, 1, 0
  %v1567 = vsel %vm1559, 1, 0
  %v1568 = vsel %vm1560, 1, 0
  %1569 = vset.pattern.permute.xlu0 0
  %1570 = vperm.xlu0 %1569, %v1561
  %v1571 = vpop.permute.xlu0 %1570
  %1572 = vset.pattern.permute.xlu0 0
  %1573 = vperm.xlu0 %1572, %v1562
  %v1574 = vpop.permute.xlu0 %1573
  %1575 = vset.pattern.permute.xlu0 0
  %1576 = vperm.xlu0 %1575, %v1563
  %v1577 = vpop.permute.xlu0 %1576
  %1578 = vset.pattern.permute.xlu0 0
  %1579 = vperm.xlu0 %1578, %v1564
  %v1580 = vpop.permute.xlu0 %1579
  %1581 = vset.pattern.permute.xlu0 0
  %1582 = vperm.xlu0 %1581, %v1565
  %v1583 = vpop.permute.xlu0 %1582
  %1584 = vset.pattern.permute.xlu0 0
  %1585 = vperm.xlu0 %1584, %v1566
  %v1586 = vpop.permute.xlu0 %1585
  %1587 = vset.pattern.permute.xlu0 0
  %1588 = vperm.xlu0 %1587, %v1567
  %v1589 = vpop.permute.xlu0 %1588
  %1590 = vset.pattern.permute.xlu0 0
  %1591 = vperm.xlu0 %1590, %v1568
  %v1592 = vpop.permute.xlu0 %1591
  %vm1593 = vcmp.eq.s32.totalorder %v1571, 1
  %vm1594 = vcmp.eq.s32.totalorder %v1574, 1
  %vm1595 = vcmp.eq.s32.totalorder %v1577, 1
  %vm1596 = vcmp.eq.s32.totalorder %v1580, 1
  %vm1597 = vcmp.eq.s32.totalorder %v1583, 1
  %vm1598 = vcmp.eq.s32.totalorder %v1586, 1
  %vm1599 = vcmp.eq.s32.totalorder %v1589, 1
  %vm1600 = vcmp.eq.s32.totalorder %v1592, 1
  %v1601 = vsel %vm1593, %v1543, %v1486
  %v1602 = vsel %vm1594, %v1543, %v1487
  %v1603 = vsel %vm1595, %v1543, %v1488
  %v1604 = vsel %vm1596, %v1543, %v1489
  %v1605 = vsel %vm1597, %v1543, %v1490
  %v1606 = vsel %vm1598, %v1543, %v1491
  %v1607 = vsel %vm1599, %v1543, %v1492
  %v1608 = vsel %vm1600, %v1543, %v1493
  %vm1609 = vcmp.eq.s32.totalorder %v1124, 4
  %vm1610 = vcmp.eq.s32.totalorder %v1125, 4
  %vm1611 = vcmp.eq.s32.totalorder %v1126, 4
  %vm1612 = vcmp.eq.s32.totalorder %v1127, 4
  %vm1613 = vcmp.eq.s32.totalorder %v1128, 4
  %vm1614 = vcmp.eq.s32.totalorder %v1129, 4
  %vm1615 = vcmp.eq.s32.totalorder %v1130, 4
  %vm1616 = vcmp.eq.s32.totalorder %v1131, 4
  %v1617 = vsel %vm1609, 1, 0
  %v1618 = vsel %vm1610, 1, 0
  %v1619 = vsel %vm1611, 1, 0
  %v1620 = vsel %vm1612, 1, 0
  %v1621 = vsel %vm1613, 1, 0
  %v1622 = vsel %vm1614, 1, 0
  %v1623 = vsel %vm1615, 1, 0
  %v1624 = vsel %vm1616, 1, 0
  %1625 = vset.pattern.permute.xlu0 0
  %1626 = vperm.xlu0 %1625, %v1617
  %v1627 = vpop.permute.xlu0 %1626
  %1628 = vset.pattern.permute.xlu0 0
  %1629 = vperm.xlu0 %1628, %v1618
  %v1630 = vpop.permute.xlu0 %1629
  %1631 = vset.pattern.permute.xlu0 0
  %1632 = vperm.xlu0 %1631, %v1619
  %v1633 = vpop.permute.xlu0 %1632
  %1634 = vset.pattern.permute.xlu0 0
  %1635 = vperm.xlu0 %1634, %v1620
  %v1636 = vpop.permute.xlu0 %1635
  %1637 = vset.pattern.permute.xlu0 0
  %1638 = vperm.xlu0 %1637, %v1621
  %v1639 = vpop.permute.xlu0 %1638
  %1640 = vset.pattern.permute.xlu0 0
  %1641 = vperm.xlu0 %1640, %v1622
  %v1642 = vpop.permute.xlu0 %1641
  %1643 = vset.pattern.permute.xlu0 0
  %1644 = vperm.xlu0 %1643, %v1623
  %v1645 = vpop.permute.xlu0 %1644
  %1646 = vset.pattern.permute.xlu0 0
  %1647 = vperm.xlu0 %1646, %v1624
  %v1648 = vpop.permute.xlu0 %1647
  %vm1649 = vcmp.eq.s32.totalorder %v1627, 1
  %vm1650 = vcmp.eq.s32.totalorder %v1630, 1
  %vm1651 = vcmp.eq.s32.totalorder %v1633, 1
  %vm1652 = vcmp.eq.s32.totalorder %v1636, 1
  %vm1653 = vcmp.eq.s32.totalorder %v1639, 1
  %vm1654 = vcmp.eq.s32.totalorder %v1642, 1
  %vm1655 = vcmp.eq.s32.totalorder %v1645, 1
  %vm1656 = vcmp.eq.s32.totalorder %v1648, 1
  %v1658 = vrot.slane %v1070, 4
  %v1660 = vsel %vm1649, %v1658, %v1545
  %v1661 = vsel %vm1650, %v1658, %v1546
  %v1662 = vsel %vm1651, %v1658, %v1547
  %v1663 = vsel %vm1652, %v1658, %v1548
  %v1664 = vsel %vm1653, %v1658, %v1549
  %v1665 = vsel %vm1654, %v1658, %v1550
  %v1666 = vsel %vm1655, %v1658, %v1551
  %v1667 = vsel %vm1656, %v1658, %v1552
  %vm1668 = vcmp.eq.s32.totalorder %v1132, 4
  %vm1669 = vcmp.eq.s32.totalorder %v1133, 4
  %vm1670 = vcmp.eq.s32.totalorder %v1134, 4
  %vm1671 = vcmp.eq.s32.totalorder %v1135, 4
  %vm1672 = vcmp.eq.s32.totalorder %v1136, 4
  %vm1673 = vcmp.eq.s32.totalorder %v1137, 4
  %vm1674 = vcmp.eq.s32.totalorder %v1138, 4
  %vm1675 = vcmp.eq.s32.totalorder %v1139, 4
  %v1676 = vsel %vm1668, 1, 0
  %v1677 = vsel %vm1669, 1, 0
  %v1678 = vsel %vm1670, 1, 0
  %v1679 = vsel %vm1671, 1, 0
  %v1680 = vsel %vm1672, 1, 0
  %v1681 = vsel %vm1673, 1, 0
  %v1682 = vsel %vm1674, 1, 0
  %v1683 = vsel %vm1675, 1, 0
  %1684 = vset.pattern.permute.xlu0 0
  %1685 = vperm.xlu0 %1684, %v1676
  %v1686 = vpop.permute.xlu0 %1685
  %1687 = vset.pattern.permute.xlu0 0
  %1688 = vperm.xlu0 %1687, %v1677
  %v1689 = vpop.permute.xlu0 %1688
  %1690 = vset.pattern.permute.xlu0 0
  %1691 = vperm.xlu0 %1690, %v1678
  %v1692 = vpop.permute.xlu0 %1691
  %1693 = vset.pattern.permute.xlu0 0
  %1694 = vperm.xlu0 %1693, %v1679
  %v1695 = vpop.permute.xlu0 %1694
  %1696 = vset.pattern.permute.xlu0 0
  %1697 = vperm.xlu0 %1696, %v1680
  %v1698 = vpop.permute.xlu0 %1697
  %1699 = vset.pattern.permute.xlu0 0
  %1700 = vperm.xlu0 %1699, %v1681
  %v1701 = vpop.permute.xlu0 %1700
  %1702 = vset.pattern.permute.xlu0 0
  %1703 = vperm.xlu0 %1702, %v1682
  %v1704 = vpop.permute.xlu0 %1703
  %1705 = vset.pattern.permute.xlu0 0
  %1706 = vperm.xlu0 %1705, %v1683
  %v1707 = vpop.permute.xlu0 %1706
  %vm1708 = vcmp.eq.s32.totalorder %v1686, 1
  %vm1709 = vcmp.eq.s32.totalorder %v1689, 1
  %vm1710 = vcmp.eq.s32.totalorder %v1692, 1
  %vm1711 = vcmp.eq.s32.totalorder %v1695, 1
  %vm1712 = vcmp.eq.s32.totalorder %v1698, 1
  %vm1713 = vcmp.eq.s32.totalorder %v1701, 1
  %vm1714 = vcmp.eq.s32.totalorder %v1704, 1
  %vm1715 = vcmp.eq.s32.totalorder %v1707, 1
  %v1716 = vsel %vm1708, %v1658, %v1601
  %v1717 = vsel %vm1709, %v1658, %v1602
  %v1718 = vsel %vm1710, %v1658, %v1603
  %v1719 = vsel %vm1711, %v1658, %v1604
  %v1720 = vsel %vm1712, %v1658, %v1605
  %v1721 = vsel %vm1713, %v1658, %v1606
  %v1722 = vsel %vm1714, %v1658, %v1607
  %v1723 = vsel %vm1715, %v1658, %v1608
  %vm1724 = vcmp.eq.s32.totalorder %v1124, 5
  %vm1725 = vcmp.eq.s32.totalorder %v1125, 5
  %vm1726 = vcmp.eq.s32.totalorder %v1126, 5
  %vm1727 = vcmp.eq.s32.totalorder %v1127, 5
  %vm1728 = vcmp.eq.s32.totalorder %v1128, 5
  %vm1729 = vcmp.eq.s32.totalorder %v1129, 5
  %vm1730 = vcmp.eq.s32.totalorder %v1130, 5
  %vm1731 = vcmp.eq.s32.totalorder %v1131, 5
  %v1732 = vsel %vm1724, 1, 0
  %v1733 = vsel %vm1725, 1, 0
  %v1734 = vsel %vm1726, 1, 0
  %v1735 = vsel %vm1727, 1, 0
  %v1736 = vsel %vm1728, 1, 0
  %v1737 = vsel %vm1729, 1, 0
  %v1738 = vsel %vm1730, 1, 0
  %v1739 = vsel %vm1731, 1, 0
  %1740 = vset.pattern.permute.xlu0 0
  %1741 = vperm.xlu0 %1740, %v1732
  %v1742 = vpop.permute.xlu0 %1741
  %1743 = vset.pattern.permute.xlu0 0
  %1744 = vperm.xlu0 %1743, %v1733
  %v1745 = vpop.permute.xlu0 %1744
  %1746 = vset.pattern.permute.xlu0 0
  %1747 = vperm.xlu0 %1746, %v1734
  %v1748 = vpop.permute.xlu0 %1747
  %1749 = vset.pattern.permute.xlu0 0
  %1750 = vperm.xlu0 %1749, %v1735
  %v1751 = vpop.permute.xlu0 %1750
  %1752 = vset.pattern.permute.xlu0 0
  %1753 = vperm.xlu0 %1752, %v1736
  %v1754 = vpop.permute.xlu0 %1753
  %1755 = vset.pattern.permute.xlu0 0
  %1756 = vperm.xlu0 %1755, %v1737
  %v1757 = vpop.permute.xlu0 %1756
  %1758 = vset.pattern.permute.xlu0 0
  %1759 = vperm.xlu0 %1758, %v1738
  %v1760 = vpop.permute.xlu0 %1759
  %1761 = vset.pattern.permute.xlu0 0
  %1762 = vperm.xlu0 %1761, %v1739
  %v1763 = vpop.permute.xlu0 %1762
  %vm1764 = vcmp.eq.s32.totalorder %v1742, 1
  %vm1765 = vcmp.eq.s32.totalorder %v1745, 1
  %vm1766 = vcmp.eq.s32.totalorder %v1748, 1
  %vm1767 = vcmp.eq.s32.totalorder %v1751, 1
  %vm1768 = vcmp.eq.s32.totalorder %v1754, 1
  %vm1769 = vcmp.eq.s32.totalorder %v1757, 1
  %vm1770 = vcmp.eq.s32.totalorder %v1760, 1
  %vm1771 = vcmp.eq.s32.totalorder %v1763, 1
  %v1773 = vrot.slane %v1071, 4
  %v1775 = vsel %vm1764, %v1773, %v1660
  %v1776 = vsel %vm1765, %v1773, %v1661
  %v1777 = vsel %vm1766, %v1773, %v1662
  %v1778 = vsel %vm1767, %v1773, %v1663
  %v1779 = vsel %vm1768, %v1773, %v1664
  %v1780 = vsel %vm1769, %v1773, %v1665
  %v1781 = vsel %vm1770, %v1773, %v1666
  %v1782 = vsel %vm1771, %v1773, %v1667
  %vm1783 = vcmp.eq.s32.totalorder %v1132, 5
  %vm1784 = vcmp.eq.s32.totalorder %v1133, 5
  %vm1785 = vcmp.eq.s32.totalorder %v1134, 5
  %vm1786 = vcmp.eq.s32.totalorder %v1135, 5
  %vm1787 = vcmp.eq.s32.totalorder %v1136, 5
  %vm1788 = vcmp.eq.s32.totalorder %v1137, 5
  %vm1789 = vcmp.eq.s32.totalorder %v1138, 5
  %vm1790 = vcmp.eq.s32.totalorder %v1139, 5
  %v1791 = vsel %vm1783, 1, 0
  %v1792 = vsel %vm1784, 1, 0
  %v1793 = vsel %vm1785, 1, 0
  %v1794 = vsel %vm1786, 1, 0
  %v1795 = vsel %vm1787, 1, 0
  %v1796 = vsel %vm1788, 1, 0
  %v1797 = vsel %vm1789, 1, 0
  %v1798 = vsel %vm1790, 1, 0
  %1799 = vset.pattern.permute.xlu0 0
  %1800 = vperm.xlu0 %1799, %v1791
  %v1801 = vpop.permute.xlu0 %1800
  %1802 = vset.pattern.permute.xlu0 0
  %1803 = vperm.xlu0 %1802, %v1792
  %v1804 = vpop.permute.xlu0 %1803
  %1805 = vset.pattern.permute.xlu0 0
  %1806 = vperm.xlu0 %1805, %v1793
  %v1807 = vpop.permute.xlu0 %1806
  %1808 = vset.pattern.permute.xlu0 0
  %1809 = vperm.xlu0 %1808, %v1794
  %v1810 = vpop.permute.xlu0 %1809
  %1811 = vset.pattern.permute.xlu0 0
  %1812 = vperm.xlu0 %1811, %v1795
  %v1813 = vpop.permute.xlu0 %1812
  %1814 = vset.pattern.permute.xlu0 0
  %1815 = vperm.xlu0 %1814, %v1796
  %v1816 = vpop.permute.xlu0 %1815
  %1817 = vset.pattern.permute.xlu0 0
  %1818 = vperm.xlu0 %1817, %v1797
  %v1819 = vpop.permute.xlu0 %1818
  %1820 = vset.pattern.permute.xlu0 0
  %1821 = vperm.xlu0 %1820, %v1798
  %v1822 = vpop.permute.xlu0 %1821
  %vm1823 = vcmp.eq.s32.totalorder %v1801, 1
  %vm1824 = vcmp.eq.s32.totalorder %v1804, 1
  %vm1825 = vcmp.eq.s32.totalorder %v1807, 1
  %vm1826 = vcmp.eq.s32.totalorder %v1810, 1
  %vm1827 = vcmp.eq.s32.totalorder %v1813, 1
  %vm1828 = vcmp.eq.s32.totalorder %v1816, 1
  %vm1829 = vcmp.eq.s32.totalorder %v1819, 1
  %vm1830 = vcmp.eq.s32.totalorder %v1822, 1
  %v1831 = vsel %vm1823, %v1773, %v1716
  %v1832 = vsel %vm1824, %v1773, %v1717
  %v1833 = vsel %vm1825, %v1773, %v1718
  %v1834 = vsel %vm1826, %v1773, %v1719
  %v1835 = vsel %vm1827, %v1773, %v1720
  %v1836 = vsel %vm1828, %v1773, %v1721
  %v1837 = vsel %vm1829, %v1773, %v1722
  %v1838 = vsel %vm1830, %v1773, %v1723
  %vm1839 = vcmp.eq.s32.totalorder %v1124, 6
  %vm1840 = vcmp.eq.s32.totalorder %v1125, 6
  %vm1841 = vcmp.eq.s32.totalorder %v1126, 6
  %vm1842 = vcmp.eq.s32.totalorder %v1127, 6
  %vm1843 = vcmp.eq.s32.totalorder %v1128, 6
  %vm1844 = vcmp.eq.s32.totalorder %v1129, 6
  %vm1845 = vcmp.eq.s32.totalorder %v1130, 6
  %vm1846 = vcmp.eq.s32.totalorder %v1131, 6
  %v1847 = vsel %vm1839, 1, 0
  %v1848 = vsel %vm1840, 1, 0
  %v1849 = vsel %vm1841, 1, 0
  %v1850 = vsel %vm1842, 1, 0
  %v1851 = vsel %vm1843, 1, 0
  %v1852 = vsel %vm1844, 1, 0
  %v1853 = vsel %vm1845, 1, 0
  %v1854 = vsel %vm1846, 1, 0
  %1855 = vset.pattern.permute.xlu0 0
  %1856 = vperm.xlu0 %1855, %v1847
  %v1857 = vpop.permute.xlu0 %1856
  %1858 = vset.pattern.permute.xlu0 0
  %1859 = vperm.xlu0 %1858, %v1848
  %v1860 = vpop.permute.xlu0 %1859
  %1861 = vset.pattern.permute.xlu0 0
  %1862 = vperm.xlu0 %1861, %v1849
  %v1863 = vpop.permute.xlu0 %1862
  %1864 = vset.pattern.permute.xlu0 0
  %1865 = vperm.xlu0 %1864, %v1850
  %v1866 = vpop.permute.xlu0 %1865
  %1867 = vset.pattern.permute.xlu0 0
  %1868 = vperm.xlu0 %1867, %v1851
  %v1869 = vpop.permute.xlu0 %1868
  %1870 = vset.pattern.permute.xlu0 0
  %1871 = vperm.xlu0 %1870, %v1852
  %v1872 = vpop.permute.xlu0 %1871
  %1873 = vset.pattern.permute.xlu0 0
  %1874 = vperm.xlu0 %1873, %v1853
  %v1875 = vpop.permute.xlu0 %1874
  %1876 = vset.pattern.permute.xlu0 0
  %1877 = vperm.xlu0 %1876, %v1854
  %v1878 = vpop.permute.xlu0 %1877
  %vm1879 = vcmp.eq.s32.totalorder %v1857, 1
  %vm1880 = vcmp.eq.s32.totalorder %v1860, 1
  %vm1881 = vcmp.eq.s32.totalorder %v1863, 1
  %vm1882 = vcmp.eq.s32.totalorder %v1866, 1
  %vm1883 = vcmp.eq.s32.totalorder %v1869, 1
  %vm1884 = vcmp.eq.s32.totalorder %v1872, 1
  %vm1885 = vcmp.eq.s32.totalorder %v1875, 1
  %vm1886 = vcmp.eq.s32.totalorder %v1878, 1
  %v1888 = vrot.slane %v1072, 4
  %v1890 = vsel %vm1879, %v1888, %v1775
  %v1891 = vsel %vm1880, %v1888, %v1776
  %v1892 = vsel %vm1881, %v1888, %v1777
  %v1893 = vsel %vm1882, %v1888, %v1778
  %v1894 = vsel %vm1883, %v1888, %v1779
  %v1895 = vsel %vm1884, %v1888, %v1780
  %v1896 = vsel %vm1885, %v1888, %v1781
  %v1897 = vsel %vm1886, %v1888, %v1782
  %vm1898 = vcmp.eq.s32.totalorder %v1132, 6
  %vm1899 = vcmp.eq.s32.totalorder %v1133, 6
  %vm1900 = vcmp.eq.s32.totalorder %v1134, 6
  %vm1901 = vcmp.eq.s32.totalorder %v1135, 6
  %vm1902 = vcmp.eq.s32.totalorder %v1136, 6
  %vm1903 = vcmp.eq.s32.totalorder %v1137, 6
  %vm1904 = vcmp.eq.s32.totalorder %v1138, 6
  %vm1905 = vcmp.eq.s32.totalorder %v1139, 6
  %v1906 = vsel %vm1898, 1, 0
  %v1907 = vsel %vm1899, 1, 0
  %v1908 = vsel %vm1900, 1, 0
  %v1909 = vsel %vm1901, 1, 0
  %v1910 = vsel %vm1902, 1, 0
  %v1911 = vsel %vm1903, 1, 0
  %v1912 = vsel %vm1904, 1, 0
  %v1913 = vsel %vm1905, 1, 0
  %1914 = vset.pattern.permute.xlu0 0
  %1915 = vperm.xlu0 %1914, %v1906
  %v1916 = vpop.permute.xlu0 %1915
  %1917 = vset.pattern.permute.xlu0 0
  %1918 = vperm.xlu0 %1917, %v1907
  %v1919 = vpop.permute.xlu0 %1918
  %1920 = vset.pattern.permute.xlu0 0
  %1921 = vperm.xlu0 %1920, %v1908
  %v1922 = vpop.permute.xlu0 %1921
  %1923 = vset.pattern.permute.xlu0 0
  %1924 = vperm.xlu0 %1923, %v1909
  %v1925 = vpop.permute.xlu0 %1924
  %1926 = vset.pattern.permute.xlu0 0
  %1927 = vperm.xlu0 %1926, %v1910
  %v1928 = vpop.permute.xlu0 %1927
  %1929 = vset.pattern.permute.xlu0 0
  %1930 = vperm.xlu0 %1929, %v1911
  %v1931 = vpop.permute.xlu0 %1930
  %1932 = vset.pattern.permute.xlu0 0
  %1933 = vperm.xlu0 %1932, %v1912
  %v1934 = vpop.permute.xlu0 %1933
  %1935 = vset.pattern.permute.xlu0 0
  %1936 = vperm.xlu0 %1935, %v1913
  %v1937 = vpop.permute.xlu0 %1936
  %vm1938 = vcmp.eq.s32.totalorder %v1916, 1
  %vm1939 = vcmp.eq.s32.totalorder %v1919, 1
  %vm1940 = vcmp.eq.s32.totalorder %v1922, 1
  %vm1941 = vcmp.eq.s32.totalorder %v1925, 1
  %vm1942 = vcmp.eq.s32.totalorder %v1928, 1
  %vm1943 = vcmp.eq.s32.totalorder %v1931, 1
  %vm1944 = vcmp.eq.s32.totalorder %v1934, 1
  %vm1945 = vcmp.eq.s32.totalorder %v1937, 1
  %v1946 = vsel %vm1938, %v1888, %v1831
  %v1947 = vsel %vm1939, %v1888, %v1832
  %v1948 = vsel %vm1940, %v1888, %v1833
  %v1949 = vsel %vm1941, %v1888, %v1834
  %v1950 = vsel %vm1942, %v1888, %v1835
  %v1951 = vsel %vm1943, %v1888, %v1836
  %v1952 = vsel %vm1944, %v1888, %v1837
  %v1953 = vsel %vm1945, %v1888, %v1838
  %vm1954 = vcmp.eq.s32.totalorder %v1124, 7
  %vm1955 = vcmp.eq.s32.totalorder %v1125, 7
  %vm1956 = vcmp.eq.s32.totalorder %v1126, 7
  %vm1957 = vcmp.eq.s32.totalorder %v1127, 7
  %vm1958 = vcmp.eq.s32.totalorder %v1128, 7
  %vm1959 = vcmp.eq.s32.totalorder %v1129, 7
  %vm1960 = vcmp.eq.s32.totalorder %v1130, 7
  %vm1961 = vcmp.eq.s32.totalorder %v1131, 7
  %v1962 = vsel %vm1954, 1, 0
  %v1963 = vsel %vm1955, 1, 0
  %v1964 = vsel %vm1956, 1, 0
  %v1965 = vsel %vm1957, 1, 0
  %v1966 = vsel %vm1958, 1, 0
  %v1967 = vsel %vm1959, 1, 0
  %v1968 = vsel %vm1960, 1, 0
  %v1969 = vsel %vm1961, 1, 0
  %1970 = vset.pattern.permute.xlu0 0
  %1971 = vperm.xlu0 %1970, %v1962
  %v1972 = vpop.permute.xlu0 %1971
  %1973 = vset.pattern.permute.xlu0 0
  %1974 = vperm.xlu0 %1973, %v1963
  %v1975 = vpop.permute.xlu0 %1974
  %1976 = vset.pattern.permute.xlu0 0
  %1977 = vperm.xlu0 %1976, %v1964
  %v1978 = vpop.permute.xlu0 %1977
  %1979 = vset.pattern.permute.xlu0 0
  %1980 = vperm.xlu0 %1979, %v1965
  %v1981 = vpop.permute.xlu0 %1980
  %1982 = vset.pattern.permute.xlu0 0
  %1983 = vperm.xlu0 %1982, %v1966
  %v1984 = vpop.permute.xlu0 %1983
  %1985 = vset.pattern.permute.xlu0 0
  %1986 = vperm.xlu0 %1985, %v1967
  %v1987 = vpop.permute.xlu0 %1986
  %1988 = vset.pattern.permute.xlu0 0
  %1989 = vperm.xlu0 %1988, %v1968
  %v1990 = vpop.permute.xlu0 %1989
  %1991 = vset.pattern.permute.xlu0 0
  %1992 = vperm.xlu0 %1991, %v1969
  %v1993 = vpop.permute.xlu0 %1992
  %vm1994 = vcmp.eq.s32.totalorder %v1972, 1
  %vm1995 = vcmp.eq.s32.totalorder %v1975, 1
  %vm1996 = vcmp.eq.s32.totalorder %v1978, 1
  %vm1997 = vcmp.eq.s32.totalorder %v1981, 1
  %vm1998 = vcmp.eq.s32.totalorder %v1984, 1
  %vm1999 = vcmp.eq.s32.totalorder %v1987, 1
  %vm2000 = vcmp.eq.s32.totalorder %v1990, 1
  %vm2001 = vcmp.eq.s32.totalorder %v1993, 1
  %v2003 = vrot.slane %v1073, 4
  %v2005 = vsel %vm1994, %v2003, %v1890
  %v2006 = vsel %vm1995, %v2003, %v1891
  %v2007 = vsel %vm1996, %v2003, %v1892
  %v2008 = vsel %vm1997, %v2003, %v1893
  %v2009 = vsel %vm1998, %v2003, %v1894
  %v2010 = vsel %vm1999, %v2003, %v1895
  %v2011 = vsel %vm2000, %v2003, %v1896
  %v2012 = vsel %vm2001, %v2003, %v1897
  %vm2013 = vcmp.eq.s32.totalorder %v1132, 7
  %vm2014 = vcmp.eq.s32.totalorder %v1133, 7
  %vm2015 = vcmp.eq.s32.totalorder %v1134, 7
  %vm2016 = vcmp.eq.s32.totalorder %v1135, 7
  %vm2017 = vcmp.eq.s32.totalorder %v1136, 7
  %vm2018 = vcmp.eq.s32.totalorder %v1137, 7
  %vm2019 = vcmp.eq.s32.totalorder %v1138, 7
  %vm2020 = vcmp.eq.s32.totalorder %v1139, 7
  %v2021 = vsel %vm2013, 1, 0
  %v2022 = vsel %vm2014, 1, 0
  %v2023 = vsel %vm2015, 1, 0
  %v2024 = vsel %vm2016, 1, 0
  %v2025 = vsel %vm2017, 1, 0
  %v2026 = vsel %vm2018, 1, 0
  %v2027 = vsel %vm2019, 1, 0
  %v2028 = vsel %vm2020, 1, 0
  %2029 = vset.pattern.permute.xlu0 0
  %2030 = vperm.xlu0 %2029, %v2021
  %v2031 = vpop.permute.xlu0 %2030
  %2032 = vset.pattern.permute.xlu0 0
  %2033 = vperm.xlu0 %2032, %v2022
  %v2034 = vpop.permute.xlu0 %2033
  %2035 = vset.pattern.permute.xlu0 0
  %2036 = vperm.xlu0 %2035, %v2023
  %v2037 = vpop.permute.xlu0 %2036
  %2038 = vset.pattern.permute.xlu0 0
  %2039 = vperm.xlu0 %2038, %v2024
  %v2040 = vpop.permute.xlu0 %2039
  %2041 = vset.pattern.permute.xlu0 0
  %2042 = vperm.xlu0 %2041, %v2025
  %v2043 = vpop.permute.xlu0 %2042
  %2044 = vset.pattern.permute.xlu0 0
  %2045 = vperm.xlu0 %2044, %v2026
  %v2046 = vpop.permute.xlu0 %2045
  %2047 = vset.pattern.permute.xlu0 0
  %2048 = vperm.xlu0 %2047, %v2027
  %v2049 = vpop.permute.xlu0 %2048
  %2050 = vset.pattern.permute.xlu0 0
  %2051 = vperm.xlu0 %2050, %v2028
  %v2052 = vpop.permute.xlu0 %2051
  %vm2053 = vcmp.eq.s32.totalorder %v2031, 1
  %vm2054 = vcmp.eq.s32.totalorder %v2034, 1
  %vm2055 = vcmp.eq.s32.totalorder %v2037, 1
  %vm2056 = vcmp.eq.s32.totalorder %v2040, 1
  %vm2057 = vcmp.eq.s32.totalorder %v2043, 1
  %vm2058 = vcmp.eq.s32.totalorder %v2046, 1
  %vm2059 = vcmp.eq.s32.totalorder %v2049, 1
  %vm2060 = vcmp.eq.s32.totalorder %v2052, 1
  %v2061 = vsel %vm2053, %v2003, %v1946
  %v2062 = vsel %vm2054, %v2003, %v1947
  %v2063 = vsel %vm2055, %v2003, %v1948
  %v2064 = vsel %vm2056, %v2003, %v1949
  %v2065 = vsel %vm2057, %v2003, %v1950
  %v2066 = vsel %vm2058, %v2003, %v1951
  %v2067 = vsel %vm2059, %v2003, %v1952
  %v2068 = vsel %vm2060, %v2003, %v1953
  %2069 = vst.msk [vmem:[%s9] sm:$0xf] %vm1074, %v1066
  %2070 = vst.msk [vmem:[%s9 + $0x4] sm:$0xf] %vm1074, %v1067
  %2071 = vst.msk [vmem:[%s9 + $0x8] sm:$0xf] %vm1074, %v1068
  %2072 = vst.msk [vmem:[%s9 + $0xc] sm:$0xf] %vm1074, %v1069
  %2073 = vst.msk [vmem:[%s9 + $0x10] sm:$0xf] %vm1074, %v1070
  %2074 = vst.msk [vmem:[%s9 + $0x14] sm:$0xf] %vm1074, %v1071
  %2075 = vst.msk [vmem:[%s9 + $0x18] sm:$0xf] %vm1074, %v1072
  %2076 = vst.msk [vmem:[%s9 + $0x1c] sm:$0xf] %vm1074, %v1073
  %2085 = vrot.lane.b32.xlu0 %v2005, 32
  %v2086 = vpop.permute.xlu0 %2085
  %2087 = vrot.lane.b32.xlu0 %v2006, 32
  %v2088 = vpop.permute.xlu0 %2087
  %2089 = vrot.lane.b32.xlu0 %v2007, 32
  %v2090 = vpop.permute.xlu0 %2089
  %2091 = vrot.lane.b32.xlu0 %v2008, 32
  %v2092 = vpop.permute.xlu0 %2091
  %2093 = vrot.lane.b32.xlu0 %v2009, 32
  %v2094 = vpop.permute.xlu0 %2093
  %2095 = vrot.lane.b32.xlu0 %v2010, 32
  %v2096 = vpop.permute.xlu0 %2095
  %2097 = vrot.lane.b32.xlu0 %v2011, 32
  %v2098 = vpop.permute.xlu0 %2097
  %2099 = vrot.lane.b32.xlu0 %v2012, 32
  %v2100 = vpop.permute.xlu0 %2099
  %vm2109 = vcmask 519424
  %2110 = vst.msk [vmem:[%s9] sm:$0xf] %vm2109, %v2086
  %2111 = vst.msk [vmem:[%s9 + $0x4] sm:$0xf] %vm2109, %v2088
  %2112 = vst.msk [vmem:[%s9 + $0x8] sm:$0xf] %vm2109, %v2090
  %2113 = vst.msk [vmem:[%s9 + $0xc] sm:$0xf] %vm2109, %v2092
  %2114 = vst.msk [vmem:[%s9 + $0x10] sm:$0xf] %vm2109, %v2094
  %2115 = vst.msk [vmem:[%s9 + $0x14] sm:$0xf] %vm2109, %v2096
  %2116 = vst.msk [vmem:[%s9 + $0x18] sm:$0xf] %vm2109, %v2098
  %2117 = vst.msk [vmem:[%s9 + $0x1c] sm:$0xf] %vm2109, %v2100
  %v2118 = vsel %vm1141, 1, 0
  %v2119 = vsel %vm1142, 1, 0
  %v2120 = vsel %vm1143, 1, 0
  %v2121 = vsel %vm1144, 1, 0
  %v2122 = vsel %vm1145, 1, 0
  %v2123 = vsel %vm1146, 1, 0
  %v2124 = vsel %vm1147, 1, 0
  %v2125 = vsel %vm1148, 1, 0
  %2126 = vset.pattern.permute.xlu0 0
  %2127 = vperm.xlu0 %2126, %v2118
  %v2128 = vpop.permute.xlu0 %2127
  %2129 = vset.pattern.permute.xlu0 0
  %2130 = vperm.xlu0 %2129, %v2119
  %v2131 = vpop.permute.xlu0 %2130
  %2132 = vset.pattern.permute.xlu0 0
  %2133 = vperm.xlu0 %2132, %v2120
  %v2134 = vpop.permute.xlu0 %2133
  %2135 = vset.pattern.permute.xlu0 0
  %2136 = vperm.xlu0 %2135, %v2121
  %v2137 = vpop.permute.xlu0 %2136
  %2138 = vset.pattern.permute.xlu0 0
  %2139 = vperm.xlu0 %2138, %v2122
  %v2140 = vpop.permute.xlu0 %2139
  %2141 = vset.pattern.permute.xlu0 0
  %2142 = vperm.xlu0 %2141, %v2123
  %v2143 = vpop.permute.xlu0 %2142
  %2144 = vset.pattern.permute.xlu0 0
  %2145 = vperm.xlu0 %2144, %v2124
  %v2146 = vpop.permute.xlu0 %2145
  %2147 = vset.pattern.permute.xlu0 0
  %2148 = vperm.xlu0 %2147, %v2125
  %v2149 = vpop.permute.xlu0 %2148
  %vm2150 = vcmp.eq.s32.totalorder %v2128, 1
  %vm2151 = vcmp.eq.s32.totalorder %v2131, 1
  %vm2152 = vcmp.eq.s32.totalorder %v2134, 1
  %vm2153 = vcmp.eq.s32.totalorder %v2137, 1
  %vm2154 = vcmp.eq.s32.totalorder %v2140, 1
  %vm2155 = vcmp.eq.s32.totalorder %v2143, 1
  %vm2156 = vcmp.eq.s32.totalorder %v2146, 1
  %vm2157 = vcmp.eq.s32.totalorder %v2149, 1
  %v2158 = vsel %vm2150, %v1066, 0.0
  %v2159 = vsel %vm2151, %v1067, 0.0
  %v2160 = vsel %vm2152, %v1068, 0.0
  %v2161 = vsel %vm2153, %v1069, 0.0
  %v2162 = vsel %vm2154, %v1070, 0.0
  %v2163 = vsel %vm2155, %v1071, 0.0
  %v2164 = vsel %vm2156, %v1072, 0.0
  %v2165 = vsel %vm2157, %v1073, 0.0
  %2166 = vst.msk [vmem:[%s10] sm:$0xf] %vm1074, %v2158
  %2167 = vst.msk [vmem:[%s10 + $0x4] sm:$0xf] %vm1074, %v2159
  %2168 = vst.msk [vmem:[%s10 + $0x8] sm:$0xf] %vm1074, %v2160
  %2169 = vst.msk [vmem:[%s10 + $0xc] sm:$0xf] %vm1074, %v2161
  %2170 = vst.msk [vmem:[%s10 + $0x10] sm:$0xf] %vm1074, %v2162
  %2171 = vst.msk [vmem:[%s10 + $0x14] sm:$0xf] %vm1074, %v2163
  %2172 = vst.msk [vmem:[%s10 + $0x18] sm:$0xf] %vm1074, %v2164
  %2173 = vst.msk [vmem:[%s10 + $0x1c] sm:$0xf] %vm1074, %v2165
  %2182 = vrot.lane.b32.xlu0 %v2061, 32
  %v2183 = vpop.permute.xlu0 %2182
  %2184 = vrot.lane.b32.xlu0 %v2062, 32
  %v2185 = vpop.permute.xlu0 %2184
  %2186 = vrot.lane.b32.xlu0 %v2063, 32
  %v2187 = vpop.permute.xlu0 %2186
  %2188 = vrot.lane.b32.xlu0 %v2064, 32
  %v2189 = vpop.permute.xlu0 %2188
  %2190 = vrot.lane.b32.xlu0 %v2065, 32
  %v2191 = vpop.permute.xlu0 %2190
  %2192 = vrot.lane.b32.xlu0 %v2066, 32
  %v2193 = vpop.permute.xlu0 %2192
  %2194 = vrot.lane.b32.xlu0 %v2067, 32
  %v2195 = vpop.permute.xlu0 %2194
  %2196 = vrot.lane.b32.xlu0 %v2068, 32
  %v2197 = vpop.permute.xlu0 %2196
  %2206 = vst.msk [vmem:[%s10] sm:$0xf] %vm2109, %v2183
  %2207 = vst.msk [vmem:[%s10 + $0x4] sm:$0xf] %vm2109, %v2185
  %2208 = vst.msk [vmem:[%s10 + $0x8] sm:$0xf] %vm2109, %v2187
  %2209 = vst.msk [vmem:[%s10 + $0xc] sm:$0xf] %vm2109, %v2189
  %2210 = vst.msk [vmem:[%s10 + $0x10] sm:$0xf] %vm2109, %v2191
  %2211 = vst.msk [vmem:[%s10 + $0x14] sm:$0xf] %vm2109, %v2193
  %2212 = vst.msk [vmem:[%s10 + $0x18] sm:$0xf] %vm2109, %v2195
  %2213 = vst.msk [vmem:[%s10 + $0x1c] sm:$0xf] %vm2109, %v2197
  // Predicated region
  $region34: #{bilstm_forward.2} parent=0 // pred_check
    _
  $region35: #{bilstm_forward.2} parent=0 // pred_check_branch
    %2215 = sbr.rel (0) target = $region37
  $region36: #{bilstm_forward.2} parent=0 // pred_region
    _
  $region37: #{bilstm_forward.2} parent=0 // pred_fallthru
    _
  // Predicated region
  $region38: #{bilstm_forward.2} parent=0 // pred_check
    _
  $region39: #{bilstm_forward.2} parent=0 // pred_check_branch
    %2217 = sbr.rel (0) target = $region41
  $region40: #{bilstm_forward.2} parent=0 // pred_region
    _
  $region41: #{bilstm_forward.2} parent=0 // pred_fallthru
    _
  // Predicated region
  $region42: #{bilstm_forward.2} parent=0 // pred_check
    _
  $region43: #{bilstm_forward.2} parent=0 // pred_check_branch
    %2219 = sbr.rel (0) target = $region45
  $region44: #{bilstm_forward.2} parent=0 // pred_region
    _
  $region45: #{bilstm_forward.2} parent=0 // pred_fallthru
    _
  // Predicated region
  $region46: #{bilstm_forward.2} parent=0 // pred_check
    _
  $region47: #{bilstm_forward.2} parent=0 // pred_check_branch
    %2221 = sbr.rel (0) target = $region49
  $region48: #{bilstm_forward.2} parent=0 // pred_region
    _
  $region49: #{bilstm_forward.2} parent=0 // pred_fallthru
    _
  // Predicated region
  $region50: #{bilstm_forward.2} parent=0 // pred_check
    _
  $region51: #{bilstm_forward.2} parent=0 // pred_check_branch
    %2223 = sbr.rel (0) target = $region53
  $region52: #{bilstm_forward.2} parent=0 // pred_region
    _
  $region53: #{bilstm_forward.2} parent=0 // pred_fallthru
    _
  // Predicated region
  $region54: #{bilstm_forward.2} parent=0 // pred_check
    _
  $region55: #{bilstm_forward.2} parent=0 // pred_check_branch
    %2225 = sbr.rel (0) target = $region57
  $region56: #{bilstm_forward.2} parent=0 // pred_region
    _
  $region57: #{bilstm_forward.2} parent=0 // pred_fallthru
    _

</llo_original>
